<compile_context>
chip_gen: v5e
topology: v5e:2x2
jax: 0.10.0
libtpu: 0.0.40
codegen_flags: <defaults>
</compile_context>

<pallas_src>
import functools

import jax
import jax.numpy as jnp
from jax.experimental import pallas as pl
from jax.experimental.pallas import tpu as pltpu


def _round_up(x, m):
    return (x + m - 1) // m * m


def location_attention_kernel(enc_ref, mp_ref, wq_ref, wpack_ref,
                              ctx_ref, attn_ref, col_ref, *,
                              E, KP, off_v, off_cu, off_w):
    T, BB, _ = enc_ref.shape
    A = wpack_ref.shape[1]

    # Packed small weights (streaming dtype): V_w^T, conv folded into U, w row.
    vw = wpack_ref[off_v:off_v + E, :]                        # (E, A)
    cu = wpack_ref[off_cu:off_cu + KP, :]                     # (KP, A); rows K..KP-1 are zero
    wvec = wpack_ref[off_w:off_w + 1, :].astype(jnp.float32)  # (1, A)

    # Time-major im2col of the zero-padded previous-attention row, built in VMEM
    # from the tiny (BB, T+KP-1) slab: rows [t*BB, (t+1)*BB) hold mp[:, t:t+KP].
    # No (B, T, K) tensor ever touches HBM.
    # TODO(synk): for very long T (>~512) switch this static unroll to a blocked
    # copy to keep program size in check.
    for t in range(T):  # static unroll; T is a trace-time constant
        col_ref[t * BB:(t + 1) * BB, :] = mp_ref[:, t:t + KP]

    # energies = V(enc) + U(f(prev_attn)) + (W(query) + V_b + W_b + U_b)
    enc3 = enc_ref[...]                                       # (T, BB, E)
    enc2 = enc3.reshape(T * BB, E)                            # free view (BB % 8 == 0)
    e = jnp.dot(enc2, vw, preferred_element_type=jnp.float32)
    e = e + jnp.dot(col_ref[...], cu, preferred_element_type=jnp.float32)
    e = e.reshape(T, BB, A) + wq_ref[...][None, :, :]         # (T, BB, A) f32

    # scores = w . tanh(energies): EUP tanh, VPU multiply, XLU lane reduce.
    scores = jnp.sum(jnp.tanh(e) * wvec.reshape(1, 1, A),
                     axis=-1, keepdims=True)                  # (T, BB, 1)

    # softmax over time (axis 0), f32  (== F.softmax(energies, dim=0) in PyTorch)
    m = jnp.max(scores, axis=0, keepdims=True)
    ex = jnp.exp(scores - m)
    attn = ex / jnp.sum(ex, axis=0, keepdims=True)            # (T, BB, 1)

    # context[b, e] = sum_t attn[t, b] * enc[t, b, e]
    # VPU broadcast-multiply + accumulate over the leading T axis (MXU stays free).
    ctx = jnp.sum(enc3.astype(jnp.float32) * attn, axis=0)    # (BB, E)

    ctx_ref[...] = ctx.astype(ctx_ref.dtype)
    # Tiny (T, BB) -> (BB, T) transpose so the output is batch-major like PyTorch.
    attn_ref[...] = attn.reshape(T, BB).T.astype(attn_ref.dtype)


def location_attention(query, encoder_out, mask, params, *, block_b=64, interpret=False):
    """query: (B, Q), encoder_out: (T, B, E), mask: (1, B, T)  [PyTorch conventions].

    encoder_out is consumed in its native time-major layout and native dtype
    (pass bf16 to halve the dominant HBM bytes); tanh/softmax math stays f32.
    """
    T, B, E = encoder_out.shape
    A = params["V_w"].shape[0]
    Floc, _, K = params["conv_w"].shape
    KP = _round_up(K, 8)              # conv taps padded; extra taps hit zero weight rows
    left = (K - 1) // 2
    right = left + (KP - K)
    S = T + KP - 1

    dt = encoder_out.dtype            # streaming dtype (f32 or bf16)
    f32 = jnp.float32

    # Query/bias term computed once in the wrapper (tiny): wq = W(query) + all biases.
    bias_all = (params["V_b"] + params["W_b"] + params["U_b"]).astype(f32)
    wq = query.astype(f32) @ params["W_w"].T.astype(f32) + bias_all            # (B, A)

    # Fold the 1-D location conv into U:  CU[k, a] = sum_f conv_w[f, 0, k] * U_w[a, f]
    CU = params["conv_w"][:, 0, :].astype(f32).T @ params["U_w"].astype(f32).T  # (K, A)

    # Pack the remaining small weights into one slab with 8-row-aligned sections.
    off_v = 0
    off_cu = _round_up(off_v + E, 8)
    off_w = _round_up(off_cu + KP, 8)
    rows = _round_up(off_w + 1, 8)
    wpack = jnp.zeros((rows, A), f32)
    wpack = wpack.at[off_v:off_v + E].set(params["V_w"].astype(f32).T)
    wpack = wpack.at[off_cu:off_cu + K].set(CU)
    wpack = wpack.at[off_w].set(params["w_w"][0].astype(f32))
    wpack = wpack.astype(dt)

    # Zero-padded previous attention row, batch-major (tiny: B x (T+KP-1)).
    mp = jnp.pad(mask[0].astype(f32), ((0, 0), (left, right))).astype(dt)      # (B, S)

    # Batch tiling: largest multiple-of-8 block dividing B (no padding copy of the
    # encoder tensor); prefer >= 2 grid blocks so both v7x TensorCores get work.
    bb_max = max(8, (min(block_b, B) // 8) * 8)
    cands = [bb for bb in range(8, bb_max + 1, 8) if B % bb == 0]
    if cands:
        BB = cands[-1]
        if BB == B and len(cands) > 1:
            BB = cands[-2]
    else:
        BB = B  # odd batch fallback: single block (block == full dim is allowed)
    grid = (B // BB,)

    # VMEM budget: double-buffered blocks + im2col scratch + f32 temporaries,
    # capped at 48 MiB (safe on v7x's 64 MiB physical VMEM).
    dsz = jnp.dtype(dt).itemsize
    est = (2 * (T * BB * E * dsz + BB * S * dsz + BB * A * 4 + rows * A * dsz)
           + 2 * (BB * E * 4 + BB * T * 4)
           + T * BB * KP * dsz
           + 4 * T * BB * A * 4)
    vmem_limit = int(min(48 * 2 ** 20, max(32 * 2 ** 20, 2 * est)))

    kernel = functools.partial(location_attention_kernel, E=E, KP=KP,
                               off_v=off_v, off_cu=off_cu, off_w=off_w)

    ctx, attn_bt = pl.pallas_call(
        kernel,
        out_shape=(jax.ShapeDtypeStruct((B, E), f32),
                   jax.ShapeDtypeStruct((B, T), f32)),
        grid=grid,
        in_specs=[pl.BlockSpec((T, BB, E), lambda b: (0, b, 0)),
                  pl.BlockSpec((BB, S), lambda b: (b, 0)),
                  pl.BlockSpec((BB, A), lambda b: (b, 0)),
                  pl.BlockSpec((rows, A), lambda b: (0, 0))],
        out_specs=(pl.BlockSpec((BB, E), lambda b: (b, 0)),
                   pl.BlockSpec((BB, T), lambda b: (b, 0))),
        scratch_shapes=[pltpu.VMEM((T * BB, KP), dt)],
        compiler_params=pltpu.CompilerParams(
            dimension_semantics=("parallel",),
            vmem_limit_bytes=vmem_limit),
        interpret=interpret,
    )(encoder_out, mp, wq, wpack)

    context = ctx[None, :, :]       # (1, B, E)  == PyTorch context.permute(2, 0, 1)
    attn_out = attn_bt[None, :, :]  # (1, B, T)  == PyTorch mask.permute(2, 1, 0)
    return context, attn_out


def location_attention_ref(query, encoder_out, mask, params):
    """Pure-JAX reference mirroring the PyTorch forward exactly."""
    K = params["conv_w"].shape[-1]
    pad = (K - 1) // 2
    enc_v = encoder_out @ params["V_w"].T + params["V_b"]                 # (T, B, A)
    q_w = query @ params["W_w"].T + params["W_b"]                         # (B, A)
    energies = enc_v + q_w
    x = jnp.transpose(mask, (1, 0, 2))                                    # (B, 1, T)
    loc = jax.lax.conv_general_dilated(
        x, params["conv_w"], window_strides=(1,), padding=((pad, pad),),
        dimension_numbers=("NCH", "OIH", "NCH"))                          # (B, F, T)
    u = jnp.transpose(loc, (2, 0, 1)) @ params["U_w"].T + params["U_b"]
    energies = energies + u
    scores = jnp.tanh(energies) @ params["w_w"].T                         # (T, B, 1)
    attn = jax.nn.softmax(scores, axis=0)
    ctx = jnp.matmul(jnp.transpose(encoder_out, (1, 2, 0)),
                     jnp.transpose(attn, (1, 0, 2)))                      # (B, E, 1)
    context = jnp.transpose(ctx, (2, 0, 1))                               # (1, B, E)
    mask_out = jnp.transpose(attn, (2, 1, 0))                             # (1, B, T)
    return context, mask_out


if __name__ == "__main__":
    B, T, E, Q, A, Floc, K = 16, 64, 32, 16, 32, 32, 31

    key = jax.random.PRNGKey(0)
    ks = jax.random.split(key, 12)
    params = {
        "V_w": 0.1 * jax.random.normal(ks[0], (A, E), jnp.float32),
        "V_b": 0.1 * jax.random.normal(ks[1], (A,), jnp.float32),
        "W_w": 0.1 * jax.random.normal(ks[2], (A, Q), jnp.float32),
        "W_b": 0.1 * jax.random.normal(ks[3], (A,), jnp.float32),
        "U_w": 0.1 * jax.random.normal(ks[4], (A, Floc), jnp.float32),
        "U_b": 0.1 * jax.random.normal(ks[5], (A,), jnp.float32),
        "conv_w": 0.1 * jax.random.normal(ks[6], (Floc, 1, K), jnp.float32),
        "w_w": 0.1 * jax.random.normal(ks[7], (1, A), jnp.float32),
    }

    query = jax.random.normal(ks[8], (B, Q), jnp.float32)
    encoder_out = jax.random.normal(ks[9], (T, B, E), jnp.float32)
    prev_attn = jax.nn.softmax(jax.random.normal(ks[10], (1, B, T), jnp.float32), axis=-1)

    ref_ctx, ref_attn = location_attention_ref(query, encoder_out, prev_attn, params)

    # f32 streaming (encoder_out consumed untouched: no transpose, no cast pass).
    context, attn = location_attention(query, encoder_out, prev_attn, params, block_b=64)
    jax.block_until_ready((context, attn))
    assert context.shape == (1, B, E) and attn.shape == (1, B, T)
    assert jnp.allclose(context, ref_ctx, rtol=2e-4, atol=2e-4), \
        float(jnp.max(jnp.abs(context - ref_ctx)))
    assert jnp.allclose(attn, ref_attn, rtol=2e-4, atol=2e-4), \
        float(jnp.max(jnp.abs(attn - ref_attn)))

    # bf16 streaming path (as if the encoder produced bf16): MXU operands in bf16,
    # f32 accumulation and f32 tanh/softmax in the kernel.
    ctx_bf, attn_bf = location_attention(
        query, encoder_out.astype(jnp.bfloat16), prev_attn, params, block_b=64)
    jax.block_until_ready((ctx_bf, attn_bf))
    assert jnp.allclose(ctx_bf, ref_ctx, rtol=5e-2, atol=5e-2), \
        float(jnp.max(jnp.abs(ctx_bf - ref_ctx)))
    assert jnp.allclose(attn_bf, ref_attn, rtol=5e-2, atol=5e-2), \
        float(jnp.max(jnp.abs(attn_bf - ref_attn)))

    print("KERNEL_OK")
</pallas_src>

<mosaic_0001>
module attributes {stable_mosaic.version = 11 : i64} {
  func.func @location_attention_kernel(%arg0: i32, %arg1: memref<64x8x32xf32, #tpu.memory_space<vmem>>, %arg2: memref<8x95xf32, #tpu.memory_space<vmem>>, %arg3: memref<8x32xf32, #tpu.memory_space<vmem>>, %arg4: memref<72x32xf32, #tpu.memory_space<vmem>>, %arg5: memref<8x32xf32, #tpu.memory_space<vmem>>, %arg6: memref<8x64xf32, #tpu.memory_space<vmem>>, %arg7: memref<512x32xf32, #tpu.memory_space<vmem>>) attributes {dimension_semantics = [#tpu.dimension_semantics<parallel>], iteration_bounds = array<i64: 2>, scalar_prefetch = 0 : i64, scratch_operands = 1 : i64, tpu.core_type = #tpu.core_type<tc>, window_params = [{transform_indices = @transform_0, window_bounds = array<i64: 64, 8, 32>}, {transform_indices = @transform_1, window_bounds = array<i64: 8, 95>}, {transform_indices = @transform_2, window_bounds = array<i64: 8, 32>}, {pipeline_mode = #tpu.pipeline_mode<synchronous>, transform_indices = @transform_3, window_bounds = array<i64: 72, 32>}, {transform_indices = @transform_4, window_bounds = array<i64: 8, 32>}, {transform_indices = @transform_5, window_bounds = array<i64: 8, 64>}]} {
    %c0 = arith.constant 0 : index
    %c0_0 = arith.constant 0 : index
    %0 = vector.load %arg4[%c0, %c0_0] : memref<72x32xf32, #tpu.memory_space<vmem>>, vector<32x32xf32>
    %c32 = arith.constant 32 : index
    %c0_1 = arith.constant 0 : index
    %1 = vector.load %arg4[%c32, %c0_1] : memref<72x32xf32, #tpu.memory_space<vmem>>, vector<32x32xf32>
    %c64 = arith.constant 64 : index
    %c0_2 = arith.constant 0 : index
    %2 = vector.load %arg4[%c64, %c0_2] : memref<72x32xf32, #tpu.memory_space<vmem>>, vector<1x32xf32>
    %c0_3 = arith.constant 0 : index
    %c0_4 = arith.constant 0 : index
    %3 = vector.load %arg2[%c0_3, %c0_4] : memref<8x95xf32, #tpu.memory_space<vmem>>, vector<8x32xf32>
    %c0_5 = arith.constant 0 : index
    %c0_6 = arith.constant 0 : index
    %4 = vector.load %arg7[%c0_5, %c0_6] : memref<512x32xf32, #tpu.memory_space<vmem>>, vector<8x32xf32>
    tpu.vector_store %arg7[%c0_5, %c0_6], %3 {strides = array<i32>} : memref<512x32xf32, #tpu.memory_space<vmem>>, vector<8x32xf32>,
    %c0_7 = arith.constant 0 : index
    %c1 = arith.constant 1 : index
    %5 = vector.load %arg2[%c0_7, %c1] : memref<8x95xf32, #tpu.memory_space<vmem>>, vector<8x32xf32>
    %c8 = arith.constant 8 : index
    %c0_8 = arith.constant 0 : index
    %6 = vector.load %arg7[%c8, %c0_8] : memref<512x32xf32, #tpu.memory_space<vmem>>, vector<8x32xf32>
    tpu.vector_store %arg7[%c8, %c0_8], %5 {strides = array<i32>} : memref<512x32xf32, #tpu.memory_space<vmem>>, vector<8x32xf32>,
    %c0_9 = arith.constant 0 : index
    %c2 = arith.constant 2 : index
    %7 = vector.load %arg2[%c0_9, %c2] : memref<8x95xf32, #tpu.memory_space<vmem>>, vector<8x32xf32>
    %c16 = arith.constant 16 : index
    %c0_10 = arith.constant 0 : index
    %8 = vector.load %arg7[%c16, %c0_10] : memref<512x32xf32, #tpu.memory_space<vmem>>, vector<8x32xf32>
    tpu.vector_store %arg7[%c16, %c0_10], %7 {strides = array<i32>} : memref<512x32xf32, #tpu.memory_space<vmem>>, vector<8x32xf32>,
    %c0_11 = arith.constant 0 : index
    %c3 = arith.constant 3 : index
    %9 = vector.load %arg2[%c0_11, %c3] : memref<8x95xf32, #tpu.memory_space<vmem>>, vector<8x32xf32>
    %c24 = arith.constant 24 : index
    %c0_12 = arith.constant 0 : index
    %10 = vector.load %arg7[%c24, %c0_12] : memref<512x32xf32, #tpu.memory_space<vmem>>, vector<8x32xf32>
    tpu.vector_store %arg7[%c24, %c0_12], %9 {strides = array<i32>} : memref<512x32xf32, #tpu.memory_space<vmem>>, vector<8x32xf32>,
    %c0_13 = arith.constant 0 : index
    %c4 = arith.constant 4 : index
    %11 = vector.load %arg2[%c0_13, %c4] : memref<8x95xf32, #tpu.memory_space<vmem>>, vector<8x32xf32>
    %c32_14 = arith.constant 32 : index
    %c0_15 = arith.constant 0 : index
    %12 = vector.load %arg7[%c32_14, %c0_15] : memref<512x32xf32, #tpu.memory_space<vmem>>, vector<8x32xf32>
    tpu.vector_store %arg7[%c32_14, %c0_15], %11 {strides = array<i32>} : memref<512x32xf32, #tpu.memory_space<vmem>>, vector<8x32xf32>,
    %c0_16 = arith.constant 0 : index
    %c5 = arith.constant 5 : index
    %13 = vector.load %arg2[%c0_16, %c5] : memref<8x95xf32, #tpu.memory_space<vmem>>, vector<8x32xf32>
    %c40 = arith.constant 40 : index
    %c0_17 = arith.constant 0 : index
    %14 = vector.load %arg7[%c40, %c0_17] : memref<512x32xf32, #tpu.memory_space<vmem>>, vector<8x32xf32>
    tpu.vector_store %arg7[%c40, %c0_17], %13 {strides = array<i32>} : memref<512x32xf32, #tpu.memory_space<vmem>>, vector<8x32xf32>,
    %c0_18 = arith.constant 0 : index
    %c6 = arith.constant 6 : index
    %15 = vector.load %arg2[%c0_18, %c6] : memref<8x95xf32, #tpu.memory_space<vmem>>, vector<8x32xf32>
    %c48 = arith.constant 48 : index
    %c0_19 = arith.constant 0 : index
    %16 = vector.load %arg7[%c48, %c0_19] : memref<512x32xf32, #tpu.memory_space<vmem>>, vector<8x32xf32>
    tpu.vector_store %arg7[%c48, %c0_19], %15 {strides = array<i32>} : memref<512x32xf32, #tpu.memory_space<vmem>>, vector<8x32xf32>,
    %c0_20 = arith.constant 0 : index
    %c7 = arith.constant 7 : index
    %17 = vector.load %arg2[%c0_20, %c7] : memref<8x95xf32, #tpu.memory_space<vmem>>, vector<8x32xf32>
    %c56 = arith.constant 56 : index
    %c0_21 = arith.constant 0 : index
    %18 = vector.load %arg7[%c56, %c0_21] : memref<512x32xf32, #tpu.memory_space<vmem>>, vector<8x32xf32>
    tpu.vector_store %arg7[%c56, %c0_21], %17 {strides = array<i32>} : memref<512x32xf32, #tpu.memory_space<vmem>>, vector<8x32xf32>,
    %c0_22 = arith.constant 0 : index
    %c8_23 = arith.constant 8 : index
    %19 = vector.load %arg2[%c0_22, %c8_23] : memref<8x95xf32, #tpu.memory_space<vmem>>, vector<8x32xf32>
    %c64_24 = arith.constant 64 : index
    %c0_25 = arith.constant 0 : index
    %20 = vector.load %arg7[%c64_24, %c0_25] : memref<512x32xf32, #tpu.memory_space<vmem>>, vector<8x32xf32>
    tpu.vector_store %arg7[%c64_24, %c0_25], %19 {strides = array<i32>} : memref<512x32xf32, #tpu.memory_space<vmem>>, vector<8x32xf32>,
    %c0_26 = arith.constant 0 : index
    %c9 = arith.constant 9 : index
    %21 = vector.load %arg2[%c0_26, %c9] : memref<8x95xf32, #tpu.memory_space<vmem>>, vector<8x32xf32>
    %c72 = arith.constant 72 : index
    %c0_27 = arith.constant 0 : index
    %22 = vector.load %arg7[%c72, %c0_27] : memref<512x32xf32, #tpu.memory_space<vmem>>, vector<8x32xf32>
    tpu.vector_store %arg7[%c72, %c0_27], %21 {strides = array<i32>} : memref<512x32xf32, #tpu.memory_space<vmem>>, vector<8x32xf32>,
    %c0_28 = arith.constant 0 : index
    %c10 = arith.constant 10 : index
    %23 = vector.load %arg2[%c0_28, %c10] : memref<8x95xf32, #tpu.memory_space<vmem>>, vector<8x32xf32>
    %c80 = arith.constant 80 : index
    %c0_29 = arith.constant 0 : index
    %24 = vector.load %arg7[%c80, %c0_29] : memref<512x32xf32, #tpu.memory_space<vmem>>, vector<8x32xf32>
    tpu.vector_store %arg7[%c80, %c0_29], %23 {strides = array<i32>} : memref<512x32xf32, #tpu.memory_space<vmem>>, vector<8x32xf32>,
    %c0_30 = arith.constant 0 : index
    %c11 = arith.constant 11 : index
    %25 = vector.load %arg2[%c0_30, %c11] : memref<8x95xf32, #tpu.memory_space<vmem>>, vector<8x32xf32>
    %c88 = arith.constant 88 : index
    %c0_31 = arith.constant 0 : index
    %26 = vector.load %arg7[%c88, %c0_31] : memref<512x32xf32, #tpu.memory_space<vmem>>, vector<8x32xf32>
    tpu.vector_store %arg7[%c88, %c0_31], %25 {strides = array<i32>} : memref<512x32xf32, #tpu.memory_space<vmem>>, vector<8x32xf32>,
    %c0_32 = arith.constant 0 : index
    %c12 = arith.constant 12 : index
    %27 = vector.load %arg2[%c0_32, %c12] : memref<8x95xf32, #tpu.memory_space<vmem>>, vector<8x32xf32>
    %c96 = arith.constant 96 : index
    %c0_33 = arith.constant 0 : index
    %28 = vector.load %arg7[%c96, %c0_33] : memref<512x32xf32, #tpu.memory_space<vmem>>, vector<8x32xf32>
    tpu.vector_store %arg7[%c96, %c0_33], %27 {strides = array<i32>} : memref<512x32xf32, #tpu.memory_space<vmem>>, vector<8x32xf32>,
    %c0_34 = arith.constant 0 : index
    %c13 = arith.constant 13 : index
    %29 = vector.load %arg2[%c0_34, %c13] : memref<8x95xf32, #tpu.memory_space<vmem>>, vector<8x32xf32>
    %c104 = arith.constant 104 : index
    %c0_35 = arith.constant 0 : index
    %30 = vector.load %arg7[%c104, %c0_35] : memref<512x32xf32, #tpu.memory_space<vmem>>, vector<8x32xf32>
    tpu.vector_store %arg7[%c104, %c0_35], %29 {strides = array<i32>} : memref<512x32xf32, #tpu.memory_space<vmem>>, vector<8x32xf32>,
    %c0_36 = arith.constant 0 : index
    %c14 = arith.constant 14 : index
    %31 = vector.load %arg2[%c0_36, %c14] : memref<8x95xf32, #tpu.memory_space<vmem>>, vector<8x32xf32>
    %c112 = arith.constant 112 : index
    %c0_37 = arith.constant 0 : index
    %32 = vector.load %arg7[%c112, %c0_37] : memref<512x32xf32, #tpu.memory_space<vmem>>, vector<8x32xf32>
    tpu.vector_store %arg7[%c112, %c0_37], %31 {strides = array<i32>} : memref<512x32xf32, #tpu.memory_space<vmem>>, vector<8x32xf32>,
    %c0_38 = arith.constant 0 : index
    %c15 = arith.constant 15 : index
    %33 = vector.load %arg2[%c0_38, %c15] : memref<8x95xf32, #tpu.memory_space<vmem>>, vector<8x32xf32>
    %c120 = arith.constant 120 : index
    %c0_39 = arith.constant 0 : index
    %34 = vector.load %arg7[%c120, %c0_39] : memref<512x32xf32, #tpu.memory_space<vmem>>, vector<8x32xf32>
    tpu.vector_store %arg7[%c120, %c0_39], %33 {strides = array<i32>} : memref<512x32xf32, #tpu.memory_space<vmem>>, vector<8x32xf32>,
    %c0_40 = arith.constant 0 : index
    %c16_41 = arith.constant 16 : index
    %35 = vector.load %arg2[%c0_40, %c16_41] : memref<8x95xf32, #tpu.memory_space<vmem>>, vector<8x32xf32>
    %c128 = arith.constant 128 : index
    %c0_42 = arith.constant 0 : index
    %36 = vector.load %arg7[%c128, %c0_42] : memref<512x32xf32, #tpu.memory_space<vmem>>, vector<8x32xf32>
    tpu.vector_store %arg7[%c128, %c0_42], %35 {strides = array<i32>} : memref<512x32xf32, #tpu.memory_space<vmem>>, vector<8x32xf32>,
    %c0_43 = arith.constant 0 : index
    %c17 = arith.constant 17 : index
    %37 = vector.load %arg2[%c0_43, %c17] : memref<8x95xf32, #tpu.memory_space<vmem>>, vector<8x32xf32>
    %c136 = arith.constant 136 : index
    %c0_44 = arith.constant 0 : index
    %38 = vector.load %arg7[%c136, %c0_44] : memref<512x32xf32, #tpu.memory_space<vmem>>, vector<8x32xf32>
    tpu.vector_store %arg7[%c136, %c0_44], %37 {strides = array<i32>} : memref<512x32xf32, #tpu.memory_space<vmem>>, vector<8x32xf32>,
    %c0_45 = arith.constant 0 : index
    %c18 = arith.constant 18 : index
    %39 = vector.load %arg2[%c0_45, %c18] : memref<8x95xf32, #tpu.memory_space<vmem>>, vector<8x32xf32>
    %c144 = arith.constant 144 : index
    %c0_46 = arith.constant 0 : index
    %40 = vector.load %arg7[%c144, %c0_46] : memref<512x32xf32, #tpu.memory_space<vmem>>, vector<8x32xf32>
    tpu.vector_store %arg7[%c144, %c0_46], %39 {strides = array<i32>} : memref<512x32xf32, #tpu.memory_space<vmem>>, vector<8x32xf32>,
    %c0_47 = arith.constant 0 : index
    %c19 = arith.constant 19 : index
    %41 = vector.load %arg2[%c0_47, %c19] : memref<8x95xf32, #tpu.memory_space<vmem>>, vector<8x32xf32>
    %c152 = arith.constant 152 : index
    %c0_48 = arith.constant 0 : index
    %42 = vector.load %arg7[%c152, %c0_48] : memref<512x32xf32, #tpu.memory_space<vmem>>, vector<8x32xf32>
    tpu.vector_store %arg7[%c152, %c0_48], %41 {strides = array<i32>} : memref<512x32xf32, #tpu.memory_space<vmem>>, vector<8x32xf32>,
    %c0_49 = arith.constant 0 : index
    %c20 = arith.constant 20 : index
    %43 = vector.load %arg2[%c0_49, %c20] : memref<8x95xf32, #tpu.memory_space<vmem>>, vector<8x32xf32>
    %c160 = arith.constant 160 : index
    %c0_50 = arith.constant 0 : index
    %44 = vector.load %arg7[%c160, %c0_50] : memref<512x32xf32, #tpu.memory_space<vmem>>, vector<8x32xf32>
    tpu.vector_store %arg7[%c160, %c0_50], %43 {strides = array<i32>} : memref<512x32xf32, #tpu.memory_space<vmem>>, vector<8x32xf32>,
    %c0_51 = arith.constant 0 : index
    %c21 = arith.constant 21 : index
    %45 = vector.load %arg2[%c0_51, %c21] : memref<8x95xf32, #tpu.memory_space<vmem>>, vector<8x32xf32>
    %c168 = arith.constant 168 : index
    %c0_52 = arith.constant 0 : index
    %46 = vector.load %arg7[%c168, %c0_52] : memref<512x32xf32, #tpu.memory_space<vmem>>, vector<8x32xf32>
    tpu.vector_store %arg7[%c168, %c0_52], %45 {strides = array<i32>} : memref<512x32xf32, #tpu.memory_space<vmem>>, vector<8x32xf32>,
    %c0_53 = arith.constant 0 : index
    %c22 = arith.constant 22 : index
    %47 = vector.load %arg2[%c0_53, %c22] : memref<8x95xf32, #tpu.memory_space<vmem>>, vector<8x32xf32>
    %c176 = arith.constant 176 : index
    %c0_54 = arith.constant 0 : index
    %48 = vector.load %arg7[%c176, %c0_54] : memref<512x32xf32, #tpu.memory_space<vmem>>, vector<8x32xf32>
    tpu.vector_store %arg7[%c176, %c0_54], %47 {strides = array<i32>} : memref<512x32xf32, #tpu.memory_space<vmem>>, vector<8x32xf32>,
    %c0_55 = arith.constant 0 : index
    %c23 = arith.constant 23 : index
    %49 = vector.load %arg2[%c0_55, %c23] : memref<8x95xf32, #tpu.memory_space<vmem>>, vector<8x32xf32>
    %c184 = arith.constant 184 : index
    %c0_56 = arith.constant 0 : index
    %50 = vector.load %arg7[%c184, %c0_56] : memref<512x32xf32, #tpu.memory_space<vmem>>, vector<8x32xf32>
    tpu.vector_store %arg7[%c184, %c0_56], %49 {strides = array<i32>} : memref<512x32xf32, #tpu.memory_space<vmem>>, vector<8x32xf32>,
    %c0_57 = arith.constant 0 : index
    %c24_58 = arith.constant 24 : index
    %51 = vector.load %arg2[%c0_57, %c24_58] : memref<8x95xf32, #tpu.memory_space<vmem>>, vector<8x32xf32>
    %c192 = arith.constant 192 : index
    %c0_59 = arith.constant 0 : index
    %52 = vector.load %arg7[%c192, %c0_59] : memref<512x32xf32, #tpu.memory_space<vmem>>, vector<8x32xf32>
    tpu.vector_store %arg7[%c192, %c0_59], %51 {strides = array<i32>} : memref<512x32xf32, #tpu.memory_space<vmem>>, vector<8x32xf32>,
    %c0_60 = arith.constant 0 : index
    %c25 = arith.constant 25 : index
    %53 = vector.load %arg2[%c0_60, %c25] : memref<8x95xf32, #tpu.memory_space<vmem>>, vector<8x32xf32>
    %c200 = arith.constant 200 : index
    %c0_61 = arith.constant 0 : index
    %54 = vector.load %arg7[%c200, %c0_61] : memref<512x32xf32, #tpu.memory_space<vmem>>, vector<8x32xf32>
    tpu.vector_store %arg7[%c200, %c0_61], %53 {strides = array<i32>} : memref<512x32xf32, #tpu.memory_space<vmem>>, vector<8x32xf32>,
    %c0_62 = arith.constant 0 : index
    %c26 = arith.constant 26 : index
    %55 = vector.load %arg2[%c0_62, %c26] : memref<8x95xf32, #tpu.memory_space<vmem>>, vector<8x32xf32>
    %c208 = arith.constant 208 : index
    %c0_63 = arith.constant 0 : index
    %56 = vector.load %arg7[%c208, %c0_63] : memref<512x32xf32, #tpu.memory_space<vmem>>, vector<8x32xf32>
    tpu.vector_store %arg7[%c208, %c0_63], %55 {strides = array<i32>} : memref<512x32xf32, #tpu.memory_space<vmem>>, vector<8x32xf32>,
    %c0_64 = arith.constant 0 : index
    %c27 = arith.constant 27 : index
    %57 = vector.load %arg2[%c0_64, %c27] : memref<8x95xf32, #tpu.memory_space<vmem>>, vector<8x32xf32>
    %c216 = arith.constant 216 : index
    %c0_65 = arith.constant 0 : index
    %58 = vector.load %arg7[%c216, %c0_65] : memref<512x32xf32, #tpu.memory_space<vmem>>, vector<8x32xf32>
    tpu.vector_store %arg7[%c216, %c0_65], %57 {strides = array<i32>} : memref<512x32xf32, #tpu.memory_space<vmem>>, vector<8x32xf32>,
    %c0_66 = arith.constant 0 : index
    %c28 = arith.constant 28 : index
    %59 = vector.load %arg2[%c0_66, %c28] : memref<8x95xf32, #tpu.memory_space<vmem>>, vector<8x32xf32>
    %c224 = arith.constant 224 : index
    %c0_67 = arith.constant 0 : index
    %60 = vector.load %arg7[%c224, %c0_67] : memref<512x32xf32, #tpu.memory_space<vmem>>, vector<8x32xf32>
    tpu.vector_store %arg7[%c224, %c0_67], %59 {strides = array<i32>} : memref<512x32xf32, #tpu.memory_space<vmem>>, vector<8x32xf32>,
    %c0_68 = arith.constant 0 : index
    %c29 = arith.constant 29 : index
    %61 = vector.load %arg2[%c0_68, %c29] : memref<8x95xf32, #tpu.memory_space<vmem>>, vector<8x32xf32>
    %c232 = arith.constant 232 : index
    %c0_69 = arith.constant 0 : index
    %62 = vector.load %arg7[%c232, %c0_69] : memref<512x32xf32, #tpu.memory_space<vmem>>, vector<8x32xf32>
    tpu.vector_store %arg7[%c232, %c0_69], %61 {strides = array<i32>} : memref<512x32xf32, #tpu.memory_space<vmem>>, vector<8x32xf32>,
    %c0_70 = arith.constant 0 : index
    %c30 = arith.constant 30 : index
    %63 = vector.load %arg2[%c0_70, %c30] : memref<8x95xf32, #tpu.memory_space<vmem>>, vector<8x32xf32>
    %c240 = arith.constant 240 : index
    %c0_71 = arith.constant 0 : index
    %64 = vector.load %arg7[%c240, %c0_71] : memref<512x32xf32, #tpu.memory_space<vmem>>, vector<8x32xf32>
    tpu.vector_store %arg7[%c240, %c0_71], %63 {strides = array<i32>} : memref<512x32xf32, #tpu.memory_space<vmem>>, vector<8x32xf32>,
    %c0_72 = arith.constant 0 : index
    %c31 = arith.constant 31 : index
    %65 = vector.load %arg2[%c0_72, %c31] : memref<8x95xf32, #tpu.memory_space<vmem>>, vector<8x32xf32>
    %c248 = arith.constant 248 : index
    %c0_73 = arith.constant 0 : index
    %66 = vector.load %arg7[%c248, %c0_73] : memref<512x32xf32, #tpu.memory_space<vmem>>, vector<8x32xf32>
    tpu.vector_store %arg7[%c248, %c0_73], %65 {strides = array<i32>} : memref<512x32xf32, #tpu.memory_space<vmem>>, vector<8x32xf32>,
    %c0_74 = arith.constant 0 : index
    %c32_75 = arith.constant 32 : index
    %67 = vector.load %arg2[%c0_74, %c32_75] : memref<8x95xf32, #tpu.memory_space<vmem>>, vector<8x32xf32>
    %c256 = arith.constant 256 : index
    %c0_76 = arith.constant 0 : index
    %68 = vector.load %arg7[%c256, %c0_76] : memref<512x32xf32, #tpu.memory_space<vmem>>, vector<8x32xf32>
    tpu.vector_store %arg7[%c256, %c0_76], %67 {strides = array<i32>} : memref<512x32xf32, #tpu.memory_space<vmem>>, vector<8x32xf32>,
    %c0_77 = arith.constant 0 : index
    %c33 = arith.constant 33 : index
    %69 = vector.load %arg2[%c0_77, %c33] : memref<8x95xf32, #tpu.memory_space<vmem>>, vector<8x32xf32>
    %c264 = arith.constant 264 : index
    %c0_78 = arith.constant 0 : index
    %70 = vector.load %arg7[%c264, %c0_78] : memref<512x32xf32, #tpu.memory_space<vmem>>, vector<8x32xf32>
    tpu.vector_store %arg7[%c264, %c0_78], %69 {strides = array<i32>} : memref<512x32xf32, #tpu.memory_space<vmem>>, vector<8x32xf32>,
    %c0_79 = arith.constant 0 : index
    %c34 = arith.constant 34 : index
    %71 = vector.load %arg2[%c0_79, %c34] : memref<8x95xf32, #tpu.memory_space<vmem>>, vector<8x32xf32>
    %c272 = arith.constant 272 : index
    %c0_80 = arith.constant 0 : index
    %72 = vector.load %arg7[%c272, %c0_80] : memref<512x32xf32, #tpu.memory_space<vmem>>, vector<8x32xf32>
    tpu.vector_store %arg7[%c272, %c0_80], %71 {strides = array<i32>} : memref<512x32xf32, #tpu.memory_space<vmem>>, vector<8x32xf32>,
    %c0_81 = arith.constant 0 : index
    %c35 = arith.constant 35 : index
    %73 = vector.load %arg2[%c0_81, %c35] : memref<8x95xf32, #tpu.memory_space<vmem>>, vector<8x32xf32>
    %c280 = arith.constant 280 : index
    %c0_82 = arith.constant 0 : index
    %74 = vector.load %arg7[%c280, %c0_82] : memref<512x32xf32, #tpu.memory_space<vmem>>, vector<8x32xf32>
    tpu.vector_store %arg7[%c280, %c0_82], %73 {strides = array<i32>} : memref<512x32xf32, #tpu.memory_space<vmem>>, vector<8x32xf32>,
    %c0_83 = arith.constant 0 : index
    %c36 = arith.constant 36 : index
    %75 = vector.load %arg2[%c0_83, %c36] : memref<8x95xf32, #tpu.memory_space<vmem>>, vector<8x32xf32>
    %c288 = arith.constant 288 : index
    %c0_84 = arith.constant 0 : index
    %76 = vector.load %arg7[%c288, %c0_84] : memref<512x32xf32, #tpu.memory_space<vmem>>, vector<8x32xf32>
    tpu.vector_store %arg7[%c288, %c0_84], %75 {strides = array<i32>} : memref<512x32xf32, #tpu.memory_space<vmem>>, vector<8x32xf32>,
    %c0_85 = arith.constant 0 : index
    %c37 = arith.constant 37 : index
    %77 = vector.load %arg2[%c0_85, %c37] : memref<8x95xf32, #tpu.memory_space<vmem>>, vector<8x32xf32>
    %c296 = arith.constant 296 : index
    %c0_86 = arith.constant 0 : index
    %78 = vector.load %arg7[%c296, %c0_86] : memref<512x32xf32, #tpu.memory_space<vmem>>, vector<8x32xf32>
    tpu.vector_store %arg7[%c296, %c0_86], %77 {strides = array<i32>} : memref<512x32xf32, #tpu.memory_space<vmem>>, vector<8x32xf32>,
    %c0_87 = arith.constant 0 : index
    %c38 = arith.constant 38 : index
    %79 = vector.load %arg2[%c0_87, %c38] : memref<8x95xf32, #tpu.memory_space<vmem>>, vector<8x32xf32>
    %c304 = arith.constant 304 : index
    %c0_88 = arith.constant 0 : index
    %80 = vector.load %arg7[%c304, %c0_88] : memref<512x32xf32, #tpu.memory_space<vmem>>, vector<8x32xf32>
    tpu.vector_store %arg7[%c304, %c0_88], %79 {strides = array<i32>} : memref<512x32xf32, #tpu.memory_space<vmem>>, vector<8x32xf32>,
    %c0_89 = arith.constant 0 : index
    %c39 = arith.constant 39 : index
    %81 = vector.load %arg2[%c0_89, %c39] : memref<8x95xf32, #tpu.memory_space<vmem>>, vector<8x32xf32>
    %c312 = arith.constant 312 : index
    %c0_90 = arith.constant 0 : index
    %82 = vector.load %arg7[%c312, %c0_90] : memref<512x32xf32, #tpu.memory_space<vmem>>, vector<8x32xf32>
    tpu.vector_store %arg7[%c312, %c0_90], %81 {strides = array<i32>} : memref<512x32xf32, #tpu.memory_space<vmem>>, vector<8x32xf32>,
    %c0_91 = arith.constant 0 : index
    %c40_92 = arith.constant 40 : index
    %83 = vector.load %arg2[%c0_91, %c40_92] : memref<8x95xf32, #tpu.memory_space<vmem>>, vector<8x32xf32>
    %c320 = arith.constant 320 : index
    %c0_93 = arith.constant 0 : index
    %84 = vector.load %arg7[%c320, %c0_93] : memref<512x32xf32, #tpu.memory_space<vmem>>, vector<8x32xf32>
    tpu.vector_store %arg7[%c320, %c0_93], %83 {strides = array<i32>} : memref<512x32xf32, #tpu.memory_space<vmem>>, vector<8x32xf32>,
    %c0_94 = arith.constant 0 : index
    %c41 = arith.constant 41 : index
    %85 = vector.load %arg2[%c0_94, %c41] : memref<8x95xf32, #tpu.memory_space<vmem>>, vector<8x32xf32>
    %c328 = arith.constant 328 : index
    %c0_95 = arith.constant 0 : index
    %86 = vector.load %arg7[%c328, %c0_95] : memref<512x32xf32, #tpu.memory_space<vmem>>, vector<8x32xf32>
    tpu.vector_store %arg7[%c328, %c0_95], %85 {strides = array<i32>} : memref<512x32xf32, #tpu.memory_space<vmem>>, vector<8x32xf32>,
    %c0_96 = arith.constant 0 : index
    %c42 = arith.constant 42 : index
    %87 = vector.load %arg2[%c0_96, %c42] : memref<8x95xf32, #tpu.memory_space<vmem>>, vector<8x32xf32>
    %c336 = arith.constant 336 : index
    %c0_97 = arith.constant 0 : index
    %88 = vector.load %arg7[%c336, %c0_97] : memref<512x32xf32, #tpu.memory_space<vmem>>, vector<8x32xf32>
    tpu.vector_store %arg7[%c336, %c0_97], %87 {strides = array<i32>} : memref<512x32xf32, #tpu.memory_space<vmem>>, vector<8x32xf32>,
    %c0_98 = arith.constant 0 : index
    %c43 = arith.constant 43 : index
    %89 = vector.load %arg2[%c0_98, %c43] : memref<8x95xf32, #tpu.memory_space<vmem>>, vector<8x32xf32>
    %c344 = arith.constant 344 : index
    %c0_99 = arith.constant 0 : index
    %90 = vector.load %arg7[%c344, %c0_99] : memref<512x32xf32, #tpu.memory_space<vmem>>, vector<8x32xf32>
    tpu.vector_store %arg7[%c344, %c0_99], %89 {strides = array<i32>} : memref<512x32xf32, #tpu.memory_space<vmem>>, vector<8x32xf32>,
    %c0_100 = arith.constant 0 : index
    %c44 = arith.constant 44 : index
    %91 = vector.load %arg2[%c0_100, %c44] : memref<8x95xf32, #tpu.memory_space<vmem>>, vector<8x32xf32>
    %c352 = arith.constant 352 : index
    %c0_101 = arith.constant 0 : index
    %92 = vector.load %arg7[%c352, %c0_101] : memref<512x32xf32, #tpu.memory_space<vmem>>, vector<8x32xf32>
    tpu.vector_store %arg7[%c352, %c0_101], %91 {strides = array<i32>} : memref<512x32xf32, #tpu.memory_space<vmem>>, vector<8x32xf32>,
    %c0_102 = arith.constant 0 : index
    %c45 = arith.constant 45 : index
    %93 = vector.load %arg2[%c0_102, %c45] : memref<8x95xf32, #tpu.memory_space<vmem>>, vector<8x32xf32>
    %c360 = arith.constant 360 : index
    %c0_103 = arith.constant 0 : index
    %94 = vector.load %arg7[%c360, %c0_103] : memref<512x32xf32, #tpu.memory_space<vmem>>, vector<8x32xf32>
    tpu.vector_store %arg7[%c360, %c0_103], %93 {strides = array<i32>} : memref<512x32xf32, #tpu.memory_space<vmem>>, vector<8x32xf32>,
    %c0_104 = arith.constant 0 : index
    %c46 = arith.constant 46 : index
    %95 = vector.load %arg2[%c0_104, %c46] : memref<8x95xf32, #tpu.memory_space<vmem>>, vector<8x32xf32>
    %c368 = arith.constant 368 : index
    %c0_105 = arith.constant 0 : index
    %96 = vector.load %arg7[%c368, %c0_105] : memref<512x32xf32, #tpu.memory_space<vmem>>, vector<8x32xf32>
    tpu.vector_store %arg7[%c368, %c0_105], %95 {strides = array<i32>} : memref<512x32xf32, #tpu.memory_space<vmem>>, vector<8x32xf32>,
    %c0_106 = arith.constant 0 : index
    %c47 = arith.constant 47 : index
    %97 = vector.load %arg2[%c0_106, %c47] : memref<8x95xf32, #tpu.memory_space<vmem>>, vector<8x32xf32>
    %c376 = arith.constant 376 : index
    %c0_107 = arith.constant 0 : index
    %98 = vector.load %arg7[%c376, %c0_107] : memref<512x32xf32, #tpu.memory_space<vmem>>, vector<8x32xf32>
    tpu.vector_store %arg7[%c376, %c0_107], %97 {strides = array<i32>} : memref<512x32xf32, #tpu.memory_space<vmem>>, vector<8x32xf32>,
    %c0_108 = arith.constant 0 : index
    %c48_109 = arith.constant 48 : index
    %99 = vector.load %arg2[%c0_108, %c48_109] : memref<8x95xf32, #tpu.memory_space<vmem>>, vector<8x32xf32>
    %c384 = arith.constant 384 : index
    %c0_110 = arith.constant 0 : index
    %100 = vector.load %arg7[%c384, %c0_110] : memref<512x32xf32, #tpu.memory_space<vmem>>, vector<8x32xf32>
    tpu.vector_store %arg7[%c384, %c0_110], %99 {strides = array<i32>} : memref<512x32xf32, #tpu.memory_space<vmem>>, vector<8x32xf32>,
    %c0_111 = arith.constant 0 : index
    %c49 = arith.constant 49 : index
    %101 = vector.load %arg2[%c0_111, %c49] : memref<8x95xf32, #tpu.memory_space<vmem>>, vector<8x32xf32>
    %c392 = arith.constant 392 : index
    %c0_112 = arith.constant 0 : index
    %102 = vector.load %arg7[%c392, %c0_112] : memref<512x32xf32, #tpu.memory_space<vmem>>, vector<8x32xf32>
    tpu.vector_store %arg7[%c392, %c0_112], %101 {strides = array<i32>} : memref<512x32xf32, #tpu.memory_space<vmem>>, vector<8x32xf32>,
    %c0_113 = arith.constant 0 : index
    %c50 = arith.constant 50 : index
    %103 = vector.load %arg2[%c0_113, %c50] : memref<8x95xf32, #tpu.memory_space<vmem>>, vector<8x32xf32>
    %c400 = arith.constant 400 : index
    %c0_114 = arith.constant 0 : index
    %104 = vector.load %arg7[%c400, %c0_114] : memref<512x32xf32, #tpu.memory_space<vmem>>, vector<8x32xf32>
    tpu.vector_store %arg7[%c400, %c0_114], %103 {strides = array<i32>} : memref<512x32xf32, #tpu.memory_space<vmem>>, vector<8x32xf32>,
    %c0_115 = arith.constant 0 : index
    %c51 = arith.constant 51 : index
    %105 = vector.load %arg2[%c0_115, %c51] : memref<8x95xf32, #tpu.memory_space<vmem>>, vector<8x32xf32>
    %c408 = arith.constant 408 : index
    %c0_116 = arith.constant 0 : index
    %106 = vector.load %arg7[%c408, %c0_116] : memref<512x32xf32, #tpu.memory_space<vmem>>, vector<8x32xf32>
    tpu.vector_store %arg7[%c408, %c0_116], %105 {strides = array<i32>} : memref<512x32xf32, #tpu.memory_space<vmem>>, vector<8x32xf32>,
    %c0_117 = arith.constant 0 : index
    %c52 = arith.constant 52 : index
    %107 = vector.load %arg2[%c0_117, %c52] : memref<8x95xf32, #tpu.memory_space<vmem>>, vector<8x32xf32>
    %c416 = arith.constant 416 : index
    %c0_118 = arith.constant 0 : index
    %108 = vector.load %arg7[%c416, %c0_118] : memref<512x32xf32, #tpu.memory_space<vmem>>, vector<8x32xf32>
    tpu.vector_store %arg7[%c416, %c0_118], %107 {strides = array<i32>} : memref<512x32xf32, #tpu.memory_space<vmem>>, vector<8x32xf32>,
    %c0_119 = arith.constant 0 : index
    %c53 = arith.constant 53 : index
    %109 = vector.load %arg2[%c0_119, %c53] : memref<8x95xf32, #tpu.memory_space<vmem>>, vector<8x32xf32>
    %c424 = arith.constant 424 : index
    %c0_120 = arith.constant 0 : index
    %110 = vector.load %arg7[%c424, %c0_120] : memref<512x32xf32, #tpu.memory_space<vmem>>, vector<8x32xf32>
    tpu.vector_store %arg7[%c424, %c0_120], %109 {strides = array<i32>} : memref<512x32xf32, #tpu.memory_space<vmem>>, vector<8x32xf32>,
    %c0_121 = arith.constant 0 : index
    %c54 = arith.constant 54 : index
    %111 = vector.load %arg2[%c0_121, %c54] : memref<8x95xf32, #tpu.memory_space<vmem>>, vector<8x32xf32>
    %c432 = arith.constant 432 : index
    %c0_122 = arith.constant 0 : index
    %112 = vector.load %arg7[%c432, %c0_122] : memref<512x32xf32, #tpu.memory_space<vmem>>, vector<8x32xf32>
    tpu.vector_store %arg7[%c432, %c0_122], %111 {strides = array<i32>} : memref<512x32xf32, #tpu.memory_space<vmem>>, vector<8x32xf32>,
    %c0_123 = arith.constant 0 : index
    %c55 = arith.constant 55 : index
    %113 = vector.load %arg2[%c0_123, %c55] : memref<8x95xf32, #tpu.memory_space<vmem>>, vector<8x32xf32>
    %c440 = arith.constant 440 : index
    %c0_124 = arith.constant 0 : index
    %114 = vector.load %arg7[%c440, %c0_124] : memref<512x32xf32, #tpu.memory_space<vmem>>, vector<8x32xf32>
    tpu.vector_store %arg7[%c440, %c0_124], %113 {strides = array<i32>} : memref<512x32xf32, #tpu.memory_space<vmem>>, vector<8x32xf32>,
    %c0_125 = arith.constant 0 : index
    %c56_126 = arith.constant 56 : index
    %115 = vector.load %arg2[%c0_125, %c56_126] : memref<8x95xf32, #tpu.memory_space<vmem>>, vector<8x32xf32>
    %c448 = arith.constant 448 : index
    %c0_127 = arith.constant 0 : index
    %116 = vector.load %arg7[%c448, %c0_127] : memref<512x32xf32, #tpu.memory_space<vmem>>, vector<8x32xf32>
    tpu.vector_store %arg7[%c448, %c0_127], %115 {strides = array<i32>} : memref<512x32xf32, #tpu.memory_space<vmem>>, vector<8x32xf32>,
    %c0_128 = arith.constant 0 : index
    %c57 = arith.constant 57 : index
    %117 = vector.load %arg2[%c0_128, %c57] : memref<8x95xf32, #tpu.memory_space<vmem>>, vector<8x32xf32>
    %c456 = arith.constant 456 : index
    %c0_129 = arith.constant 0 : index
    %118 = vector.load %arg7[%c456, %c0_129] : memref<512x32xf32, #tpu.memory_space<vmem>>, vector<8x32xf32>
    tpu.vector_store %arg7[%c456, %c0_129], %117 {strides = array<i32>} : memref<512x32xf32, #tpu.memory_space<vmem>>, vector<8x32xf32>,
    %c0_130 = arith.constant 0 : index
    %c58 = arith.constant 58 : index
    %119 = vector.load %arg2[%c0_130, %c58] : memref<8x95xf32, #tpu.memory_space<vmem>>, vector<8x32xf32>
    %c464 = arith.constant 464 : index
    %c0_131 = arith.constant 0 : index
    %120 = vector.load %arg7[%c464, %c0_131] : memref<512x32xf32, #tpu.memory_space<vmem>>, vector<8x32xf32>
    tpu.vector_store %arg7[%c464, %c0_131], %119 {strides = array<i32>} : memref<512x32xf32, #tpu.memory_space<vmem>>, vector<8x32xf32>,
    %c0_132 = arith.constant 0 : index
    %c59 = arith.constant 59 : index
    %121 = vector.load %arg2[%c0_132, %c59] : memref<8x95xf32, #tpu.memory_space<vmem>>, vector<8x32xf32>
    %c472 = arith.constant 472 : index
    %c0_133 = arith.constant 0 : index
    %122 = vector.load %arg7[%c472, %c0_133] : memref<512x32xf32, #tpu.memory_space<vmem>>, vector<8x32xf32>
    tpu.vector_store %arg7[%c472, %c0_133], %121 {strides = array<i32>} : memref<512x32xf32, #tpu.memory_space<vmem>>, vector<8x32xf32>,
    %c0_134 = arith.constant 0 : index
    %c60 = arith.constant 60 : index
    %123 = vector.load %arg2[%c0_134, %c60] : memref<8x95xf32, #tpu.memory_space<vmem>>, vector<8x32xf32>
    %c480 = arith.constant 480 : index
    %c0_135 = arith.constant 0 : index
    %124 = vector.load %arg7[%c480, %c0_135] : memref<512x32xf32, #tpu.memory_space<vmem>>, vector<8x32xf32>
    tpu.vector_store %arg7[%c480, %c0_135], %123 {strides = array<i32>} : memref<512x32xf32, #tpu.memory_space<vmem>>, vector<8x32xf32>,
    %c0_136 = arith.constant 0 : index
    %c61 = arith.constant 61 : index
    %125 = vector.load %arg2[%c0_136, %c61] : memref<8x95xf32, #tpu.memory_space<vmem>>, vector<8x32xf32>
    %c488 = arith.constant 488 : index
    %c0_137 = arith.constant 0 : index
    %126 = vector.load %arg7[%c488, %c0_137] : memref<512x32xf32, #tpu.memory_space<vmem>>, vector<8x32xf32>
    tpu.vector_store %arg7[%c488, %c0_137], %125 {strides = array<i32>} : memref<512x32xf32, #tpu.memory_space<vmem>>, vector<8x32xf32>,
    %c0_138 = arith.constant 0 : index
    %c62 = arith.constant 62 : index
    %127 = vector.load %arg2[%c0_138, %c62] : memref<8x95xf32, #tpu.memory_space<vmem>>, vector<8x32xf32>
    %c496 = arith.constant 496 : index
    %c0_139 = arith.constant 0 : index
    %128 = vector.load %arg7[%c496, %c0_139] : memref<512x32xf32, #tpu.memory_space<vmem>>, vector<8x32xf32>
    tpu.vector_store %arg7[%c496, %c0_139], %127 {strides = array<i32>} : memref<512x32xf32, #tpu.memory_space<vmem>>, vector<8x32xf32>,
    %c0_140 = arith.constant 0 : index
    %c63 = arith.constant 63 : index
    %129 = vector.load %arg2[%c0_140, %c63] : memref<8x95xf32, #tpu.memory_space<vmem>>, vector<8x32xf32>
    %c504 = arith.constant 504 : index
    %c0_141 = arith.constant 0 : index
    %130 = vector.load %arg7[%c504, %c0_141] : memref<512x32xf32, #tpu.memory_space<vmem>>, vector<8x32xf32>
    tpu.vector_store %arg7[%c504, %c0_141], %129 {strides = array<i32>} : memref<512x32xf32, #tpu.memory_space<vmem>>, vector<8x32xf32>,
    %c0_142 = arith.constant 0 : index
    %c0_143 = arith.constant 0 : index
    %c0_144 = arith.constant 0 : index
    %131 = vector.load %arg1[%c0_142, %c0_143, %c0_144] : memref<64x8x32xf32, #tpu.memory_space<vmem>>, vector<64x8x32xf32>
    %132 = vector.shape_cast %131 : vector<64x8x32xf32> to vector<512x32xf32>
    %cst = arith.constant dense<0.000000e+00> : vector<512x32xf32>
    %133 = tpu.matmul %132, %0, %cst {dimension_numbers = #tpu.dot_dimension_numbers<[1], [0], [0], [1], [0, 0, 1, 1], [], []>} : vector<512x32xf32>, vector<32x32xf32>, vector<512x32xf32> -> vector<512x32xf32>
    %c0_145 = arith.constant 0 : index
    %c0_146 = arith.constant 0 : index
    %134 = vector.load %arg7[%c0_145, %c0_146] : memref<512x32xf32, #tpu.memory_space<vmem>>, vector<512x32xf32>
    %cst_147 = arith.constant dense<0.000000e+00> : vector<512x32xf32>
    %135 = tpu.matmul %134, %1, %cst_147 {dimension_numbers = #tpu.dot_dimension_numbers<[1], [0], [0], [1], [0, 0, 1, 1], [], []>} : vector<512x32xf32>, vector<32x32xf32>, vector<512x32xf32> -> vector<512x32xf32>
    %136 = arith.addf %133, %135 : vector<512x32xf32>
    %137 = vector.shape_cast %136 : vector<512x32xf32> to vector<64x8x32xf32>
    %c0_148 = arith.constant 0 : index
    %c0_149 = arith.constant 0 : index
    %138 = vector.load %arg3[%c0_148, %c0_149] : memref<8x32xf32, #tpu.memory_space<vmem>>, vector<8x32xf32>
    %139 = vector.shape_cast %138 : vector<8x32xf32> to vector<1x8x32xf32>
    %140 = vector.broadcast %139 : vector<1x8x32xf32> to vector<64x8x32xf32>
    %141 = arith.addf %137, %140 : vector<64x8x32xf32>
    %142 = math.tanh %141 : vector<64x8x32xf32>
    %143 = vector.shape_cast %2 : vector<1x32xf32> to vector<1x1x32xf32>
    %144 = vector.broadcast %143 : vector<1x1x32xf32> to vector<64x8x32xf32>
    %145 = arith.mulf %142, %144 : vector<64x8x32xf32>
    %cst_150 = arith.constant dense<0.000000e+00> : vector<64x8xf32>
    %146 = vector.multi_reduction <add>, %145, %cst_150 [2] : vector<64x8x32xf32> to vector<64x8xf32>
    %147 = vector.shape_cast %146 : vector<64x8xf32> to vector<64x8x1xf32>
    %cst_151 = arith.constant dense<0xFF800000> : vector<8x1xf32>
    %148 = vector.multi_reduction <maximumf>, %147, %cst_151 [0] : vector<64x8x1xf32> to vector<8x1xf32>
    %149 = vector.shape_cast %148 : vector<8x1xf32> to vector<1x8x1xf32>
    %150 = vector.broadcast %149 : vector<1x8x1xf32> to vector<64x8x1xf32>
    %151 = arith.subf %147, %150 : vector<64x8x1xf32>
    %152 = math.exp %151 : vector<64x8x1xf32>
    %cst_152 = arith.constant dense<0.000000e+00> : vector<8x1xf32>
    %153 = vector.multi_reduction <add>, %152, %cst_152 [0] : vector<64x8x1xf32> to vector<8x1xf32>
    %154 = vector.shape_cast %153 : vector<8x1xf32> to vector<1x8x1xf32>
    %155 = vector.broadcast %154 : vector<1x8x1xf32> to vector<64x8x1xf32>
    %156 = arith.divf %152, %155 : vector<64x8x1xf32>
    %157 = vector.broadcast %156 : vector<64x8x1xf32> to vector<64x8x32xf32>
    %158 = arith.mulf %131, %157 : vector<64x8x32xf32>
    %cst_153 = arith.constant dense<0.000000e+00> : vector<8x32xf32>
    %159 = vector.multi_reduction <add>, %158, %cst_153 [0] : vector<64x8x32xf32> to vector<8x32xf32>
    %c0_154 = arith.constant 0 : index
    %c0_155 = arith.constant 0 : index
    %160 = vector.load %arg5[%c0_154, %c0_155] : memref<8x32xf32, #tpu.memory_space<vmem>>, vector<8x32xf32>
    tpu.vector_store %arg5[%c0_154, %c0_155], %159 {strides = array<i32>} : memref<8x32xf32, #tpu.memory_space<vmem>>, vector<8x32xf32>,
    %161 = vector.shape_cast %156 : vector<64x8x1xf32> to vector<64x8xf32>
    %162 = tpu.transpose %161, [1, 0] : vector<64x8xf32> -> vector<8x64xf32>
    %c0_156 = arith.constant 0 : index
    %c0_157 = arith.constant 0 : index
    %163 = vector.load %arg6[%c0_156, %c0_157] : memref<8x64xf32, #tpu.memory_space<vmem>>, vector<8x64xf32>
    tpu.vector_store %arg6[%c0_156, %c0_157], %162 {strides = array<i32>} : memref<8x64xf32, #tpu.memory_space<vmem>>, vector<8x64xf32>,
    return
  }
  func.func @transform_0(%arg0: i32) -> (i32, i32, i32) {
    %c0_i32 = arith.constant 0 : i32
    %c0_i32_0 = arith.constant 0 : i32
    %c0_i32_1 = arith.constant 0 : i32
    return %c0_i32, %arg0, %c0_i32_0 : i32, i32, i32
  }
  func.func @transform_1(%arg0: i32) -> (i32, i32) {
    %c0_i32 = arith.constant 0 : i32
    %c0_i32_0 = arith.constant 0 : i32
    return %arg0, %c0_i32 : i32, i32
  }
  func.func @transform_2(%arg0: i32) -> (i32, i32) {
    %c0_i32 = arith.constant 0 : i32
    %c0_i32_0 = arith.constant 0 : i32
    return %arg0, %c0_i32 : i32, i32
  }
  func.func @transform_3(%arg0: i32) -> (i32, i32) {
    %c0_i32 = arith.constant 0 : i32
    %c0_i32_0 = arith.constant 0 : i32
    %c0_i32_1 = arith.constant 0 : i32
    return %c0_i32, %c0_i32_0 : i32, i32
  }
  func.func @transform_4(%arg0: i32) -> (i32, i32) {
    %c0_i32 = arith.constant 0 : i32
    %c0_i32_0 = arith.constant 0 : i32
    return %arg0, %c0_i32 : i32, i32
  }
  func.func @transform_5(%arg0: i32) -> (i32, i32) {
    %c0_i32 = arith.constant 0 : i32
    %c0_i32_0 = arith.constant 0 : i32
    return %arg0, %c0_i32 : i32, i32
  }
}

</mosaic_0001>

<llo_original>
// kernel: tpu_custom_call.1
$region0: #{tpu_custom_call.1}
  #allocation0 [shape = 'u32[]', space=smem, size = 0x4, offset = 0x4, fixed_abs, tag = 'smem constant byte address 0x4 - core index']
  #allocation1 [shape = 'u32[72,128]{1,0:T(1,128)}', space=vmem, size = 0x9000, scoped, tag = 'internal scratch']
  #allocation2 [shape = 'f32[512,32]{1,0:T(8,128)}', space=vmem, size = 0x40000, scoped, tag = 'scratch operand']
  %s0 = inlined_call_operand.vmem [shape: f32[64,16,32], index: 0, kind: input, shape index: {}]
  %s1 = inlined_call_operand.vmem [shape: f32[16,95], index: 1, kind: input, shape index: {}]
  %s2 = inlined_call_operand.vmem [shape: f32[16,32], index: 2, kind: input, shape index: {}]
  %s3 = inlined_call_operand.vmem [shape: f32[72,32], index: 3, kind: input, shape index: {}]
  %s4 = inlined_call_operand.hbm [shape: f32[16,32], index: 4, kind: output, shape index: {0}]
  %s5 = inlined_call_operand.hbm [shape: f32[16,64], index: 5, kind: output, shape index: {1}]
  %6 = xla_tuple %s4, %s5
  %s7 = sld [smem:[#allocation0]]
  $region95: #{tpu_custom_call.1} parent=0
    _
  %s9 = ssub.s32 1, %s7
  %s10 = scalar_select 0, %s9, %s7
  $region1: #{tpu_custom_call.1} parent=0
    #allocation3 [shape = 'u8[524288]{0}', space=vmem, size = 0x80000, scoped, tag = 'input window, operand 0']
    #allocation4 [shape = 'u8[8192]{0}', space=vmem, size = 0x2000, scoped, tag = 'output window, operand 0']
    #allocation5 [shape = 's32[2]{0}', space=sflag, size = 0x8, scoped, tag = 'scoped memory for tpu_custom_call.1']
    #allocation6 [shape = 'u8[8192]{0}', space=vmem, size = 0x2000, scoped, tag = 'output window, operand 1']
    #allocation7 [shape = 's32[2]{0}', space=sflag, size = 0x8, scoped, tag = 'scoped memory for tpu_custom_call.1']
    %11 = vsyncpa [#allocation5], 0
    %s12 = scalar_lea.sflag [#allocation5], 1
    %13 = vsyncpa %s12, 0
    %14 = vsyncpa [#allocation7], 0
    %s15 = scalar_lea.sflag [#allocation7], 1
    %16 = vsyncpa %s15, 0
    loop: start=0, step=1, limit=4
    $region2: #{tpu_custom_call.1} parent=1 // loop_pre_header
      _
    $region3: #{tpu_custom_call.1} parent=1 // loop_header
      %s18 = sphi 0, %s22
      %p19 = scmp.ge.s32.totalorder %s18, 4
      %s28 = sphi 0, %s30
      %s31 = sphi 0, %s28
      %s32 = sphi 0, %s31
      %s48 = sphi 0, %s32
      %s54 = sphi 0, %s56
      %s57 = sphi 0, %s54
      %s58 = sphi 0, %s57
      %s74 = sphi 0, %s58
      %s80 = sphi 0, %s82
      %s83 = sphi 0, %s80
      %s84 = sphi 0, %s83
      %s100 = sphi 0, %s84
      %s104 = sphi 0, %s104
      %s106 = sphi 0, %s104
      %s107 = sphi 0, %s106
      %s121 = sphi 0, %s107
      %s127 = sphi 0, %s129
      %s130 = sphi 0, %s127
      %s131 = sphi 0, %s130
      %s147 = sphi 0, %s131
      %s153 = sphi 0, %s155
      %s156 = sphi 0, %s153
      %s157 = sphi 0, %s156
      %s173 = sphi 0, %s157
    $region4: #{tpu_custom_call.1} parent=1 // loop_header_branch
      %21 = sbr.rel (%p19) target = $region8
    $region5: #{tpu_custom_call.1} parent=1 // loop_body
      %s23 = ssub.s32 %s18, 1
      %s24 = ssub.s32 %s18, 2
      %s25 = sadd.s32 %s18, 1
      %s26 = ssub.s32 %s18, %s25
      %p27 = scmp.eq.s32.totalorder %s26, 0
      %s29 = sadd.s32 %s28, 1
      %s30 = scalar_select %p27, %s28, %s29
      %p33 = pneg %p27
      %p34 = scmp.eq.s32.totalorder %s18, 1
      %p35 = por %p33, %p34
      %p36 = scmp.ne.s32.totalorder %s28, %s31
      %p37 = scmp.eq.s32.totalorder %s18, 0
      %p38 = por %p36, %p37
      %p39 = scmp.ne.s32.totalorder %s28, %s31
      %p40 = scmp.eq.s32.totalorder %s23, 1
      %p41 = por %p39, %p40
      %p42 = scmp.ne.s32.totalorder %s31, %s32
      %p43 = scmp.eq.s32.totalorder %s23, 0
      %p44 = por %p42, %p43
      %p45 = scmp.ne.s32.totalorder %s31, %s32
      %p46 = scmp.eq.s32.totalorder %s24, 1
      %p47 = por %p45, %p46
      %p49 = scmp.ne.s32.totalorder %s32, %s48
      %p50 = scmp.eq.s32.totalorder %s24, 0
      %p51 = por %p49, %p50
      %s52 = ssub.s32 %s18, %s25
      %p53 = scmp.eq.s32.totalorder %s52, 0
      %s55 = sadd.s32 %s54, 1
      %s56 = scalar_select %p53, %s54, %s55
      %p59 = pneg %p53
      %p60 = scmp.eq.s32.totalorder %s18, 1
      %p61 = por %p59, %p60
      %p62 = scmp.ne.s32.totalorder %s54, %s57
      %p63 = scmp.eq.s32.totalorder %s18, 0
      %p64 = por %p62, %p63
      %p65 = scmp.ne.s32.totalorder %s54, %s57
      %p66 = scmp.eq.s32.totalorder %s23, 1
      %p67 = por %p65, %p66
      %p68 = scmp.ne.s32.totalorder %s57, %s58
      %p69 = scmp.eq.s32.totalorder %s23, 0
      %p70 = por %p68, %p69
      %p71 = scmp.ne.s32.totalorder %s57, %s58
      %p72 = scmp.eq.s32.totalorder %s24, 1
      %p73 = por %p71, %p72
      %p75 = scmp.ne.s32.totalorder %s58, %s74
      %p76 = scmp.eq.s32.totalorder %s24, 0
      %p77 = por %p75, %p76
      %s78 = ssub.s32 %s18, %s25
      %p79 = scmp.eq.s32.totalorder %s78, 0
      %s81 = sadd.s32 %s80, 1
      %s82 = scalar_select %p79, %s80, %s81
      %p85 = pneg %p79
      %p86 = scmp.eq.s32.totalorder %s18, 1
      %p87 = por %p85, %p86
      %p88 = scmp.ne.s32.totalorder %s80, %s83
      %p89 = scmp.eq.s32.totalorder %s18, 0
      %p90 = por %p88, %p89
      %p91 = scmp.ne.s32.totalorder %s80, %s83
      %p92 = scmp.eq.s32.totalorder %s23, 1
      %p93 = por %p91, %p92
      %p94 = scmp.ne.s32.totalorder %s83, %s84
      %p95 = scmp.eq.s32.totalorder %s23, 0
      %p96 = por %p94, %p95
      %p97 = scmp.ne.s32.totalorder %s83, %s84
      %p98 = scmp.eq.s32.totalorder %s24, 1
      %p99 = por %p97, %p98
      %p101 = scmp.ne.s32.totalorder %s84, %s100
      %p102 = scmp.eq.s32.totalorder %s24, 0
      %p103 = por %p101, %p102
      %s105 = sadd.s32 %s104, 1
      %p108 = scmp.eq.s32.totalorder %s18, 1
      %p109 = scmp.ne.s32.totalorder %s104, %s106
      %p110 = scmp.eq.s32.totalorder %s18, 0
      %p111 = por %p109, %p110
      %p112 = scmp.ne.s32.totalorder %s104, %s106
      %p113 = scmp.eq.s32.totalorder %s23, 1
      %p114 = por %p112, %p113
      %p115 = scmp.ne.s32.totalorder %s106, %s107
      %p116 = scmp.eq.s32.totalorder %s23, 0
      %p117 = por %p115, %p116
      %p118 = scmp.ne.s32.totalorder %s106, %s107
      %p119 = scmp.eq.s32.totalorder %s24, 1
      %p120 = por %p118, %p119
      %p122 = scmp.ne.s32.totalorder %s107, %s121
      %p123 = scmp.eq.s32.totalorder %s24, 0
      %p124 = por %p122, %p123
      %s125 = ssub.s32 %s18, %s25
      %p126 = scmp.eq.s32.totalorder %s125, 0
      %s128 = sadd.s32 %s127, 1
      %s129 = scalar_select %p126, %s127, %s128
      %p132 = pneg %p126
      %p133 = scmp.eq.s32.totalorder %s18, 1
      %p134 = por %p132, %p133
      %p135 = scmp.ne.s32.totalorder %s127, %s130
      %p136 = scmp.eq.s32.totalorder %s18, 0
      %p137 = por %p135, %p136
      %p138 = scmp.ne.s32.totalorder %s127, %s130
      %p139 = scmp.eq.s32.totalorder %s23, 1
      %p140 = por %p138, %p139
      %p141 = scmp.ne.s32.totalorder %s130, %s131
      %p142 = scmp.eq.s32.totalorder %s23, 0
      %p143 = por %p141, %p142
      %p144 = scmp.ne.s32.totalorder %s130, %s131
      %p145 = scmp.eq.s32.totalorder %s24, 1
      %p146 = por %p144, %p145
      %p148 = scmp.ne.s32.totalorder %s131, %s147
      %p149 = scmp.eq.s32.totalorder %s24, 0
      %p150 = por %p148, %p149
      %s151 = ssub.s32 %s18, %s25
      %p152 = scmp.eq.s32.totalorder %s151, 0
      %s154 = sadd.s32 %s153, 1
      %s155 = scalar_select %p152, %s153, %s154
      %p158 = pneg %p152
      %p159 = scmp.eq.s32.totalorder %s18, 1
      %p160 = por %p158, %p159
      %p161 = scmp.ne.s32.totalorder %s153, %s156
      %p162 = scmp.eq.s32.totalorder %s18, 0
      %p163 = por %p161, %p162
      %p164 = scmp.ne.s32.totalorder %s153, %s156
      %p165 = scmp.eq.s32.totalorder %s23, 1
      %p166 = por %p164, %p165
      %p167 = scmp.ne.s32.totalorder %s156, %s157
      %p168 = scmp.eq.s32.totalorder %s23, 0
      %p169 = por %p167, %p168
      %p170 = scmp.ne.s32.totalorder %s156, %s157
      %p171 = scmp.eq.s32.totalorder %s24, 1
      %p172 = por %p170, %p171
      %p174 = scmp.ne.s32.totalorder %s157, %s173
      %p175 = scmp.eq.s32.totalorder %s24, 0
      %p176 = por %p174, %p175
      %p177 = scmp.le.s32.totalorder 1, %s18
      %p178 = scmp.lt.s32.totalorder %s18, 3
      %p179 = pnand %p177, %p178
      %p180 = pneg %p179
      // Predicated region
      $region9: #{tpu_custom_call.1} parent=5 // pred_check
        _
      $region10: #{tpu_custom_call.1} parent=5 // pred_check_branch
        %182 = sbr.rel (%p179) target = $region12
      $region11: #{tpu_custom_call.1} parent=5 // pred_region
        %s183 = ssub.s32 %s18, 1
        // Predicated region
        $region13: #{tpu_custom_call.1} parent=11 // pred_check
          %p184 = pneg %p117
        $region14: #{tpu_custom_call.1} parent=11 // pred_check_branch
          %186 = sbr.rel (%p184) target = $region16
        $region15: #{tpu_custom_call.1} parent=11 // pred_region
          _
        $region16: #{tpu_custom_call.1} parent=11 // pred_fallthru
          _
      $region12: #{tpu_custom_call.1} parent=5 // pred_fallthru
        _
      %p187 = scmp.lt.s32.totalorder %s18, 2
      // Predicated region
      $region17: #{tpu_custom_call.1} parent=5 // pred_check
        %p188 = pneg %p187
      $region18: #{tpu_custom_call.1} parent=5 // pred_check_branch
        %190 = sbr.rel (%p188) target = $region20
      $region19: #{tpu_custom_call.1} parent=5 // pred_region
        // Predicated region
        $region21: #{tpu_custom_call.1} parent=19 // pred_check
          %p191 = pneg %p38
        $region22: #{tpu_custom_call.1} parent=19 // pred_check_branch
          %193 = sbr.rel (%p191) target = $region24
        $region23: #{tpu_custom_call.1} parent=19 // pred_region
          %s194 = sand.u32 %s28, 1
          %s195 = sand.u32 %s28, 1
          %s196 = smul.addr %s195, 512
          %s197 = scalar_lea.vmem [#allocation3], %s196
          %s198 = smul.addr %s18, 8
          %s199 = scalar_lea.vmem %s0, %s198
          // Predicated region
          $region25: #{tpu_custom_call.1} parent=23 // pred_check
            _
          $region26: #{tpu_custom_call.1} parent=23 // pred_check_branch
            %201 = sbr.rel (0) target = $region28
          $region27: #{tpu_custom_call.1} parent=23 // pred_region
            // Predicated region
            $region29: #{tpu_custom_call.1} parent=27 // pred_check
              _
            $region30: #{tpu_custom_call.1} parent=27 // pred_check_branch
              %203 = sbr.rel (0) target = $region32
            $region31: #{tpu_custom_call.1} parent=27 // pred_region
              // Predicated region
              $region44: #{tpu_custom_call.1} parent=31 // pred_check
                _
              $region45: #{tpu_custom_call.1} parent=31 // pred_check_branch
                %345 = sbr.rel (0) target = $region47
              $region46: #{tpu_custom_call.1} parent=31 // pred_region
                loop: start=0, step=1, limit=1
                $region48: #{tpu_custom_call.1} parent=46 // loop_pre_header
                  _
                $region49: #{tpu_custom_call.1} parent=46 // loop_header
                  %s347 = sphi 0, %s351
                  %p348 = scmp.ge.s32.totalorder %s347, 1
                  %s352 = sphi %s199, %s199
                  %s353 = sphi %s197, %s197
                $region50: #{tpu_custom_call.1} parent=46 // loop_header_branch
                  %350 = sbr.rel (%p348) target = $region54
                $region51: #{tpu_custom_call.1} parent=46 // loop_body
                  %v354 = vld [vmem:[%s352] sm:$0xff]
                  %355 = vst [vmem:[%s353] sm:$0xff] %v354
                  %v356 = vld [vmem:[%s352 + $0x10] sm:$0xff]
                  %357 = vst [vmem:[%s353 + $0x8] sm:$0xff] %v356
                  %v358 = vld [vmem:[%s352 + $0x20] sm:$0xff]
                  %359 = vst [vmem:[%s353 + $0x10] sm:$0xff] %v358
                  %v360 = vld [vmem:[%s352 + $0x30] sm:$0xff]
                  %361 = vst [vmem:[%s353 + $0x18] sm:$0xff] %v360
                  %v362 = vld [vmem:[%s352 + $0x40] sm:$0xff]
                  %363 = vst [vmem:[%s353 + $0x20] sm:$0xff] %v362
                  %v364 = vld [vmem:[%s352 + $0x50] sm:$0xff]
                  %365 = vst [vmem:[%s353 + $0x28] sm:$0xff] %v364
                  %v366 = vld [vmem:[%s352 + $0x60] sm:$0xff]
                  %367 = vst [vmem:[%s353 + $0x30] sm:$0xff] %v366
                  %v368 = vld [vmem:[%s352 + $0x70] sm:$0xff]
                  %369 = vst [vmem:[%s353 + $0x38] sm:$0xff] %v368
                  %v370 = vld [vmem:[%s352 + $0x80] sm:$0xff]
                  %371 = vst [vmem:[%s353 + $0x40] sm:$0xff] %v370
                  %v372 = vld [vmem:[%s352 + $0x90] sm:$0xff]
                  %373 = vst [vmem:[%s353 + $0x48] sm:$0xff] %v372
                  %v374 = vld [vmem:[%s352 + $0xa0] sm:$0xff]
                  %375 = vst [vmem:[%s353 + $0x50] sm:$0xff] %v374
                  %v376 = vld [vmem:[%s352 + $0xb0] sm:$0xff]
                  %377 = vst [vmem:[%s353 + $0x58] sm:$0xff] %v376
                  %v378 = vld [vmem:[%s352 + $0xc0] sm:$0xff]
                  %379 = vst [vmem:[%s353 + $0x60] sm:$0xff] %v378
                  %v380 = vld [vmem:[%s352 + $0xd0] sm:$0xff]
                  %381 = vst [vmem:[%s353 + $0x68] sm:$0xff] %v380
                  %v382 = vld [vmem:[%s352 + $0xe0] sm:$0xff]
                  %383 = vst [vmem:[%s353 + $0x70] sm:$0xff] %v382
                  %v384 = vld [vmem:[%s352 + $0xf0] sm:$0xff]
                  %385 = vst [vmem:[%s353 + $0x78] sm:$0xff] %v384
                  %v386 = vld [vmem:[%s352 + $0x100] sm:$0xff]
                  %387 = vst [vmem:[%s353 + $0x80] sm:$0xff] %v386
                  %v388 = vld [vmem:[%s352 + $0x110] sm:$0xff]
                  %389 = vst [vmem:[%s353 + $0x88] sm:$0xff] %v388
                  %v390 = vld [vmem:[%s352 + $0x120] sm:$0xff]
                  %391 = vst [vmem:[%s353 + $0x90] sm:$0xff] %v390
                  %v392 = vld [vmem:[%s352 + $0x130] sm:$0xff]
                  %393 = vst [vmem:[%s353 + $0x98] sm:$0xff] %v392
                  %v394 = vld [vmem:[%s352 + $0x140] sm:$0xff]
                  %395 = vst [vmem:[%s353 + $0xa0] sm:$0xff] %v394
                  %v396 = vld [vmem:[%s352 + $0x150] sm:$0xff]
                  %397 = vst [vmem:[%s353 + $0xa8] sm:$0xff] %v396
                  %v398 = vld [vmem:[%s352 + $0x160] sm:$0xff]
                  %399 = vst [vmem:[%s353 + $0xb0] sm:$0xff] %v398
                  %v400 = vld [vmem:[%s352 + $0x170] sm:$0xff]
                  %401 = vst [vmem:[%s353 + $0xb8] sm:$0xff] %v400
                  %v402 = vld [vmem:[%s352 + $0x180] sm:$0xff]
                  %403 = vst [vmem:[%s353 + $0xc0] sm:$0xff] %v402
                  %v404 = vld [vmem:[%s352 + $0x190] sm:$0xff]
                  %405 = vst [vmem:[%s353 + $0xc8] sm:$0xff] %v404
                  %v406 = vld [vmem:[%s352 + $0x1a0] sm:$0xff]
                  %407 = vst [vmem:[%s353 + $0xd0] sm:$0xff] %v406
                  %v408 = vld [vmem:[%s352 + $0x1b0] sm:$0xff]
                  %409 = vst [vmem:[%s353 + $0xd8] sm:$0xff] %v408
                  %v410 = vld [vmem:[%s352 + $0x1c0] sm:$0xff]
                  %411 = vst [vmem:[%s353 + $0xe0] sm:$0xff] %v410
                  %v412 = vld [vmem:[%s352 + $0x1d0] sm:$0xff]
                  %413 = vst [vmem:[%s353 + $0xe8] sm:$0xff] %v412
                  %v414 = vld [vmem:[%s352 + $0x1e0] sm:$0xff]
                  %415 = vst [vmem:[%s353 + $0xf0] sm:$0xff] %v414
                  %v416 = vld [vmem:[%s352 + $0x1f0] sm:$0xff]
                  %417 = vst [vmem:[%s353 + $0xf8] sm:$0xff] %v416
                  %v418 = vld [vmem:[%s352 + $0x200] sm:$0xff]
                  %419 = vst [vmem:[%s353 + $0x100] sm:$0xff] %v418
                  %v420 = vld [vmem:[%s352 + $0x210] sm:$0xff]
                  %421 = vst [vmem:[%s353 + $0x108] sm:$0xff] %v420
                  %v422 = vld [vmem:[%s352 + $0x220] sm:$0xff]
                  %423 = vst [vmem:[%s353 + $0x110] sm:$0xff] %v422
                  %v424 = vld [vmem:[%s352 + $0x230] sm:$0xff]
                  %425 = vst [vmem:[%s353 + $0x118] sm:$0xff] %v424
                  %v426 = vld [vmem:[%s352 + $0x240] sm:$0xff]
                  %427 = vst [vmem:[%s353 + $0x120] sm:$0xff] %v426
                  %v428 = vld [vmem:[%s352 + $0x250] sm:$0xff]
                  %429 = vst [vmem:[%s353 + $0x128] sm:$0xff] %v428
                  %v430 = vld [vmem:[%s352 + $0x260] sm:$0xff]
                  %431 = vst [vmem:[%s353 + $0x130] sm:$0xff] %v430
                  %v432 = vld [vmem:[%s352 + $0x270] sm:$0xff]
                  %433 = vst [vmem:[%s353 + $0x138] sm:$0xff] %v432
                  %v434 = vld [vmem:[%s352 + $0x280] sm:$0xff]
                  %435 = vst [vmem:[%s353 + $0x140] sm:$0xff] %v434
                  %v436 = vld [vmem:[%s352 + $0x290] sm:$0xff]
                  %437 = vst [vmem:[%s353 + $0x148] sm:$0xff] %v436
                  %v438 = vld [vmem:[%s352 + $0x2a0] sm:$0xff]
                  %439 = vst [vmem:[%s353 + $0x150] sm:$0xff] %v438
                  %v440 = vld [vmem:[%s352 + $0x2b0] sm:$0xff]
                  %441 = vst [vmem:[%s353 + $0x158] sm:$0xff] %v440
                  %v442 = vld [vmem:[%s352 + $0x2c0] sm:$0xff]
                  %443 = vst [vmem:[%s353 + $0x160] sm:$0xff] %v442
                  %v444 = vld [vmem:[%s352 + $0x2d0] sm:$0xff]
                  %445 = vst [vmem:[%s353 + $0x168] sm:$0xff] %v444
                  %v446 = vld [vmem:[%s352 + $0x2e0] sm:$0xff]
                  %447 = vst [vmem:[%s353 + $0x170] sm:$0xff] %v446
                  %v448 = vld [vmem:[%s352 + $0x2f0] sm:$0xff]
                  %449 = vst [vmem:[%s353 + $0x178] sm:$0xff] %v448
                  %v450 = vld [vmem:[%s352 + $0x300] sm:$0xff]
                  %451 = vst [vmem:[%s353 + $0x180] sm:$0xff] %v450
                  %v452 = vld [vmem:[%s352 + $0x310] sm:$0xff]
                  %453 = vst [vmem:[%s353 + $0x188] sm:$0xff] %v452
                  %v454 = vld [vmem:[%s352 + $0x320] sm:$0xff]
                  %455 = vst [vmem:[%s353 + $0x190] sm:$0xff] %v454
                  %v456 = vld [vmem:[%s352 + $0x330] sm:$0xff]
                  %457 = vst [vmem:[%s353 + $0x198] sm:$0xff] %v456
                  %v458 = vld [vmem:[%s352 + $0x340] sm:$0xff]
                  %459 = vst [vmem:[%s353 + $0x1a0] sm:$0xff] %v458
                  %v460 = vld [vmem:[%s352 + $0x350] sm:$0xff]
                  %461 = vst [vmem:[%s353 + $0x1a8] sm:$0xff] %v460
                  %v462 = vld [vmem:[%s352 + $0x360] sm:$0xff]
                  %463 = vst [vmem:[%s353 + $0x1b0] sm:$0xff] %v462
                  %v464 = vld [vmem:[%s352 + $0x370] sm:$0xff]
                  %465 = vst [vmem:[%s353 + $0x1b8] sm:$0xff] %v464
                  %v466 = vld [vmem:[%s352 + $0x380] sm:$0xff]
                  %467 = vst [vmem:[%s353 + $0x1c0] sm:$0xff] %v466
                  %v468 = vld [vmem:[%s352 + $0x390] sm:$0xff]
                  %469 = vst [vmem:[%s353 + $0x1c8] sm:$0xff] %v468
                  %v470 = vld [vmem:[%s352 + $0x3a0] sm:$0xff]
                  %471 = vst [vmem:[%s353 + $0x1d0] sm:$0xff] %v470
                  %v472 = vld [vmem:[%s352 + $0x3b0] sm:$0xff]
                  %473 = vst [vmem:[%s353 + $0x1d8] sm:$0xff] %v472
                  %v474 = vld [vmem:[%s352 + $0x3c0] sm:$0xff]
                  %475 = vst [vmem:[%s353 + $0x1e0] sm:$0xff] %v474
                  %v476 = vld [vmem:[%s352 + $0x3d0] sm:$0xff]
                  %477 = vst [vmem:[%s353 + $0x1e8] sm:$0xff] %v476
                  %v478 = vld [vmem:[%s352 + $0x3e0] sm:$0xff]
                  %479 = vst [vmem:[%s353 + $0x1f0] sm:$0xff] %v478
                  %v480 = vld [vmem:[%s352 + $0x3f0] sm:$0xff]
                  %481 = vst [vmem:[%s353 + $0x1f8] sm:$0xff] %v480
                $region52: #{tpu_custom_call.1} parent=46 // loop_footer
                  %s351 = sadd.s32 1, %s347
                $region53: #{tpu_custom_call.1} parent=46 // loop_footer_branch
                  %346 = sbr.rel target = $region49
                $region54: #{tpu_custom_call.1} parent=46 // loop_exit
                  _
              $region47: #{tpu_custom_call.1} parent=31 // pred_fallthru
                _
              // Predicated region
              $region55: #{tpu_custom_call.1} parent=31 // pred_check
                _
              $region56: #{tpu_custom_call.1} parent=31 // pred_check_branch
                %483 = sbr.rel target = $region58
              $region57: #{tpu_custom_call.1} parent=31 // pred_region
                _
              $region58: #{tpu_custom_call.1} parent=31 // pred_fallthru
                _
            $region32: #{tpu_custom_call.1} parent=27 // pred_fallthru
              _
            // Predicated region
            $region33: #{tpu_custom_call.1} parent=27 // pred_check
              _
            $region34: #{tpu_custom_call.1} parent=27 // pred_check_branch
              %205 = sbr.rel target = $region36
            $region35: #{tpu_custom_call.1} parent=27 // pred_region
              %s207 = ssub.s32 256, 1
              loop: start=0, step=1, limit=1
              $region37: #{tpu_custom_call.1} parent=35 // loop_pre_header
                _
              $region38: #{tpu_custom_call.1} parent=35 // loop_header
                %s209 = sphi 0, %s213
                %p210 = scmp.ge.s32.totalorder %s209, 1
                %s214 = sphi %s199, %s199
                %s215 = sphi %s197, %s197
              $region39: #{tpu_custom_call.1} parent=35 // loop_header_branch
                %212 = sbr.rel (%p210) target = $region43
              $region40: #{tpu_custom_call.1} parent=35 // loop_body
                %v216 = vld [vmem:[%s214] sm:%s207]
                %217 = vst [vmem:[%s215] sm:%s207] %v216
                %v218 = vld [vmem:[%s214 + $0x10] sm:%s207]
                %219 = vst [vmem:[%s215 + $0x8] sm:%s207] %v218
                %v220 = vld [vmem:[%s214 + $0x20] sm:%s207]
                %221 = vst [vmem:[%s215 + $0x10] sm:%s207] %v220
                %v222 = vld [vmem:[%s214 + $0x30] sm:%s207]
                %223 = vst [vmem:[%s215 + $0x18] sm:%s207] %v222
                %v224 = vld [vmem:[%s214 + $0x40] sm:%s207]
                %225 = vst [vmem:[%s215 + $0x20] sm:%s207] %v224
                %v226 = vld [vmem:[%s214 + $0x50] sm:%s207]
                %227 = vst [vmem:[%s215 + $0x28] sm:%s207] %v226
                %v228 = vld [vmem:[%s214 + $0x60] sm:%s207]
                %229 = vst [vmem:[%s215 + $0x30] sm:%s207] %v228
                %v230 = vld [vmem:[%s214 + $0x70] sm:%s207]
                %231 = vst [vmem:[%s215 + $0x38] sm:%s207] %v230
                %v232 = vld [vmem:[%s214 + $0x80] sm:%s207]
                %233 = vst [vmem:[%s215 + $0x40] sm:%s207] %v232
                %v234 = vld [vmem:[%s214 + $0x90] sm:%s207]
                %235 = vst [vmem:[%s215 + $0x48] sm:%s207] %v234
                %v236 = vld [vmem:[%s214 + $0xa0] sm:%s207]
                %237 = vst [vmem:[%s215 + $0x50] sm:%s207] %v236
                %v238 = vld [vmem:[%s214 + $0xb0] sm:%s207]
                %239 = vst [vmem:[%s215 + $0x58] sm:%s207] %v238
                %v240 = vld [vmem:[%s214 + $0xc0] sm:%s207]
                %241 = vst [vmem:[%s215 + $0x60] sm:%s207] %v240
                %v242 = vld [vmem:[%s214 + $0xd0] sm:%s207]
                %243 = vst [vmem:[%s215 + $0x68] sm:%s207] %v242
                %v244 = vld [vmem:[%s214 + $0xe0] sm:%s207]
                %245 = vst [vmem:[%s215 + $0x70] sm:%s207] %v244
                %v246 = vld [vmem:[%s214 + $0xf0] sm:%s207]
                %247 = vst [vmem:[%s215 + $0x78] sm:%s207] %v246
                %v248 = vld [vmem:[%s214 + $0x100] sm:%s207]
                %249 = vst [vmem:[%s215 + $0x80] sm:%s207] %v248
                %v250 = vld [vmem:[%s214 + $0x110] sm:%s207]
                %251 = vst [vmem:[%s215 + $0x88] sm:%s207] %v250
                %v252 = vld [vmem:[%s214 + $0x120] sm:%s207]
                %253 = vst [vmem:[%s215 + $0x90] sm:%s207] %v252
                %v254 = vld [vmem:[%s214 + $0x130] sm:%s207]
                %255 = vst [vmem:[%s215 + $0x98] sm:%s207] %v254
                %v256 = vld [vmem:[%s214 + $0x140] sm:%s207]
                %257 = vst [vmem:[%s215 + $0xa0] sm:%s207] %v256
                %v258 = vld [vmem:[%s214 + $0x150] sm:%s207]
                %259 = vst [vmem:[%s215 + $0xa8] sm:%s207] %v258
                %v260 = vld [vmem:[%s214 + $0x160] sm:%s207]
                %261 = vst [vmem:[%s215 + $0xb0] sm:%s207] %v260
                %v262 = vld [vmem:[%s214 + $0x170] sm:%s207]
                %263 = vst [vmem:[%s215 + $0xb8] sm:%s207] %v262
                %v264 = vld [vmem:[%s214 + $0x180] sm:%s207]
                %265 = vst [vmem:[%s215 + $0xc0] sm:%s207] %v264
                %v266 = vld [vmem:[%s214 + $0x190] sm:%s207]
                %267 = vst [vmem:[%s215 + $0xc8] sm:%s207] %v266
                %v268 = vld [vmem:[%s214 + $0x1a0] sm:%s207]
                %269 = vst [vmem:[%s215 + $0xd0] sm:%s207] %v268
                %v270 = vld [vmem:[%s214 + $0x1b0] sm:%s207]
                %271 = vst [vmem:[%s215 + $0xd8] sm:%s207] %v270
                %v272 = vld [vmem:[%s214 + $0x1c0] sm:%s207]
                %273 = vst [vmem:[%s215 + $0xe0] sm:%s207] %v272
                %v274 = vld [vmem:[%s214 + $0x1d0] sm:%s207]
                %275 = vst [vmem:[%s215 + $0xe8] sm:%s207] %v274
                %v276 = vld [vmem:[%s214 + $0x1e0] sm:%s207]
                %277 = vst [vmem:[%s215 + $0xf0] sm:%s207] %v276
                %v278 = vld [vmem:[%s214 + $0x1f0] sm:%s207]
                %279 = vst [vmem:[%s215 + $0xf8] sm:%s207] %v278
                %v280 = vld [vmem:[%s214 + $0x200] sm:%s207]
                %281 = vst [vmem:[%s215 + $0x100] sm:%s207] %v280
                %v282 = vld [vmem:[%s214 + $0x210] sm:%s207]
                %283 = vst [vmem:[%s215 + $0x108] sm:%s207] %v282
                %v284 = vld [vmem:[%s214 + $0x220] sm:%s207]
                %285 = vst [vmem:[%s215 + $0x110] sm:%s207] %v284
                %v286 = vld [vmem:[%s214 + $0x230] sm:%s207]
                %287 = vst [vmem:[%s215 + $0x118] sm:%s207] %v286
                %v288 = vld [vmem:[%s214 + $0x240] sm:%s207]
                %289 = vst [vmem:[%s215 + $0x120] sm:%s207] %v288
                %v290 = vld [vmem:[%s214 + $0x250] sm:%s207]
                %291 = vst [vmem:[%s215 + $0x128] sm:%s207] %v290
                %v292 = vld [vmem:[%s214 + $0x260] sm:%s207]
                %293 = vst [vmem:[%s215 + $0x130] sm:%s207] %v292
                %v294 = vld [vmem:[%s214 + $0x270] sm:%s207]
                %295 = vst [vmem:[%s215 + $0x138] sm:%s207] %v294
                %v296 = vld [vmem:[%s214 + $0x280] sm:%s207]
                %297 = vst [vmem:[%s215 + $0x140] sm:%s207] %v296
                %v298 = vld [vmem:[%s214 + $0x290] sm:%s207]
                %299 = vst [vmem:[%s215 + $0x148] sm:%s207] %v298
                %v300 = vld [vmem:[%s214 + $0x2a0] sm:%s207]
                %301 = vst [vmem:[%s215 + $0x150] sm:%s207] %v300
                %v302 = vld [vmem:[%s214 + $0x2b0] sm:%s207]
                %303 = vst [vmem:[%s215 + $0x158] sm:%s207] %v302
                %v304 = vld [vmem:[%s214 + $0x2c0] sm:%s207]
                %305 = vst [vmem:[%s215 + $0x160] sm:%s207] %v304
                %v306 = vld [vmem:[%s214 + $0x2d0] sm:%s207]
                %307 = vst [vmem:[%s215 + $0x168] sm:%s207] %v306
                %v308 = vld [vmem:[%s214 + $0x2e0] sm:%s207]
                %309 = vst [vmem:[%s215 + $0x170] sm:%s207] %v308
                %v310 = vld [vmem:[%s214 + $0x2f0] sm:%s207]
                %311 = vst [vmem:[%s215 + $0x178] sm:%s207] %v310
                %v312 = vld [vmem:[%s214 + $0x300] sm:%s207]
                %313 = vst [vmem:[%s215 + $0x180] sm:%s207] %v312
                %v314 = vld [vmem:[%s214 + $0x310] sm:%s207]
                %315 = vst [vmem:[%s215 + $0x188] sm:%s207] %v314
                %v316 = vld [vmem:[%s214 + $0x320] sm:%s207]
                %317 = vst [vmem:[%s215 + $0x190] sm:%s207] %v316
                %v318 = vld [vmem:[%s214 + $0x330] sm:%s207]
                %319 = vst [vmem:[%s215 + $0x198] sm:%s207] %v318
                %v320 = vld [vmem:[%s214 + $0x340] sm:%s207]
                %321 = vst [vmem:[%s215 + $0x1a0] sm:%s207] %v320
                %v322 = vld [vmem:[%s214 + $0x350] sm:%s207]
                %323 = vst [vmem:[%s215 + $0x1a8] sm:%s207] %v322
                %v324 = vld [vmem:[%s214 + $0x360] sm:%s207]
                %325 = vst [vmem:[%s215 + $0x1b0] sm:%s207] %v324
                %v326 = vld [vmem:[%s214 + $0x370] sm:%s207]
                %327 = vst [vmem:[%s215 + $0x1b8] sm:%s207] %v326
                %v328 = vld [vmem:[%s214 + $0x380] sm:%s207]
                %329 = vst [vmem:[%s215 + $0x1c0] sm:%s207] %v328
                %v330 = vld [vmem:[%s214 + $0x390] sm:%s207]
                %331 = vst [vmem:[%s215 + $0x1c8] sm:%s207] %v330
                %v332 = vld [vmem:[%s214 + $0x3a0] sm:%s207]
                %333 = vst [vmem:[%s215 + $0x1d0] sm:%s207] %v332
                %v334 = vld [vmem:[%s214 + $0x3b0] sm:%s207]
                %335 = vst [vmem:[%s215 + $0x1d8] sm:%s207] %v334
                %v336 = vld [vmem:[%s214 + $0x3c0] sm:%s207]
                %337 = vst [vmem:[%s215 + $0x1e0] sm:%s207] %v336
                %v338 = vld [vmem:[%s214 + $0x3d0] sm:%s207]
                %339 = vst [vmem:[%s215 + $0x1e8] sm:%s207] %v338
                %v340 = vld [vmem:[%s214 + $0x3e0] sm:%s207]
                %341 = vst [vmem:[%s215 + $0x1f0] sm:%s207] %v340
                %v342 = vld [vmem:[%s214 + $0x3f0] sm:%s207]
                %343 = vst [vmem:[%s215 + $0x1f8] sm:%s207] %v342
              $region41: #{tpu_custom_call.1} parent=35 // loop_footer
                %s213 = sadd.s32 1, %s209
              $region42: #{tpu_custom_call.1} parent=35 // loop_footer_branch
                %208 = sbr.rel target = $region38
              $region43: #{tpu_custom_call.1} parent=35 // loop_exit
                _
            $region36: #{tpu_custom_call.1} parent=27 // pred_fallthru
              _
          $region28: #{tpu_custom_call.1} parent=23 // pred_fallthru
            _
          %484 = vnop
        $region24: #{tpu_custom_call.1} parent=19 // pred_fallthru
          _
        // Predicated region
        $region59: #{tpu_custom_call.1} parent=19 // pred_check
          %p485 = pneg %p64
        $region60: #{tpu_custom_call.1} parent=19 // pred_check_branch
          %487 = sbr.rel (%p485) target = $region62
        $region61: #{tpu_custom_call.1} parent=19 // pred_region
          %p488 = scmp.lt.s32.totalorder %s18, 1
          %s489 = scalar_select %p488, %s18, 1
          %s490 = smul.addr %s489, 8
          %s491 = scalar_lea.vmem %s1, %s490
        $region62: #{tpu_custom_call.1} parent=19 // pred_fallthru
          _
        // Predicated region
        $region63: #{tpu_custom_call.1} parent=19 // pred_check
          %p492 = pneg %p90
        $region64: #{tpu_custom_call.1} parent=19 // pred_check_branch
          %494 = sbr.rel (%p492) target = $region66
        $region65: #{tpu_custom_call.1} parent=19 // pred_region
          %p495 = scmp.lt.s32.totalorder %s18, 1
          %s496 = scalar_select %p495, %s18, 1
          %s497 = smul.addr %s496, 8
          %s498 = scalar_lea.vmem %s2, %s497
        $region66: #{tpu_custom_call.1} parent=19 // pred_fallthru
          _
      $region20: #{tpu_custom_call.1} parent=5 // pred_fallthru
        _
      %p499 = scmp.le.s32.totalorder 1, %s18
      %p500 = scmp.lt.s32.totalorder %s18, 3
      %p501 = pnand %p499, %p500
      %p502 = pneg %p501
      // Predicated region
      $region67: #{tpu_custom_call.1} parent=5 // pred_check
        _
      $region68: #{tpu_custom_call.1} parent=5 // pred_check_branch
        %504 = sbr.rel (%p501) target = $region70
      $region69: #{tpu_custom_call.1} parent=5 // pred_region
        %s505 = ssub.s32 %s18, 1
        %s506 = sand.u32 %s31, 1
        %s507 = sand.u32 %s31, 1
        %s508 = smul.addr %s507, 512
        %s509 = scalar_lea.vmem [#allocation3], %s508
        // Predicated region
        $region71: #{tpu_custom_call.1} parent=69 // pred_check
          %p510 = pneg %p44
        $region72: #{tpu_custom_call.1} parent=69 // pred_check_branch
          %512 = sbr.rel (%p510) target = $region74
        $region73: #{tpu_custom_call.1} parent=69 // pred_region
          _
        $region74: #{tpu_custom_call.1} parent=69 // pred_fallthru
          _
        %s513 = sand.u32 %s31, 1
        %s514 = sand.u32 %s31, 1
        %s515 = smul.addr %s514, 512
        %s516 = scalar_lea.vmem [#allocation3], %s515
        %p517 = pneg %p44
        %p518 = pneg %p41
        %p519 = scmp.lt.s32.totalorder %s23, 1
        %s520 = scalar_select %p519, %s23, 1
        %s521 = smul.addr %s520, 8
        %s522 = scalar_lea.vmem %s1, %s521
        %p523 = pneg %p70
        %p524 = pneg %p67
        %p525 = scmp.lt.s32.totalorder %s23, 1
        %s526 = scalar_select %p525, %s23, 1
        %s527 = smul.addr %s526, 8
        %s528 = scalar_lea.vmem %s2, %s527
        %p529 = pneg %p96
        %p530 = pneg %p93
        %p531 = pneg %p117
        %p532 = pneg %p114
        %p533 = pneg %p143
        %p534 = pneg %p140
        %s535 = sand.u32 %s130, 1
        %s536 = scalar_lea.sflag [#allocation5], %s535
        %s537 = sand.u32 %s130, 1
        %s538 = smul.addr %s537, 8
        %s539 = scalar_lea.vmem [#allocation4], %s538
        %p540 = pneg %p169
        %p541 = pneg %p166
        %s542 = sand.u32 %s156, 1
        %s543 = scalar_lea.sflag [#allocation7], %s542
        %s544 = sand.u32 %s156, 1
        %s545 = smul.addr %s544, 8
        %s546 = scalar_lea.vmem [#allocation6], %s545
        %p547 = scmp.lt.s32.totalorder %s23, 1
        %s548 = scalar_select %p547, %s23, 1
        %s549 = smul.addr %s548, 8
        %s550 = scalar_lea.vmem %s1, %s549
        %p551 = scmp.lt.s32.totalorder %s23, 1
        %s552 = scalar_select %p551, %s23, 1
        %s553 = smul.addr %s552, 8
        %s554 = scalar_lea.vmem %s2, %s553
        %v555 = vld [vmem:[%s3] sm:$0xff]
        %v556 = vld [vmem:[%s3 + $0x8] sm:$0xff]
        %v557 = vld [vmem:[%s3 + $0x10] sm:$0xff]
        %v558 = vld [vmem:[%s3 + $0x18] sm:$0xff]
        %v559 = vld [vmem:[%s3 + $0x20] sm:$0xff]
        %v560 = vld [vmem:[%s3 + $0x28] sm:$0xff]
        %v561 = vld [vmem:[%s3 + $0x30] sm:$0xff]
        %v562 = vld [vmem:[%s3 + $0x38] sm:$0xff]
        %v563 = vld [vmem:[%s3 + $0x40] sm:$0x1]
        %v564 = vld [vmem:[%s550] sm:$0xff]
        %vm565 = vcmask 261120
        %566 = vst.msk [vmem:[#allocation2] sm:$0xff] %vm565, %v564
        %v567 = vld [vmem:[%s550] sm:$0xff]
        %569 = vrot.lane.b32.xlu0 %v567, 127
        %v570 = vpop.permute.xlu0 %569
        %572 = vst.msk [vmem:[#allocation2 + $0x8] sm:$0xff] %vm565, %v570
        %v573 = vld [vmem:[%s550] sm:$0xff]
        %575 = vrot.lane.b32.xlu0 %v573, 126
        %v576 = vpop.permute.xlu0 %575
        %578 = vst.msk [vmem:[#allocation2 + $0x10] sm:$0xff] %vm565, %v576
        %v579 = vld [vmem:[%s550] sm:$0xff]
        %581 = vrot.lane.b32.xlu0 %v579, 125
        %v582 = vpop.permute.xlu0 %581
        %584 = vst.msk [vmem:[#allocation2 + $0x18] sm:$0xff] %vm565, %v582
        %v585 = vld [vmem:[%s550] sm:$0xff]
        %587 = vrot.lane.b32.xlu0 %v585, 124
        %v588 = vpop.permute.xlu0 %587
        %590 = vst.msk [vmem:[#allocation2 + $0x20] sm:$0xff] %vm565, %v588
        %v591 = vld [vmem:[%s550] sm:$0xff]
        %593 = vrot.lane.b32.xlu0 %v591, 123
        %v594 = vpop.permute.xlu0 %593
        %596 = vst.msk [vmem:[#allocation2 + $0x28] sm:$0xff] %vm565, %v594
        %v597 = vld [vmem:[%s550] sm:$0xff]
        %599 = vrot.lane.b32.xlu0 %v597, 122
        %v600 = vpop.permute.xlu0 %599
        %602 = vst.msk [vmem:[#allocation2 + $0x30] sm:$0xff] %vm565, %v600
        %v603 = vld [vmem:[%s550] sm:$0xff]
        %605 = vrot.lane.b32.xlu0 %v603, 121
        %v606 = vpop.permute.xlu0 %605
        %608 = vst.msk [vmem:[#allocation2 + $0x38] sm:$0xff] %vm565, %v606
        %v609 = vld [vmem:[%s550] sm:$0xff]
        %611 = vrot.lane.b32.xlu0 %v609, 120
        %v612 = vpop.permute.xlu0 %611
        %614 = vst.msk [vmem:[#allocation2 + $0x40] sm:$0xff] %vm565, %v612
        %v615 = vld [vmem:[%s550] sm:$0xff]
        %617 = vrot.lane.b32.xlu0 %v615, 119
        %v618 = vpop.permute.xlu0 %617
        %620 = vst.msk [vmem:[#allocation2 + $0x48] sm:$0xff] %vm565, %v618
        %v621 = vld [vmem:[%s550] sm:$0xff]
        %623 = vrot.lane.b32.xlu0 %v621, 118
        %v624 = vpop.permute.xlu0 %623
        %626 = vst.msk [vmem:[#allocation2 + $0x50] sm:$0xff] %vm565, %v624
        %v627 = vld [vmem:[%s550] sm:$0xff]
        %629 = vrot.lane.b32.xlu0 %v627, 117
        %v630 = vpop.permute.xlu0 %629
        %632 = vst.msk [vmem:[#allocation2 + $0x58] sm:$0xff] %vm565, %v630
        %v633 = vld [vmem:[%s550] sm:$0xff]
        %635 = vrot.lane.b32.xlu0 %v633, 116
        %v636 = vpop.permute.xlu0 %635
        %638 = vst.msk [vmem:[#allocation2 + $0x60] sm:$0xff] %vm565, %v636
        %v639 = vld [vmem:[%s550] sm:$0xff]
        %641 = vrot.lane.b32.xlu0 %v639, 115
        %v642 = vpop.permute.xlu0 %641
        %644 = vst.msk [vmem:[#allocation2 + $0x68] sm:$0xff] %vm565, %v642
        %v645 = vld [vmem:[%s550] sm:$0xff]
        %647 = vrot.lane.b32.xlu0 %v645, 114
        %v648 = vpop.permute.xlu0 %647
        %650 = vst.msk [vmem:[#allocation2 + $0x70] sm:$0xff] %vm565, %v648
        %v651 = vld [vmem:[%s550] sm:$0xff]
        %653 = vrot.lane.b32.xlu0 %v651, 113
        %v654 = vpop.permute.xlu0 %653
        %656 = vst.msk [vmem:[#allocation2 + $0x78] sm:$0xff] %vm565, %v654
        %v657 = vld [vmem:[%s550] sm:$0xff]
        %659 = vrot.lane.b32.xlu0 %v657, 112
        %v660 = vpop.permute.xlu0 %659
        %662 = vst.msk [vmem:[#allocation2 + $0x80] sm:$0xff] %vm565, %v660
        %v663 = vld [vmem:[%s550] sm:$0xff]
        %665 = vrot.lane.b32.xlu0 %v663, 111
        %v666 = vpop.permute.xlu0 %665
        %668 = vst.msk [vmem:[#allocation2 + $0x88] sm:$0xff] %vm565, %v666
        %v669 = vld [vmem:[%s550] sm:$0xff]
        %671 = vrot.lane.b32.xlu0 %v669, 110
        %v672 = vpop.permute.xlu0 %671
        %674 = vst.msk [vmem:[#allocation2 + $0x90] sm:$0xff] %vm565, %v672
        %v675 = vld [vmem:[%s550] sm:$0xff]
        %677 = vrot.lane.b32.xlu0 %v675, 109
        %v678 = vpop.permute.xlu0 %677
        %680 = vst.msk [vmem:[#allocation2 + $0x98] sm:$0xff] %vm565, %v678
        %v681 = vld [vmem:[%s550] sm:$0xff]
        %683 = vrot.lane.b32.xlu0 %v681, 108
        %v684 = vpop.permute.xlu0 %683
        %686 = vst.msk [vmem:[#allocation2 + $0xa0] sm:$0xff] %vm565, %v684
        %v687 = vld [vmem:[%s550] sm:$0xff]
        %689 = vrot.lane.b32.xlu0 %v687, 107
        %v690 = vpop.permute.xlu0 %689
        %692 = vst.msk [vmem:[#allocation2 + $0xa8] sm:$0xff] %vm565, %v690
        %v693 = vld [vmem:[%s550] sm:$0xff]
        %695 = vrot.lane.b32.xlu0 %v693, 106
        %v696 = vpop.permute.xlu0 %695
        %698 = vst.msk [vmem:[#allocation2 + $0xb0] sm:$0xff] %vm565, %v696
        %v699 = vld [vmem:[%s550] sm:$0xff]
        %701 = vrot.lane.b32.xlu0 %v699, 105
        %v702 = vpop.permute.xlu0 %701
        %704 = vst.msk [vmem:[#allocation2 + $0xb8] sm:$0xff] %vm565, %v702
        %v705 = vld [vmem:[%s550] sm:$0xff]
        %707 = vrot.lane.b32.xlu0 %v705, 104
        %v708 = vpop.permute.xlu0 %707
        %710 = vst.msk [vmem:[#allocation2 + $0xc0] sm:$0xff] %vm565, %v708
        %v711 = vld [vmem:[%s550] sm:$0xff]
        %713 = vrot.lane.b32.xlu0 %v711, 103
        %v714 = vpop.permute.xlu0 %713
        %716 = vst.msk [vmem:[#allocation2 + $0xc8] sm:$0xff] %vm565, %v714
        %v717 = vld [vmem:[%s550] sm:$0xff]
        %719 = vrot.lane.b32.xlu0 %v717, 102
        %v720 = vpop.permute.xlu0 %719
        %722 = vst.msk [vmem:[#allocation2 + $0xd0] sm:$0xff] %vm565, %v720
        %v723 = vld [vmem:[%s550] sm:$0xff]
        %725 = vrot.lane.b32.xlu0 %v723, 101
        %v726 = vpop.permute.xlu0 %725
        %728 = vst.msk [vmem:[#allocation2 + $0xd8] sm:$0xff] %vm565, %v726
        %v729 = vld [vmem:[%s550] sm:$0xff]
        %731 = vrot.lane.b32.xlu0 %v729, 100
        %v732 = vpop.permute.xlu0 %731
        %734 = vst.msk [vmem:[#allocation2 + $0xe0] sm:$0xff] %vm565, %v732
        %v735 = vld [vmem:[%s550] sm:$0xff]
        %737 = vrot.lane.b32.xlu0 %v735, 99
        %v738 = vpop.permute.xlu0 %737
        %740 = vst.msk [vmem:[#allocation2 + $0xe8] sm:$0xff] %vm565, %v738
        %v741 = vld [vmem:[%s550] sm:$0xff]
        %743 = vrot.lane.b32.xlu0 %v741, 98
        %v744 = vpop.permute.xlu0 %743
        %746 = vst.msk [vmem:[#allocation2 + $0xf0] sm:$0xff] %vm565, %v744
        %v747 = vld [vmem:[%s550] sm:$0xff]
        %749 = vrot.lane.b32.xlu0 %v747, 97
        %v750 = vpop.permute.xlu0 %749
        %752 = vst.msk [vmem:[#allocation2 + $0xf8] sm:$0xff] %vm565, %v750
        %v753 = vld [vmem:[%s550] sm:$0xff]
        %755 = vrot.lane.b32.xlu0 %v753, 96
        %v756 = vpop.permute.xlu0 %755
        %758 = vst.msk [vmem:[#allocation2 + $0x100] sm:$0xff] %vm565, %v756
        %v759 = vld [vmem:[%s550] sm:$0xff]
        %761 = vrot.lane.b32.xlu0 %v759, 95
        %v762 = vpop.permute.xlu0 %761
        %764 = vst.msk [vmem:[#allocation2 + $0x108] sm:$0xff] %vm565, %v762
        %v765 = vld [vmem:[%s550] sm:$0xff]
        %767 = vrot.lane.b32.xlu0 %v765, 94
        %v768 = vpop.permute.xlu0 %767
        %770 = vst.msk [vmem:[#allocation2 + $0x110] sm:$0xff] %vm565, %v768
        %v771 = vld [vmem:[%s550] sm:$0xff]
        %773 = vrot.lane.b32.xlu0 %v771, 93
        %v774 = vpop.permute.xlu0 %773
        %776 = vst.msk [vmem:[#allocation2 + $0x118] sm:$0xff] %vm565, %v774
        %v777 = vld [vmem:[%s550] sm:$0xff]
        %779 = vrot.lane.b32.xlu0 %v777, 92
        %v780 = vpop.permute.xlu0 %779
        %782 = vst.msk [vmem:[#allocation2 + $0x120] sm:$0xff] %vm565, %v780
        %v783 = vld [vmem:[%s550] sm:$0xff]
        %785 = vrot.lane.b32.xlu0 %v783, 91
        %v786 = vpop.permute.xlu0 %785
        %788 = vst.msk [vmem:[#allocation2 + $0x128] sm:$0xff] %vm565, %v786
        %v789 = vld [vmem:[%s550] sm:$0xff]
        %791 = vrot.lane.b32.xlu0 %v789, 90
        %v792 = vpop.permute.xlu0 %791
        %794 = vst.msk [vmem:[#allocation2 + $0x130] sm:$0xff] %vm565, %v792
        %v795 = vld [vmem:[%s550] sm:$0xff]
        %797 = vrot.lane.b32.xlu0 %v795, 89
        %v798 = vpop.permute.xlu0 %797
        %800 = vst.msk [vmem:[#allocation2 + $0x138] sm:$0xff] %vm565, %v798
        %v801 = vld [vmem:[%s550] sm:$0xff]
        %803 = vrot.lane.b32.xlu0 %v801, 88
        %v804 = vpop.permute.xlu0 %803
        %806 = vst.msk [vmem:[#allocation2 + $0x140] sm:$0xff] %vm565, %v804
        %v807 = vld [vmem:[%s550] sm:$0xff]
        %809 = vrot.lane.b32.xlu0 %v807, 87
        %v810 = vpop.permute.xlu0 %809
        %812 = vst.msk [vmem:[#allocation2 + $0x148] sm:$0xff] %vm565, %v810
        %v813 = vld [vmem:[%s550] sm:$0xff]
        %815 = vrot.lane.b32.xlu0 %v813, 86
        %v816 = vpop.permute.xlu0 %815
        %818 = vst.msk [vmem:[#allocation2 + $0x150] sm:$0xff] %vm565, %v816
        %v819 = vld [vmem:[%s550] sm:$0xff]
        %821 = vrot.lane.b32.xlu0 %v819, 85
        %v822 = vpop.permute.xlu0 %821
        %824 = vst.msk [vmem:[#allocation2 + $0x158] sm:$0xff] %vm565, %v822
        %v825 = vld [vmem:[%s550] sm:$0xff]
        %827 = vrot.lane.b32.xlu0 %v825, 84
        %v828 = vpop.permute.xlu0 %827
        %830 = vst.msk [vmem:[#allocation2 + $0x160] sm:$0xff] %vm565, %v828
        %v831 = vld [vmem:[%s550] sm:$0xff]
        %833 = vrot.lane.b32.xlu0 %v831, 83
        %v834 = vpop.permute.xlu0 %833
        %836 = vst.msk [vmem:[#allocation2 + $0x168] sm:$0xff] %vm565, %v834
        %v837 = vld [vmem:[%s550] sm:$0xff]
        %839 = vrot.lane.b32.xlu0 %v837, 82
        %v840 = vpop.permute.xlu0 %839
        %842 = vst.msk [vmem:[#allocation2 + $0x170] sm:$0xff] %vm565, %v840
        %v843 = vld [vmem:[%s550] sm:$0xff]
        %845 = vrot.lane.b32.xlu0 %v843, 81
        %v846 = vpop.permute.xlu0 %845
        %848 = vst.msk [vmem:[#allocation2 + $0x178] sm:$0xff] %vm565, %v846
        %v849 = vld [vmem:[%s550] sm:$0xff]
        %851 = vrot.lane.b32.xlu0 %v849, 80
        %v852 = vpop.permute.xlu0 %851
        %854 = vst.msk [vmem:[#allocation2 + $0x180] sm:$0xff] %vm565, %v852
        %v855 = vld [vmem:[%s550] sm:$0xff]
        %857 = vrot.lane.b32.xlu0 %v855, 79
        %v858 = vpop.permute.xlu0 %857
        %860 = vst.msk [vmem:[#allocation2 + $0x188] sm:$0xff] %vm565, %v858
        %v861 = vld [vmem:[%s550] sm:$0xff]
        %863 = vrot.lane.b32.xlu0 %v861, 78
        %v864 = vpop.permute.xlu0 %863
        %866 = vst.msk [vmem:[#allocation2 + $0x190] sm:$0xff] %vm565, %v864
        %v867 = vld [vmem:[%s550] sm:$0xff]
        %869 = vrot.lane.b32.xlu0 %v867, 77
        %v870 = vpop.permute.xlu0 %869
        %872 = vst.msk [vmem:[#allocation2 + $0x198] sm:$0xff] %vm565, %v870
        %v873 = vld [vmem:[%s550] sm:$0xff]
        %875 = vrot.lane.b32.xlu0 %v873, 76
        %v876 = vpop.permute.xlu0 %875
        %878 = vst.msk [vmem:[#allocation2 + $0x1a0] sm:$0xff] %vm565, %v876
        %v879 = vld [vmem:[%s550] sm:$0xff]
        %881 = vrot.lane.b32.xlu0 %v879, 75
        %v882 = vpop.permute.xlu0 %881
        %884 = vst.msk [vmem:[#allocation2 + $0x1a8] sm:$0xff] %vm565, %v882
        %v885 = vld [vmem:[%s550] sm:$0xff]
        %887 = vrot.lane.b32.xlu0 %v885, 74
        %v888 = vpop.permute.xlu0 %887
        %890 = vst.msk [vmem:[#allocation2 + $0x1b0] sm:$0xff] %vm565, %v888
        %v891 = vld [vmem:[%s550] sm:$0xff]
        %893 = vrot.lane.b32.xlu0 %v891, 73
        %v894 = vpop.permute.xlu0 %893
        %896 = vst.msk [vmem:[#allocation2 + $0x1b8] sm:$0xff] %vm565, %v894
        %v897 = vld [vmem:[%s550] sm:$0xff]
        %899 = vrot.lane.b32.xlu0 %v897, 72
        %v900 = vpop.permute.xlu0 %899
        %902 = vst.msk [vmem:[#allocation2 + $0x1c0] sm:$0xff] %vm565, %v900
        %v903 = vld [vmem:[%s550] sm:$0xff]
        %905 = vrot.lane.b32.xlu0 %v903, 71
        %v906 = vpop.permute.xlu0 %905
        %908 = vst.msk [vmem:[#allocation2 + $0x1c8] sm:$0xff] %vm565, %v906
        %v909 = vld [vmem:[%s550] sm:$0xff]
        %911 = vrot.lane.b32.xlu0 %v909, 70
        %v912 = vpop.permute.xlu0 %911
        %914 = vst.msk [vmem:[#allocation2 + $0x1d0] sm:$0xff] %vm565, %v912
        %v915 = vld [vmem:[%s550] sm:$0xff]
        %917 = vrot.lane.b32.xlu0 %v915, 69
        %v918 = vpop.permute.xlu0 %917
        %920 = vst.msk [vmem:[#allocation2 + $0x1d8] sm:$0xff] %vm565, %v918
        %v921 = vld [vmem:[%s550] sm:$0xff]
        %923 = vrot.lane.b32.xlu0 %v921, 68
        %v924 = vpop.permute.xlu0 %923
        %926 = vst.msk [vmem:[#allocation2 + $0x1e0] sm:$0xff] %vm565, %v924
        %v927 = vld [vmem:[%s550] sm:$0xff]
        %929 = vrot.lane.b32.xlu0 %v927, 67
        %v930 = vpop.permute.xlu0 %929
        %932 = vst.msk [vmem:[#allocation2 + $0x1e8] sm:$0xff] %vm565, %v930
        %v933 = vld [vmem:[%s550] sm:$0xff]
        %935 = vrot.lane.b32.xlu0 %v933, 66
        %v936 = vpop.permute.xlu0 %935
        %938 = vst.msk [vmem:[#allocation2 + $0x1f0] sm:$0xff] %vm565, %v936
        %v939 = vld [vmem:[%s550] sm:$0xff]
        %941 = vrot.lane.b32.xlu0 %v939, 65
        %v942 = vpop.permute.xlu0 %941
        %944 = vst.msk [vmem:[#allocation2 + $0x1f8] sm:$0xff] %vm565, %v942
        %v945 = vld [vmem:[%s509] sm:$0xff]
        %v946 = vld [vmem:[%s509 + $0x8] sm:$0xff]
        %v947 = vld [vmem:[%s509 + $0x10] sm:$0xff]
        %v948 = vld [vmem:[%s509 + $0x18] sm:$0xff]
        %v949 = vld [vmem:[%s509 + $0x20] sm:$0xff]
        %v950 = vld [vmem:[%s509 + $0x28] sm:$0xff]
        %v951 = vld [vmem:[%s509 + $0x30] sm:$0xff]
        %v952 = vld [vmem:[%s509 + $0x38] sm:$0xff]
        %v953 = vld [vmem:[%s509 + $0x40] sm:$0xff]
        %v954 = vld [vmem:[%s509 + $0x48] sm:$0xff]
        %v955 = vld [vmem:[%s509 + $0x50] sm:$0xff]
        %v956 = vld [vmem:[%s509 + $0x58] sm:$0xff]
        %v957 = vld [vmem:[%s509 + $0x60] sm:$0xff]
        %v958 = vld [vmem:[%s509 + $0x68] sm:$0xff]
        %v959 = vld [vmem:[%s509 + $0x70] sm:$0xff]
        %v960 = vld [vmem:[%s509 + $0x78] sm:$0xff]
        %v961 = vld [vmem:[%s509 + $0x80] sm:$0xff]
        %v962 = vld [vmem:[%s509 + $0x88] sm:$0xff]
        %v963 = vld [vmem:[%s509 + $0x90] sm:$0xff]
        %v964 = vld [vmem:[%s509 + $0x98] sm:$0xff]
        %v965 = vld [vmem:[%s509 + $0xa0] sm:$0xff]
        %v966 = vld [vmem:[%s509 + $0xa8] sm:$0xff]
        %v967 = vld [vmem:[%s509 + $0xb0] sm:$0xff]
        %v968 = vld [vmem:[%s509 + $0xb8] sm:$0xff]
        %v969 = vld [vmem:[%s509 + $0xc0] sm:$0xff]
        %v970 = vld [vmem:[%s509 + $0xc8] sm:$0xff]
        %v971 = vld [vmem:[%s509 + $0xd0] sm:$0xff]
        %v972 = vld [vmem:[%s509 + $0xd8] sm:$0xff]
        %v973 = vld [vmem:[%s509 + $0xe0] sm:$0xff]
        %v974 = vld [vmem:[%s509 + $0xe8] sm:$0xff]
        %v975 = vld [vmem:[%s509 + $0xf0] sm:$0xff]
        %v976 = vld [vmem:[%s509 + $0xf8] sm:$0xff]
        %v977 = vld [vmem:[%s509 + $0x100] sm:$0xff]
        %v978 = vld [vmem:[%s509 + $0x108] sm:$0xff]
        %v979 = vld [vmem:[%s509 + $0x110] sm:$0xff]
        %v980 = vld [vmem:[%s509 + $0x118] sm:$0xff]
        %v981 = vld [vmem:[%s509 + $0x120] sm:$0xff]
        %v982 = vld [vmem:[%s509 + $0x128] sm:$0xff]
        %v983 = vld [vmem:[%s509 + $0x130] sm:$0xff]
        %v984 = vld [vmem:[%s509 + $0x138] sm:$0xff]
        %v985 = vld [vmem:[%s509 + $0x140] sm:$0xff]
        %v986 = vld [vmem:[%s509 + $0x148] sm:$0xff]
        %v987 = vld [vmem:[%s509 + $0x150] sm:$0xff]
        %v988 = vld [vmem:[%s509 + $0x158] sm:$0xff]
        %v989 = vld [vmem:[%s509 + $0x160] sm:$0xff]
        %v990 = vld [vmem:[%s509 + $0x168] sm:$0xff]
        %v991 = vld [vmem:[%s509 + $0x170] sm:$0xff]
        %v992 = vld [vmem:[%s509 + $0x178] sm:$0xff]
        %v993 = vld [vmem:[%s509 + $0x180] sm:$0xff]
        %v994 = vld [vmem:[%s509 + $0x188] sm:$0xff]
        %v995 = vld [vmem:[%s509 + $0x190] sm:$0xff]
        %v996 = vld [vmem:[%s509 + $0x198] sm:$0xff]
        %v997 = vld [vmem:[%s509 + $0x1a0] sm:$0xff]
        %v998 = vld [vmem:[%s509 + $0x1a8] sm:$0xff]
        %v999 = vld [vmem:[%s509 + $0x1b0] sm:$0xff]
        %v1000 = vld [vmem:[%s509 + $0x1b8] sm:$0xff]
        %v1001 = vld [vmem:[%s509 + $0x1c0] sm:$0xff]
        %v1002 = vld [vmem:[%s509 + $0x1c8] sm:$0xff]
        %v1003 = vld [vmem:[%s509 + $0x1d0] sm:$0xff]
        %v1004 = vld [vmem:[%s509 + $0x1d8] sm:$0xff]
        %v1005 = vld [vmem:[%s509 + $0x1e0] sm:$0xff]
        %v1006 = vld [vmem:[%s509 + $0x1e8] sm:$0xff]
        %v1007 = vld [vmem:[%s509 + $0x1f0] sm:$0xff]
        %v1008 = vld [vmem:[%s509 + $0x1f8] sm:$0xff]
        %v1009 = vld [vmem:[#allocation2] sm:$0xff]
        %v1010 = vld [vmem:[#allocation2 + $0x8] sm:$0xff]
        %v1011 = vld [vmem:[#allocation2 + $0x10] sm:$0xff]
        %v1012 = vld [vmem:[#allocation2 + $0x18] sm:$0xff]
        %v1013 = vld [vmem:[#allocation2 + $0x20] sm:$0xff]
        %v1014 = vld [vmem:[#allocation2 + $0x28] sm:$0xff]
        %v1015 = vld [vmem:[#allocation2 + $0x30] sm:$0xff]
        %v1016 = vld [vmem:[#allocation2 + $0x38] sm:$0xff]
        %v1017 = vld [vmem:[#allocation2 + $0x40] sm:$0xff]
        %v1018 = vld [vmem:[#allocation2 + $0x48] sm:$0xff]
        %v1019 = vld [vmem:[#allocation2 + $0x50] sm:$0xff]
        %v1020 = vld [vmem:[#allocation2 + $0x58] sm:$0xff]
        %v1021 = vld [vmem:[#allocation2 + $0x60] sm:$0xff]
        %v1022 = vld [vmem:[#allocation2 + $0x68] sm:$0xff]
        %v1023 = vld [vmem:[#allocation2 + $0x70] sm:$0xff]
        %v1024 = vld [vmem:[#allocation2 + $0x78] sm:$0xff]
        %v1025 = vld [vmem:[#allocation2 + $0x80] sm:$0xff]
        %v1026 = vld [vmem:[#allocation2 + $0x88] sm:$0xff]
        %v1027 = vld [vmem:[#allocation2 + $0x90] sm:$0xff]
        %v1028 = vld [vmem:[#allocation2 + $0x98] sm:$0xff]
        %v1029 = vld [vmem:[#allocation2 + $0xa0] sm:$0xff]
        %v1030 = vld [vmem:[#allocation2 + $0xa8] sm:$0xff]
        %v1031 = vld [vmem:[#allocation2 + $0xb0] sm:$0xff]
        %v1032 = vld [vmem:[#allocation2 + $0xb8] sm:$0xff]
        %v1033 = vld [vmem:[#allocation2 + $0xc0] sm:$0xff]
        %v1034 = vld [vmem:[#allocation2 + $0xc8] sm:$0xff]
        %v1035 = vld [vmem:[#allocation2 + $0xd0] sm:$0xff]
        %v1036 = vld [vmem:[#allocation2 + $0xd8] sm:$0xff]
        %v1037 = vld [vmem:[#allocation2 + $0xe0] sm:$0xff]
        %v1038 = vld [vmem:[#allocation2 + $0xe8] sm:$0xff]
        %v1039 = vld [vmem:[#allocation2 + $0xf0] sm:$0xff]
        %v1040 = vld [vmem:[#allocation2 + $0xf8] sm:$0xff]
        %v1041 = vld [vmem:[#allocation2 + $0x100] sm:$0xff]
        %v1042 = vld [vmem:[#allocation2 + $0x108] sm:$0xff]
        %v1043 = vld [vmem:[#allocation2 + $0x110] sm:$0xff]
        %v1044 = vld [vmem:[#allocation2 + $0x118] sm:$0xff]
        %v1045 = vld [vmem:[#allocation2 + $0x120] sm:$0xff]
        %v1046 = vld [vmem:[#allocation2 + $0x128] sm:$0xff]
        %v1047 = vld [vmem:[#allocation2 + $0x130] sm:$0xff]
        %v1048 = vld [vmem:[#allocation2 + $0x138] sm:$0xff]
        %v1049 = vld [vmem:[#allocation2 + $0x140] sm:$0xff]
        %v1050 = vld [vmem:[#allocation2 + $0x148] sm:$0xff]
        %v1051 = vld [vmem:[#allocation2 + $0x150] sm:$0xff]
        %v1052 = vld [vmem:[#allocation2 + $0x158] sm:$0xff]
        %v1053 = vld [vmem:[#allocation2 + $0x160] sm:$0xff]
        %v1054 = vld [vmem:[#allocation2 + $0x168] sm:$0xff]
        %v1055 = vld [vmem:[#allocation2 + $0x170] sm:$0xff]
        %v1056 = vld [vmem:[#allocation2 + $0x178] sm:$0xff]
        %v1057 = vld [vmem:[#allocation2 + $0x180] sm:$0xff]
        %v1058 = vld [vmem:[#allocation2 + $0x188] sm:$0xff]
        %v1059 = vld [vmem:[#allocation2 + $0x190] sm:$0xff]
        %v1060 = vld [vmem:[#allocation2 + $0x198] sm:$0xff]
        %v1061 = vld [vmem:[#allocation2 + $0x1a0] sm:$0xff]
        %v1062 = vld [vmem:[#allocation2 + $0x1a8] sm:$0xff]
        %v1063 = vld [vmem:[#allocation2 + $0x1b0] sm:$0xff]
        %v1064 = vld [vmem:[#allocation2 + $0x1b8] sm:$0xff]
        %v1065 = vld [vmem:[#allocation2 + $0x1c0] sm:$0xff]
        %v1066 = vld [vmem:[#allocation2 + $0x1c8] sm:$0xff]
        %v1067 = vld [vmem:[#allocation2 + $0x1d0] sm:$0xff]
        %v1068 = vld [vmem:[#allocation2 + $0x1d8] sm:$0xff]
        %v1069 = vld [vmem:[#allocation2 + $0x1e0] sm:$0xff]
        %v1070 = vld [vmem:[#allocation2 + $0x1e8] sm:$0xff]
        %v1071 = vld [vmem:[#allocation2 + $0x1f0] sm:$0xff]
        %v1072 = vld [vmem:[#allocation2 + $0x1f8] sm:$0xff]
        %v1074 = vsel %vm565, %v1009, 0
        %v1077 = vsel %vm565, %v1010, 0
        %v1080 = vsel %vm565, %v1011, 0
        %v1083 = vsel %vm565, %v1012, 0
        %v1086 = vsel %vm565, %v1013, 0
        %v1089 = vsel %vm565, %v1014, 0
        %v1092 = vsel %vm565, %v1015, 0
        %v1095 = vsel %vm565, %v1016, 0
        %v1098 = vsel %vm565, %v1017, 0
        %v1101 = vsel %vm565, %v1018, 0
        %v1104 = vsel %vm565, %v1019, 0
        %v1107 = vsel %vm565, %v1020, 0
        %v1110 = vsel %vm565, %v1021, 0
        %v1113 = vsel %vm565, %v1022, 0
        %v1116 = vsel %vm565, %v1023, 0
        %v1119 = vsel %vm565, %v1024, 0
        %v1122 = vsel %vm565, %v1025, 0
        %v1125 = vsel %vm565, %v1026, 0
        %v1128 = vsel %vm565, %v1027, 0
        %v1131 = vsel %vm565, %v1028, 0
        %v1134 = vsel %vm565, %v1029, 0
        %v1137 = vsel %vm565, %v1030, 0
        %v1140 = vsel %vm565, %v1031, 0
        %v1143 = vsel %vm565, %v1032, 0
        %v1146 = vsel %vm565, %v1033, 0
        %v1149 = vsel %vm565, %v1034, 0
        %v1152 = vsel %vm565, %v1035, 0
        %v1155 = vsel %vm565, %v1036, 0
        %v1158 = vsel %vm565, %v1037, 0
        %v1161 = vsel %vm565, %v1038, 0
        %v1164 = vsel %vm565, %v1039, 0
        %v1167 = vsel %vm565, %v1040, 0
        %v1170 = vsel %vm565, %v1041, 0
        %v1173 = vsel %vm565, %v1042, 0
        %v1176 = vsel %vm565, %v1043, 0
        %v1179 = vsel %vm565, %v1044, 0
        %v1182 = vsel %vm565, %v1045, 0
        %v1185 = vsel %vm565, %v1046, 0
        %v1188 = vsel %vm565, %v1047, 0
        %v1191 = vsel %vm565, %v1048, 0
        %v1194 = vsel %vm565, %v1049, 0
        %v1197 = vsel %vm565, %v1050, 0
        %v1200 = vsel %vm565, %v1051, 0
        %v1203 = vsel %vm565, %v1052, 0
        %v1206 = vsel %vm565, %v1053, 0
        %v1209 = vsel %vm565, %v1054, 0
        %v1212 = vsel %vm565, %v1055, 0
        %v1215 = vsel %vm565, %v1056, 0
        %v1218 = vsel %vm565, %v1057, 0
        %v1221 = vsel %vm565, %v1058, 0
        %v1224 = vsel %vm565, %v1059, 0
        %v1227 = vsel %vm565, %v1060, 0
        %v1230 = vsel %vm565, %v1061, 0
        %v1233 = vsel %vm565, %v1062, 0
        %v1236 = vsel %vm565, %v1063, 0
        %v1239 = vsel %vm565, %v1064, 0
        %v1242 = vsel %vm565, %v1065, 0
        %v1245 = vsel %vm565, %v1066, 0
        %v1248 = vsel %vm565, %v1067, 0
        %v1251 = vsel %vm565, %v1068, 0
        %v1254 = vsel %vm565, %v1069, 0
        %v1257 = vsel %vm565, %v1070, 0
        %v1260 = vsel %vm565, %v1071, 0
        %v1263 = vsel %vm565, %v1072, 0
        %1265 = vmatpush.msra.mxu0 0.0
        %1266 = vmatpush.msra.mxu0 0.0
        %1267 = vmatpush.msra.mxu0 0.0
        %1268 = vmatpush.msra.mxu0 0.0
        %1269 = vmatpush.msra.mxu0 0.0
        %1270 = vmatpush.msra.mxu0 0.0
        %1271 = vmatpush.msra.mxu0 0.0
        %1272 = vmatpush.msra.mxu0 0.0
        %1273 = vmatpush.msra.mxu0 0.0
        %1274 = vmatpush.msra.mxu0 0.0
        %1275 = vmatpush.msra.mxu0 0.0
        %1276 = vmatpush.msra.mxu0 0.0
        %1277 = vmatpush.msra.mxu0 %v562
        %1278 = vmatpush.msra.mxu0 %v561
        %1279 = vmatpush.msra.mxu0 %v560
        %1280 = vmatpush.msra.mxu0 %v559
        %1281 = vmatmul.f32.gmra.mxu0 %v1074
        %v1282 = vpop.f32.mrf.mxu0
        %v1283 = vadd.f32 0.0, %v1282
        %1284 = vmatmul.f32.gmra.mxu0 %v1077
        %v1285 = vpop.f32.mrf.mxu0
        %v1286 = vadd.f32 0.0, %v1285
        %1287 = vmatmul.f32.gmra.mxu0 %v1080
        %v1288 = vpop.f32.mrf.mxu0
        %v1289 = vadd.f32 0.0, %v1288
        %1290 = vmatmul.f32.gmra.mxu0 %v1083
        %v1291 = vpop.f32.mrf.mxu0
        %v1292 = vadd.f32 0.0, %v1291
        %1293 = vmatmul.f32.gmra.mxu0 %v1086
        %v1294 = vpop.f32.mrf.mxu0
        %v1295 = vadd.f32 0.0, %v1294
        %1296 = vmatmul.f32.gmra.mxu0 %v1089
        %v1297 = vpop.f32.mrf.mxu0
        %v1298 = vadd.f32 0.0, %v1297
        %1299 = vmatmul.f32.gmra.mxu0 %v1092
        %v1300 = vpop.f32.mrf.mxu0
        %v1301 = vadd.f32 0.0, %v1300
        %1302 = vmatmul.f32.gmra.mxu0 %v1095
        %v1303 = vpop.f32.mrf.mxu0
        %v1304 = vadd.f32 0.0, %v1303
        %1305 = vmatmul.f32.gmra.mxu0 %v1098
        %v1306 = vpop.f32.mrf.mxu0
        %v1307 = vadd.f32 0.0, %v1306
        %1308 = vmatmul.f32.gmra.mxu0 %v1101
        %v1309 = vpop.f32.mrf.mxu0
        %v1310 = vadd.f32 0.0, %v1309
        %1311 = vmatmul.f32.gmra.mxu0 %v1104
        %v1312 = vpop.f32.mrf.mxu0
        %v1313 = vadd.f32 0.0, %v1312
        %1314 = vmatmul.f32.gmra.mxu0 %v1107
        %v1315 = vpop.f32.mrf.mxu0
        %v1316 = vadd.f32 0.0, %v1315
        %1317 = vmatmul.f32.gmra.mxu0 %v1110
        %v1318 = vpop.f32.mrf.mxu0
        %v1319 = vadd.f32 0.0, %v1318
        %1320 = vmatmul.f32.gmra.mxu0 %v1113
        %v1321 = vpop.f32.mrf.mxu0
        %v1322 = vadd.f32 0.0, %v1321
        %1323 = vmatmul.f32.gmra.mxu0 %v1116
        %v1324 = vpop.f32.mrf.mxu0
        %v1325 = vadd.f32 0.0, %v1324
        %1326 = vmatmul.f32.gmra.mxu0 %v1119
        %v1327 = vpop.f32.mrf.mxu0
        %v1328 = vadd.f32 0.0, %v1327
        %1329 = vmatmul.f32.gmra.mxu0 %v1122
        %v1330 = vpop.f32.mrf.mxu0
        %v1331 = vadd.f32 0.0, %v1330
        %1332 = vmatmul.f32.gmra.mxu0 %v1125
        %v1333 = vpop.f32.mrf.mxu0
        %v1334 = vadd.f32 0.0, %v1333
        %1335 = vmatmul.f32.gmra.mxu0 %v1128
        %v1336 = vpop.f32.mrf.mxu0
        %v1337 = vadd.f32 0.0, %v1336
        %1338 = vmatmul.f32.gmra.mxu0 %v1131
        %v1339 = vpop.f32.mrf.mxu0
        %v1340 = vadd.f32 0.0, %v1339
        %1341 = vmatmul.f32.gmra.mxu0 %v1134
        %v1342 = vpop.f32.mrf.mxu0
        %v1343 = vadd.f32 0.0, %v1342
        %1344 = vmatmul.f32.gmra.mxu0 %v1137
        %v1345 = vpop.f32.mrf.mxu0
        %v1346 = vadd.f32 0.0, %v1345
        %1347 = vmatmul.f32.gmra.mxu0 %v1140
        %v1348 = vpop.f32.mrf.mxu0
        %v1349 = vadd.f32 0.0, %v1348
        %1350 = vmatmul.f32.gmra.mxu0 %v1143
        %v1351 = vpop.f32.mrf.mxu0
        %v1352 = vadd.f32 0.0, %v1351
        %1353 = vmatmul.f32.gmra.mxu0 %v1146
        %v1354 = vpop.f32.mrf.mxu0
        %v1355 = vadd.f32 0.0, %v1354
        %1356 = vmatmul.f32.gmra.mxu0 %v1149
        %v1357 = vpop.f32.mrf.mxu0
        %v1358 = vadd.f32 0.0, %v1357
        %1359 = vmatmul.f32.gmra.mxu0 %v1152
        %v1360 = vpop.f32.mrf.mxu0
        %v1361 = vadd.f32 0.0, %v1360
        %1362 = vmatmul.f32.gmra.mxu0 %v1155
        %v1363 = vpop.f32.mrf.mxu0
        %v1364 = vadd.f32 0.0, %v1363
        %1365 = vmatmul.f32.gmra.mxu0 %v1158
        %v1366 = vpop.f32.mrf.mxu0
        %v1367 = vadd.f32 0.0, %v1366
        %1368 = vmatmul.f32.gmra.mxu0 %v1161
        %v1369 = vpop.f32.mrf.mxu0
        %v1370 = vadd.f32 0.0, %v1369
        %1371 = vmatmul.f32.gmra.mxu0 %v1164
        %v1372 = vpop.f32.mrf.mxu0
        %v1373 = vadd.f32 0.0, %v1372
        %1374 = vmatmul.f32.gmra.mxu0 %v1167
        %v1375 = vpop.f32.mrf.mxu0
        %v1376 = vadd.f32 0.0, %v1375
        %1377 = vmatmul.f32.gmra.mxu0 %v1170
        %v1378 = vpop.f32.mrf.mxu0
        %v1379 = vadd.f32 0.0, %v1378
        %1380 = vmatmul.f32.gmra.mxu0 %v1173
        %v1381 = vpop.f32.mrf.mxu0
        %v1382 = vadd.f32 0.0, %v1381
        %1383 = vmatmul.f32.gmra.mxu0 %v1176
        %v1384 = vpop.f32.mrf.mxu0
        %v1385 = vadd.f32 0.0, %v1384
        %1386 = vmatmul.f32.gmra.mxu0 %v1179
        %v1387 = vpop.f32.mrf.mxu0
        %v1388 = vadd.f32 0.0, %v1387
        %1389 = vmatmul.f32.gmra.mxu0 %v1182
        %v1390 = vpop.f32.mrf.mxu0
        %v1391 = vadd.f32 0.0, %v1390
        %1392 = vmatmul.f32.gmra.mxu0 %v1185
        %v1393 = vpop.f32.mrf.mxu0
        %v1394 = vadd.f32 0.0, %v1393
        %1395 = vmatmul.f32.gmra.mxu0 %v1188
        %v1396 = vpop.f32.mrf.mxu0
        %v1397 = vadd.f32 0.0, %v1396
        %1398 = vmatmul.f32.gmra.mxu0 %v1191
        %v1399 = vpop.f32.mrf.mxu0
        %v1400 = vadd.f32 0.0, %v1399
        %1401 = vmatmul.f32.gmra.mxu0 %v1194
        %v1402 = vpop.f32.mrf.mxu0
        %v1403 = vadd.f32 0.0, %v1402
        %1404 = vmatmul.f32.gmra.mxu0 %v1197
        %v1405 = vpop.f32.mrf.mxu0
        %v1406 = vadd.f32 0.0, %v1405
        %1407 = vmatmul.f32.gmra.mxu0 %v1200
        %v1408 = vpop.f32.mrf.mxu0
        %v1409 = vadd.f32 0.0, %v1408
        %1410 = vmatmul.f32.gmra.mxu0 %v1203
        %v1411 = vpop.f32.mrf.mxu0
        %v1412 = vadd.f32 0.0, %v1411
        %1413 = vmatmul.f32.gmra.mxu0 %v1206
        %v1414 = vpop.f32.mrf.mxu0
        %v1415 = vadd.f32 0.0, %v1414
        %1416 = vmatmul.f32.gmra.mxu0 %v1209
        %v1417 = vpop.f32.mrf.mxu0
        %v1418 = vadd.f32 0.0, %v1417
        %1419 = vmatmul.f32.gmra.mxu0 %v1212
        %v1420 = vpop.f32.mrf.mxu0
        %v1421 = vadd.f32 0.0, %v1420
        %1422 = vmatmul.f32.gmra.mxu0 %v1215
        %v1423 = vpop.f32.mrf.mxu0
        %v1424 = vadd.f32 0.0, %v1423
        %1425 = vmatmul.f32.gmra.mxu0 %v1218
        %v1426 = vpop.f32.mrf.mxu0
        %v1427 = vadd.f32 0.0, %v1426
        %1428 = vmatmul.f32.gmra.mxu0 %v1221
        %v1429 = vpop.f32.mrf.mxu0
        %v1430 = vadd.f32 0.0, %v1429
        %1431 = vmatmul.f32.gmra.mxu0 %v1224
        %v1432 = vpop.f32.mrf.mxu0
        %v1433 = vadd.f32 0.0, %v1432
        %1434 = vmatmul.f32.gmra.mxu0 %v1227
        %v1435 = vpop.f32.mrf.mxu0
        %v1436 = vadd.f32 0.0, %v1435
        %1437 = vmatmul.f32.gmra.mxu0 %v1230
        %v1438 = vpop.f32.mrf.mxu0
        %v1439 = vadd.f32 0.0, %v1438
        %1440 = vmatmul.f32.gmra.mxu0 %v1233
        %v1441 = vpop.f32.mrf.mxu0
        %v1442 = vadd.f32 0.0, %v1441
        %1443 = vmatmul.f32.gmra.mxu0 %v1236
        %v1444 = vpop.f32.mrf.mxu0
        %v1445 = vadd.f32 0.0, %v1444
        %1446 = vmatmul.f32.gmra.mxu0 %v1239
        %v1447 = vpop.f32.mrf.mxu0
        %v1448 = vadd.f32 0.0, %v1447
        %1449 = vmatmul.f32.gmra.mxu0 %v1242
        %v1450 = vpop.f32.mrf.mxu0
        %v1451 = vadd.f32 0.0, %v1450
        %1452 = vmatmul.f32.gmra.mxu0 %v1245
        %v1453 = vpop.f32.mrf.mxu0
        %v1454 = vadd.f32 0.0, %v1453
        %1455 = vmatmul.f32.gmra.mxu0 %v1248
        %v1456 = vpop.f32.mrf.mxu0
        %v1457 = vadd.f32 0.0, %v1456
        %1458 = vmatmul.f32.gmra.mxu0 %v1251
        %v1459 = vpop.f32.mrf.mxu0
        %v1460 = vadd.f32 0.0, %v1459
        %1461 = vmatmul.f32.gmra.mxu0 %v1254
        %v1462 = vpop.f32.mrf.mxu0
        %v1463 = vadd.f32 0.0, %v1462
        %1464 = vmatmul.f32.gmra.mxu0 %v1257
        %v1465 = vpop.f32.mrf.mxu0
        %v1466 = vadd.f32 0.0, %v1465
        %1467 = vmatmul.f32.gmra.mxu0 %v1260
        %v1468 = vpop.f32.mrf.mxu0
        %v1469 = vadd.f32 0.0, %v1468
        %1470 = vmatmul.f32.gmra.mxu0 %v1263
        %v1471 = vpop.f32.mrf.mxu0
        %v1472 = vadd.f32 0.0, %v1471
        %1473 = vdwg.mxu0
        %v1475 = vsel %vm565, %v945, 0
        %v1478 = vsel %vm565, %v946, 0
        %v1481 = vsel %vm565, %v947, 0
        %v1484 = vsel %vm565, %v948, 0
        %v1487 = vsel %vm565, %v949, 0
        %v1490 = vsel %vm565, %v950, 0
        %v1493 = vsel %vm565, %v951, 0
        %v1496 = vsel %vm565, %v952, 0
        %v1499 = vsel %vm565, %v953, 0
        %v1502 = vsel %vm565, %v954, 0
        %v1505 = vsel %vm565, %v955, 0
        %v1508 = vsel %vm565, %v956, 0
        %v1511 = vsel %vm565, %v957, 0
        %v1514 = vsel %vm565, %v958, 0
        %v1517 = vsel %vm565, %v959, 0
        %v1520 = vsel %vm565, %v960, 0
        %v1523 = vsel %vm565, %v961, 0
        %v1526 = vsel %vm565, %v962, 0
        %v1529 = vsel %vm565, %v963, 0
        %v1532 = vsel %vm565, %v964, 0
        %v1535 = vsel %vm565, %v965, 0
        %v1538 = vsel %vm565, %v966, 0
        %v1541 = vsel %vm565, %v967, 0
        %v1544 = vsel %vm565, %v968, 0
        %v1547 = vsel %vm565, %v969, 0
        %v1550 = vsel %vm565, %v970, 0
        %v1553 = vsel %vm565, %v971, 0
        %v1556 = vsel %vm565, %v972, 0
        %v1559 = vsel %vm565, %v973, 0
        %v1562 = vsel %vm565, %v974, 0
        %v1565 = vsel %vm565, %v975, 0
        %v1568 = vsel %vm565, %v976, 0
        %v1571 = vsel %vm565, %v977, 0
        %v1574 = vsel %vm565, %v978, 0
        %v1577 = vsel %vm565, %v979, 0
        %v1580 = vsel %vm565, %v980, 0
        %v1583 = vsel %vm565, %v981, 0
        %v1586 = vsel %vm565, %v982, 0
        %v1589 = vsel %vm565, %v983, 0
        %v1592 = vsel %vm565, %v984, 0
        %v1595 = vsel %vm565, %v985, 0
        %v1598 = vsel %vm565, %v986, 0
        %v1601 = vsel %vm565, %v987, 0
        %v1604 = vsel %vm565, %v988, 0
        %v1607 = vsel %vm565, %v989, 0
        %v1610 = vsel %vm565, %v990, 0
        %v1613 = vsel %vm565, %v991, 0
        %v1616 = vsel %vm565, %v992, 0
        %v1619 = vsel %vm565, %v993, 0
        %v1622 = vsel %vm565, %v994, 0
        %v1625 = vsel %vm565, %v995, 0
        %v1628 = vsel %vm565, %v996, 0
        %v1631 = vsel %vm565, %v997, 0
        %v1634 = vsel %vm565, %v998, 0
        %v1637 = vsel %vm565, %v999, 0
        %v1640 = vsel %vm565, %v1000, 0
        %v1643 = vsel %vm565, %v1001, 0
        %v1646 = vsel %vm565, %v1002, 0
        %v1649 = vsel %vm565, %v1003, 0
        %v1652 = vsel %vm565, %v1004, 0
        %v1655 = vsel %vm565, %v1005, 0
        %v1658 = vsel %vm565, %v1006, 0
        %v1661 = vsel %vm565, %v1007, 0
        %v1664 = vsel %vm565, %v1008, 0
        %1666 = vmatpush.msra.mxu0 0.0
        %1667 = vmatpush.msra.mxu0 0.0
        %1668 = vmatpush.msra.mxu0 0.0
        %1669 = vmatpush.msra.mxu0 0.0
        %1670 = vmatpush.msra.mxu0 0.0
        %1671 = vmatpush.msra.mxu0 0.0
        %1672 = vmatpush.msra.mxu0 0.0
        %1673 = vmatpush.msra.mxu0 0.0
        %1674 = vmatpush.msra.mxu0 0.0
        %1675 = vmatpush.msra.mxu0 0.0
        %1676 = vmatpush.msra.mxu0 0.0
        %1677 = vmatpush.msra.mxu0 0.0
        %1678 = vmatpush.msra.mxu0 %v558
        %1679 = vmatpush.msra.mxu0 %v557
        %1680 = vmatpush.msra.mxu0 %v556
        %1681 = vmatpush.msra.mxu0 %v555
        %1682 = vmatmul.f32.gmra.mxu0 %v1475
        %v1683 = vpop.f32.mrf.mxu0
        %v1684 = vadd.f32 %v1283, %v1683
        %1685 = vmatmul.f32.gmra.mxu0 %v1478
        %v1686 = vpop.f32.mrf.mxu0
        %v1687 = vadd.f32 %v1286, %v1686
        %1688 = vmatmul.f32.gmra.mxu0 %v1481
        %v1689 = vpop.f32.mrf.mxu0
        %v1690 = vadd.f32 %v1289, %v1689
        %1691 = vmatmul.f32.gmra.mxu0 %v1484
        %v1692 = vpop.f32.mrf.mxu0
        %v1693 = vadd.f32 %v1292, %v1692
        %1694 = vmatmul.f32.gmra.mxu0 %v1487
        %v1695 = vpop.f32.mrf.mxu0
        %v1696 = vadd.f32 %v1295, %v1695
        %1697 = vmatmul.f32.gmra.mxu0 %v1490
        %v1698 = vpop.f32.mrf.mxu0
        %v1699 = vadd.f32 %v1298, %v1698
        %1700 = vmatmul.f32.gmra.mxu0 %v1493
        %v1701 = vpop.f32.mrf.mxu0
        %v1702 = vadd.f32 %v1301, %v1701
        %1703 = vmatmul.f32.gmra.mxu0 %v1496
        %v1704 = vpop.f32.mrf.mxu0
        %v1705 = vadd.f32 %v1304, %v1704
        %1706 = vmatmul.f32.gmra.mxu0 %v1499
        %v1707 = vpop.f32.mrf.mxu0
        %v1708 = vadd.f32 %v1307, %v1707
        %1709 = vmatmul.f32.gmra.mxu0 %v1502
        %v1710 = vpop.f32.mrf.mxu0
        %v1711 = vadd.f32 %v1310, %v1710
        %1712 = vmatmul.f32.gmra.mxu0 %v1505
        %v1713 = vpop.f32.mrf.mxu0
        %v1714 = vadd.f32 %v1313, %v1713
        %1715 = vmatmul.f32.gmra.mxu0 %v1508
        %v1716 = vpop.f32.mrf.mxu0
        %v1717 = vadd.f32 %v1316, %v1716
        %1718 = vmatmul.f32.gmra.mxu0 %v1511
        %v1719 = vpop.f32.mrf.mxu0
        %v1720 = vadd.f32 %v1319, %v1719
        %1721 = vmatmul.f32.gmra.mxu0 %v1514
        %v1722 = vpop.f32.mrf.mxu0
        %v1723 = vadd.f32 %v1322, %v1722
        %1724 = vmatmul.f32.gmra.mxu0 %v1517
        %v1725 = vpop.f32.mrf.mxu0
        %v1726 = vadd.f32 %v1325, %v1725
        %1727 = vmatmul.f32.gmra.mxu0 %v1520
        %v1728 = vpop.f32.mrf.mxu0
        %v1729 = vadd.f32 %v1328, %v1728
        %1730 = vmatmul.f32.gmra.mxu0 %v1523
        %v1731 = vpop.f32.mrf.mxu0
        %v1732 = vadd.f32 %v1331, %v1731
        %1733 = vmatmul.f32.gmra.mxu0 %v1526
        %v1734 = vpop.f32.mrf.mxu0
        %v1735 = vadd.f32 %v1334, %v1734
        %1736 = vmatmul.f32.gmra.mxu0 %v1529
        %v1737 = vpop.f32.mrf.mxu0
        %v1738 = vadd.f32 %v1337, %v1737
        %1739 = vmatmul.f32.gmra.mxu0 %v1532
        %v1740 = vpop.f32.mrf.mxu0
        %v1741 = vadd.f32 %v1340, %v1740
        %1742 = vmatmul.f32.gmra.mxu0 %v1535
        %v1743 = vpop.f32.mrf.mxu0
        %v1744 = vadd.f32 %v1343, %v1743
        %1745 = vmatmul.f32.gmra.mxu0 %v1538
        %v1746 = vpop.f32.mrf.mxu0
        %v1747 = vadd.f32 %v1346, %v1746
        %1748 = vmatmul.f32.gmra.mxu0 %v1541
        %v1749 = vpop.f32.mrf.mxu0
        %v1750 = vadd.f32 %v1349, %v1749
        %1751 = vmatmul.f32.gmra.mxu0 %v1544
        %v1752 = vpop.f32.mrf.mxu0
        %v1753 = vadd.f32 %v1352, %v1752
        %1754 = vmatmul.f32.gmra.mxu0 %v1547
        %v1755 = vpop.f32.mrf.mxu0
        %v1756 = vadd.f32 %v1355, %v1755
        %1757 = vmatmul.f32.gmra.mxu0 %v1550
        %v1758 = vpop.f32.mrf.mxu0
        %v1759 = vadd.f32 %v1358, %v1758
        %1760 = vmatmul.f32.gmra.mxu0 %v1553
        %v1761 = vpop.f32.mrf.mxu0
        %v1762 = vadd.f32 %v1361, %v1761
        %1763 = vmatmul.f32.gmra.mxu0 %v1556
        %v1764 = vpop.f32.mrf.mxu0
        %v1765 = vadd.f32 %v1364, %v1764
        %1766 = vmatmul.f32.gmra.mxu0 %v1559
        %v1767 = vpop.f32.mrf.mxu0
        %v1768 = vadd.f32 %v1367, %v1767
        %1769 = vmatmul.f32.gmra.mxu0 %v1562
        %v1770 = vpop.f32.mrf.mxu0
        %v1771 = vadd.f32 %v1370, %v1770
        %1772 = vmatmul.f32.gmra.mxu0 %v1565
        %v1773 = vpop.f32.mrf.mxu0
        %v1774 = vadd.f32 %v1373, %v1773
        %1775 = vmatmul.f32.gmra.mxu0 %v1568
        %v1776 = vpop.f32.mrf.mxu0
        %v1777 = vadd.f32 %v1376, %v1776
        %1778 = vmatmul.f32.gmra.mxu0 %v1571
        %v1779 = vpop.f32.mrf.mxu0
        %v1780 = vadd.f32 %v1379, %v1779
        %1781 = vmatmul.f32.gmra.mxu0 %v1574
        %v1782 = vpop.f32.mrf.mxu0
        %v1783 = vadd.f32 %v1382, %v1782
        %1784 = vmatmul.f32.gmra.mxu0 %v1577
        %v1785 = vpop.f32.mrf.mxu0
        %v1786 = vadd.f32 %v1385, %v1785
        %1787 = vmatmul.f32.gmra.mxu0 %v1580
        %v1788 = vpop.f32.mrf.mxu0
        %v1789 = vadd.f32 %v1388, %v1788
        %1790 = vmatmul.f32.gmra.mxu0 %v1583
        %v1791 = vpop.f32.mrf.mxu0
        %v1792 = vadd.f32 %v1391, %v1791
        %1793 = vmatmul.f32.gmra.mxu0 %v1586
        %v1794 = vpop.f32.mrf.mxu0
        %v1795 = vadd.f32 %v1394, %v1794
        %1796 = vmatmul.f32.gmra.mxu0 %v1589
        %v1797 = vpop.f32.mrf.mxu0
        %v1798 = vadd.f32 %v1397, %v1797
        %1799 = vmatmul.f32.gmra.mxu0 %v1592
        %v1800 = vpop.f32.mrf.mxu0
        %v1801 = vadd.f32 %v1400, %v1800
        %1802 = vmatmul.f32.gmra.mxu0 %v1595
        %v1803 = vpop.f32.mrf.mxu0
        %v1804 = vadd.f32 %v1403, %v1803
        %1805 = vmatmul.f32.gmra.mxu0 %v1598
        %v1806 = vpop.f32.mrf.mxu0
        %v1807 = vadd.f32 %v1406, %v1806
        %1808 = vmatmul.f32.gmra.mxu0 %v1601
        %v1809 = vpop.f32.mrf.mxu0
        %v1810 = vadd.f32 %v1409, %v1809
        %1811 = vmatmul.f32.gmra.mxu0 %v1604
        %v1812 = vpop.f32.mrf.mxu0
        %v1813 = vadd.f32 %v1412, %v1812
        %1814 = vmatmul.f32.gmra.mxu0 %v1607
        %v1815 = vpop.f32.mrf.mxu0
        %v1816 = vadd.f32 %v1415, %v1815
        %1817 = vmatmul.f32.gmra.mxu0 %v1610
        %v1818 = vpop.f32.mrf.mxu0
        %v1819 = vadd.f32 %v1418, %v1818
        %1820 = vmatmul.f32.gmra.mxu0 %v1613
        %v1821 = vpop.f32.mrf.mxu0
        %v1822 = vadd.f32 %v1421, %v1821
        %1823 = vmatmul.f32.gmra.mxu0 %v1616
        %v1824 = vpop.f32.mrf.mxu0
        %v1825 = vadd.f32 %v1424, %v1824
        %1826 = vmatmul.f32.gmra.mxu0 %v1619
        %v1827 = vpop.f32.mrf.mxu0
        %v1828 = vadd.f32 %v1427, %v1827
        %1829 = vmatmul.f32.gmra.mxu0 %v1622
        %v1830 = vpop.f32.mrf.mxu0
        %v1831 = vadd.f32 %v1430, %v1830
        %1832 = vmatmul.f32.gmra.mxu0 %v1625
        %v1833 = vpop.f32.mrf.mxu0
        %v1834 = vadd.f32 %v1433, %v1833
        %1835 = vmatmul.f32.gmra.mxu0 %v1628
        %v1836 = vpop.f32.mrf.mxu0
        %v1837 = vadd.f32 %v1436, %v1836
        %1838 = vmatmul.f32.gmra.mxu0 %v1631
        %v1839 = vpop.f32.mrf.mxu0
        %v1840 = vadd.f32 %v1439, %v1839
        %1841 = vmatmul.f32.gmra.mxu0 %v1634
        %v1842 = vpop.f32.mrf.mxu0
        %v1843 = vadd.f32 %v1442, %v1842
        %1844 = vmatmul.f32.gmra.mxu0 %v1637
        %v1845 = vpop.f32.mrf.mxu0
        %v1846 = vadd.f32 %v1445, %v1845
        %1847 = vmatmul.f32.gmra.mxu0 %v1640
        %v1848 = vpop.f32.mrf.mxu0
        %v1849 = vadd.f32 %v1448, %v1848
        %1850 = vmatmul.f32.gmra.mxu0 %v1643
        %v1851 = vpop.f32.mrf.mxu0
        %v1852 = vadd.f32 %v1451, %v1851
        %1853 = vmatmul.f32.gmra.mxu0 %v1646
        %v1854 = vpop.f32.mrf.mxu0
        %v1855 = vadd.f32 %v1454, %v1854
        %1856 = vmatmul.f32.gmra.mxu0 %v1649
        %v1857 = vpop.f32.mrf.mxu0
        %v1858 = vadd.f32 %v1457, %v1857
        %1859 = vmatmul.f32.gmra.mxu0 %v1652
        %v1860 = vpop.f32.mrf.mxu0
        %v1861 = vadd.f32 %v1460, %v1860
        %1862 = vmatmul.f32.gmra.mxu0 %v1655
        %v1863 = vpop.f32.mrf.mxu0
        %v1864 = vadd.f32 %v1463, %v1863
        %1865 = vmatmul.f32.gmra.mxu0 %v1658
        %v1866 = vpop.f32.mrf.mxu0
        %v1867 = vadd.f32 %v1466, %v1866
        %1868 = vmatmul.f32.gmra.mxu0 %v1661
        %v1869 = vpop.f32.mrf.mxu0
        %v1870 = vadd.f32 %v1469, %v1869
        %1871 = vmatmul.f32.gmra.mxu0 %v1664
        %v1872 = vpop.f32.mrf.mxu0
        %v1873 = vadd.f32 %v1472, %v1872
        %1874 = vdwg.mxu0
        %v1875 = vld [vmem:[%s554] sm:$0xff]
        %v1876 = vadd.f32 %v1684, %v1875
        %v1877 = vadd.f32 %v1687, %v1875
        %v1878 = vadd.f32 %v1690, %v1875
        %v1879 = vadd.f32 %v1693, %v1875
        %v1880 = vadd.f32 %v1696, %v1875
        %v1881 = vadd.f32 %v1699, %v1875
        %v1882 = vadd.f32 %v1702, %v1875
        %v1883 = vadd.f32 %v1705, %v1875
        %v1884 = vadd.f32 %v1708, %v1875
        %v1885 = vadd.f32 %v1711, %v1875
        %v1886 = vadd.f32 %v1714, %v1875
        %v1887 = vadd.f32 %v1717, %v1875
        %v1888 = vadd.f32 %v1720, %v1875
        %v1889 = vadd.f32 %v1723, %v1875
        %v1890 = vadd.f32 %v1726, %v1875
        %v1891 = vadd.f32 %v1729, %v1875
        %v1892 = vadd.f32 %v1732, %v1875
        %v1893 = vadd.f32 %v1735, %v1875
        %v1894 = vadd.f32 %v1738, %v1875
        %v1895 = vadd.f32 %v1741, %v1875
        %v1896 = vadd.f32 %v1744, %v1875
        %v1897 = vadd.f32 %v1747, %v1875
        %v1898 = vadd.f32 %v1750, %v1875
        %v1899 = vadd.f32 %v1753, %v1875
        %v1900 = vadd.f32 %v1756, %v1875
        %v1901 = vadd.f32 %v1759, %v1875
        %v1902 = vadd.f32 %v1762, %v1875
        %v1903 = vadd.f32 %v1765, %v1875
        %v1904 = vadd.f32 %v1768, %v1875
        %v1905 = vadd.f32 %v1771, %v1875
        %v1906 = vadd.f32 %v1774, %v1875
        %v1907 = vadd.f32 %v1777, %v1875
        %v1908 = vadd.f32 %v1780, %v1875
        %v1909 = vadd.f32 %v1783, %v1875
        %v1910 = vadd.f32 %v1786, %v1875
        %v1911 = vadd.f32 %v1789, %v1875
        %v1912 = vadd.f32 %v1792, %v1875
        %v1913 = vadd.f32 %v1795, %v1875
        %v1914 = vadd.f32 %v1798, %v1875
        %v1915 = vadd.f32 %v1801, %v1875
        %v1916 = vadd.f32 %v1804, %v1875
        %v1917 = vadd.f32 %v1807, %v1875
        %v1918 = vadd.f32 %v1810, %v1875
        %v1919 = vadd.f32 %v1813, %v1875
        %v1920 = vadd.f32 %v1816, %v1875
        %v1921 = vadd.f32 %v1819, %v1875
        %v1922 = vadd.f32 %v1822, %v1875
        %v1923 = vadd.f32 %v1825, %v1875
        %v1924 = vadd.f32 %v1828, %v1875
        %v1925 = vadd.f32 %v1831, %v1875
        %v1926 = vadd.f32 %v1834, %v1875
        %v1927 = vadd.f32 %v1837, %v1875
        %v1928 = vadd.f32 %v1840, %v1875
        %v1929 = vadd.f32 %v1843, %v1875
        %v1930 = vadd.f32 %v1846, %v1875
        %v1931 = vadd.f32 %v1849, %v1875
        %v1932 = vadd.f32 %v1852, %v1875
        %v1933 = vadd.f32 %v1855, %v1875
        %v1934 = vadd.f32 %v1858, %v1875
        %v1935 = vadd.f32 %v1861, %v1875
        %v1936 = vadd.f32 %v1864, %v1875
        %v1937 = vadd.f32 %v1867, %v1875
        %v1938 = vadd.f32 %v1870, %v1875
        %v1939 = vadd.f32 %v1873, %v1875
        %v1940 = vtanh.pop %v1876
        %v1941 = vtanh.pop %v1877
        %v1942 = vtanh.pop %v1878
        %v1943 = vtanh.pop %v1879
        %v1944 = vtanh.pop %v1880
        %v1945 = vtanh.pop %v1881
        %v1946 = vtanh.pop %v1882
        %v1947 = vtanh.pop %v1883
        %v1948 = vtanh.pop %v1884
        %v1949 = vtanh.pop %v1885
        %v1950 = vtanh.pop %v1886
        %v1951 = vtanh.pop %v1887
        %v1952 = vtanh.pop %v1888
        %v1953 = vtanh.pop %v1889
        %v1954 = vtanh.pop %v1890
        %v1955 = vtanh.pop %v1891
        %v1956 = vtanh.pop %v1892
        %v1957 = vtanh.pop %v1893
        %v1958 = vtanh.pop %v1894
        %v1959 = vtanh.pop %v1895
        %v1960 = vtanh.pop %v1896
        %v1961 = vtanh.pop %v1897
        %v1962 = vtanh.pop %v1898
        %v1963 = vtanh.pop %v1899
        %v1964 = vtanh.pop %v1900
        %v1965 = vtanh.pop %v1901
        %v1966 = vtanh.pop %v1902
        %v1967 = vtanh.pop %v1903
        %v1968 = vtanh.pop %v1904
        %v1969 = vtanh.pop %v1905
        %v1970 = vtanh.pop %v1906
        %v1971 = vtanh.pop %v1907
        %v1972 = vtanh.pop %v1908
        %v1973 = vtanh.pop %v1909
        %v1974 = vtanh.pop %v1910
        %v1975 = vtanh.pop %v1911
        %v1976 = vtanh.pop %v1912
        %v1977 = vtanh.pop %v1913
        %v1978 = vtanh.pop %v1914
        %v1979 = vtanh.pop %v1915
        %v1980 = vtanh.pop %v1916
        %v1981 = vtanh.pop %v1917
        %v1982 = vtanh.pop %v1918
        %v1983 = vtanh.pop %v1919
        %v1984 = vtanh.pop %v1920
        %v1985 = vtanh.pop %v1921
        %v1986 = vtanh.pop %v1922
        %v1987 = vtanh.pop %v1923
        %v1988 = vtanh.pop %v1924
        %v1989 = vtanh.pop %v1925
        %v1990 = vtanh.pop %v1926
        %v1991 = vtanh.pop %v1927
        %v1992 = vtanh.pop %v1928
        %v1993 = vtanh.pop %v1929
        %v1994 = vtanh.pop %v1930
        %v1995 = vtanh.pop %v1931
        %v1996 = vtanh.pop %v1932
        %v1997 = vtanh.pop %v1933
        %v1998 = vtanh.pop %v1934
        %v1999 = vtanh.pop %v1935
        %v2000 = vtanh.pop %v1936
        %v2001 = vtanh.pop %v1937
        %v2002 = vtanh.pop %v1938
        %v2003 = vtanh.pop %v1939
        %v2004 = vperm.slane %v563, 0
        %v2005 = vmul.f32 %v1940, %v2004
        %v2006 = vmul.f32 %v1941, %v2004
        %v2007 = vmul.f32 %v1942, %v2004
        %v2008 = vmul.f32 %v1943, %v2004
        %v2009 = vmul.f32 %v1944, %v2004
        %v2010 = vmul.f32 %v1945, %v2004
        %v2011 = vmul.f32 %v1946, %v2004
        %v2012 = vmul.f32 %v1947, %v2004
        %v2013 = vmul.f32 %v1948, %v2004
        %v2014 = vmul.f32 %v1949, %v2004
        %v2015 = vmul.f32 %v1950, %v2004
        %v2016 = vmul.f32 %v1951, %v2004
        %v2017 = vmul.f32 %v1952, %v2004
        %v2018 = vmul.f32 %v1953, %v2004
        %v2019 = vmul.f32 %v1954, %v2004
        %v2020 = vmul.f32 %v1955, %v2004
        %v2021 = vmul.f32 %v1956, %v2004
        %v2022 = vmul.f32 %v1957, %v2004
        %v2023 = vmul.f32 %v1958, %v2004
        %v2024 = vmul.f32 %v1959, %v2004
        %v2025 = vmul.f32 %v1960, %v2004
        %v2026 = vmul.f32 %v1961, %v2004
        %v2027 = vmul.f32 %v1962, %v2004
        %v2028 = vmul.f32 %v1963, %v2004
        %v2029 = vmul.f32 %v1964, %v2004
        %v2030 = vmul.f32 %v1965, %v2004
        %v2031 = vmul.f32 %v1966, %v2004
        %v2032 = vmul.f32 %v1967, %v2004
        %v2033 = vmul.f32 %v1968, %v2004
        %v2034 = vmul.f32 %v1969, %v2004
        %v2035 = vmul.f32 %v1970, %v2004
        %v2036 = vmul.f32 %v1971, %v2004
        %v2037 = vmul.f32 %v1972, %v2004
        %v2038 = vmul.f32 %v1973, %v2004
        %v2039 = vmul.f32 %v1974, %v2004
        %v2040 = vmul.f32 %v1975, %v2004
        %v2041 = vmul.f32 %v1976, %v2004
        %v2042 = vmul.f32 %v1977, %v2004
        %v2043 = vmul.f32 %v1978, %v2004
        %v2044 = vmul.f32 %v1979, %v2004
        %v2045 = vmul.f32 %v1980, %v2004
        %v2046 = vmul.f32 %v1981, %v2004
        %v2047 = vmul.f32 %v1982, %v2004
        %v2048 = vmul.f32 %v1983, %v2004
        %v2049 = vmul.f32 %v1984, %v2004
        %v2050 = vmul.f32 %v1985, %v2004
        %v2051 = vmul.f32 %v1986, %v2004
        %v2052 = vmul.f32 %v1987, %v2004
        %v2053 = vmul.f32 %v1988, %v2004
        %v2054 = vmul.f32 %v1989, %v2004
        %v2055 = vmul.f32 %v1990, %v2004
        %v2056 = vmul.f32 %v1991, %v2004
        %v2057 = vmul.f32 %v1992, %v2004
        %v2058 = vmul.f32 %v1993, %v2004
        %v2059 = vmul.f32 %v1994, %v2004
        %v2060 = vmul.f32 %v1995, %v2004
        %v2061 = vmul.f32 %v1996, %v2004
        %v2062 = vmul.f32 %v1997, %v2004
        %v2063 = vmul.f32 %v1998, %v2004
        %v2064 = vmul.f32 %v1999, %v2004
        %v2065 = vmul.f32 %v2000, %v2004
        %v2066 = vmul.f32 %v2001, %v2004
        %v2067 = vmul.f32 %v2002, %v2004
        %v2068 = vmul.f32 %v2003, %v2004
        %v2069 = vsel %vm565, %v2005, 0.0
        %2070 = vadd.xlane.f32.xlu0 %v2069
        %v2071 = vpop.xlane.xlu0 %2070
        %v2072 = vsel %vm565, %v2006, 0.0
        %2073 = vadd.xlane.f32.xlu0 %v2072
        %v2074 = vpop.xlane.xlu0 %2073
        %v2075 = vsel %vm565, %v2007, 0.0
        %2076 = vadd.xlane.f32.xlu0 %v2075
        %v2077 = vpop.xlane.xlu0 %2076
        %v2078 = vsel %vm565, %v2008, 0.0
        %2079 = vadd.xlane.f32.xlu0 %v2078
        %v2080 = vpop.xlane.xlu0 %2079
        %v2081 = vsel %vm565, %v2009, 0.0
        %2082 = vadd.xlane.f32.xlu0 %v2081
        %v2083 = vpop.xlane.xlu0 %2082
        %v2084 = vsel %vm565, %v2010, 0.0
        %2085 = vadd.xlane.f32.xlu0 %v2084
        %v2086 = vpop.xlane.xlu0 %2085
        %v2087 = vsel %vm565, %v2011, 0.0
        %2088 = vadd.xlane.f32.xlu0 %v2087
        %v2089 = vpop.xlane.xlu0 %2088
        %v2090 = vsel %vm565, %v2012, 0.0
        %2091 = vadd.xlane.f32.xlu0 %v2090
        %v2092 = vpop.xlane.xlu0 %2091
        %v2093 = vsel %vm565, %v2013, 0.0
        %2094 = vadd.xlane.f32.xlu0 %v2093
        %v2095 = vpop.xlane.xlu0 %2094
        %v2096 = vsel %vm565, %v2014, 0.0
        %2097 = vadd.xlane.f32.xlu0 %v2096
        %v2098 = vpop.xlane.xlu0 %2097
        %v2099 = vsel %vm565, %v2015, 0.0
        %2100 = vadd.xlane.f32.xlu0 %v2099
        %v2101 = vpop.xlane.xlu0 %2100
        %v2102 = vsel %vm565, %v2016, 0.0
        %2103 = vadd.xlane.f32.xlu0 %v2102
        %v2104 = vpop.xlane.xlu0 %2103
        %v2105 = vsel %vm565, %v2017, 0.0
        %2106 = vadd.xlane.f32.xlu0 %v2105
        %v2107 = vpop.xlane.xlu0 %2106
        %v2108 = vsel %vm565, %v2018, 0.0
        %2109 = vadd.xlane.f32.xlu0 %v2108
        %v2110 = vpop.xlane.xlu0 %2109
        %v2111 = vsel %vm565, %v2019, 0.0
        %2112 = vadd.xlane.f32.xlu0 %v2111
        %v2113 = vpop.xlane.xlu0 %2112
        %v2114 = vsel %vm565, %v2020, 0.0
        %2115 = vadd.xlane.f32.xlu0 %v2114
        %v2116 = vpop.xlane.xlu0 %2115
        %v2117 = vsel %vm565, %v2021, 0.0
        %2118 = vadd.xlane.f32.xlu0 %v2117
        %v2119 = vpop.xlane.xlu0 %2118
        %v2120 = vsel %vm565, %v2022, 0.0
        %2121 = vadd.xlane.f32.xlu0 %v2120
        %v2122 = vpop.xlane.xlu0 %2121
        %v2123 = vsel %vm565, %v2023, 0.0
        %2124 = vadd.xlane.f32.xlu0 %v2123
        %v2125 = vpop.xlane.xlu0 %2124
        %v2126 = vsel %vm565, %v2024, 0.0
        %2127 = vadd.xlane.f32.xlu0 %v2126
        %v2128 = vpop.xlane.xlu0 %2127
        %v2129 = vsel %vm565, %v2025, 0.0
        %2130 = vadd.xlane.f32.xlu0 %v2129
        %v2131 = vpop.xlane.xlu0 %2130
        %v2132 = vsel %vm565, %v2026, 0.0
        %2133 = vadd.xlane.f32.xlu0 %v2132
        %v2134 = vpop.xlane.xlu0 %2133
        %v2135 = vsel %vm565, %v2027, 0.0
        %2136 = vadd.xlane.f32.xlu0 %v2135
        %v2137 = vpop.xlane.xlu0 %2136
        %v2138 = vsel %vm565, %v2028, 0.0
        %2139 = vadd.xlane.f32.xlu0 %v2138
        %v2140 = vpop.xlane.xlu0 %2139
        %v2141 = vsel %vm565, %v2029, 0.0
        %2142 = vadd.xlane.f32.xlu0 %v2141
        %v2143 = vpop.xlane.xlu0 %2142
        %v2144 = vsel %vm565, %v2030, 0.0
        %2145 = vadd.xlane.f32.xlu0 %v2144
        %v2146 = vpop.xlane.xlu0 %2145
        %v2147 = vsel %vm565, %v2031, 0.0
        %2148 = vadd.xlane.f32.xlu0 %v2147
        %v2149 = vpop.xlane.xlu0 %2148
        %v2150 = vsel %vm565, %v2032, 0.0
        %2151 = vadd.xlane.f32.xlu0 %v2150
        %v2152 = vpop.xlane.xlu0 %2151
        %v2153 = vsel %vm565, %v2033, 0.0
        %2154 = vadd.xlane.f32.xlu0 %v2153
        %v2155 = vpop.xlane.xlu0 %2154
        %v2156 = vsel %vm565, %v2034, 0.0
        %2157 = vadd.xlane.f32.xlu0 %v2156
        %v2158 = vpop.xlane.xlu0 %2157
        %v2159 = vsel %vm565, %v2035, 0.0
        %2160 = vadd.xlane.f32.xlu0 %v2159
        %v2161 = vpop.xlane.xlu0 %2160
        %v2162 = vsel %vm565, %v2036, 0.0
        %2163 = vadd.xlane.f32.xlu0 %v2162
        %v2164 = vpop.xlane.xlu0 %2163
        %v2165 = vsel %vm565, %v2037, 0.0
        %2166 = vadd.xlane.f32.xlu0 %v2165
        %v2167 = vpop.xlane.xlu0 %2166
        %v2168 = vsel %vm565, %v2038, 0.0
        %2169 = vadd.xlane.f32.xlu0 %v2168
        %v2170 = vpop.xlane.xlu0 %2169
        %v2171 = vsel %vm565, %v2039, 0.0
        %2172 = vadd.xlane.f32.xlu0 %v2171
        %v2173 = vpop.xlane.xlu0 %2172
        %v2174 = vsel %vm565, %v2040, 0.0
        %2175 = vadd.xlane.f32.xlu0 %v2174
        %v2176 = vpop.xlane.xlu0 %2175
        %v2177 = vsel %vm565, %v2041, 0.0
        %2178 = vadd.xlane.f32.xlu0 %v2177
        %v2179 = vpop.xlane.xlu0 %2178
        %v2180 = vsel %vm565, %v2042, 0.0
        %2181 = vadd.xlane.f32.xlu0 %v2180
        %v2182 = vpop.xlane.xlu0 %2181
        %v2183 = vsel %vm565, %v2043, 0.0
        %2184 = vadd.xlane.f32.xlu0 %v2183
        %v2185 = vpop.xlane.xlu0 %2184
        %v2186 = vsel %vm565, %v2044, 0.0
        %2187 = vadd.xlane.f32.xlu0 %v2186
        %v2188 = vpop.xlane.xlu0 %2187
        %v2189 = vsel %vm565, %v2045, 0.0
        %2190 = vadd.xlane.f32.xlu0 %v2189
        %v2191 = vpop.xlane.xlu0 %2190
        %v2192 = vsel %vm565, %v2046, 0.0
        %2193 = vadd.xlane.f32.xlu0 %v2192
        %v2194 = vpop.xlane.xlu0 %2193
        %v2195 = vsel %vm565, %v2047, 0.0
        %2196 = vadd.xlane.f32.xlu0 %v2195
        %v2197 = vpop.xlane.xlu0 %2196
        %v2198 = vsel %vm565, %v2048, 0.0
        %2199 = vadd.xlane.f32.xlu0 %v2198
        %v2200 = vpop.xlane.xlu0 %2199
        %v2201 = vsel %vm565, %v2049, 0.0
        %2202 = vadd.xlane.f32.xlu0 %v2201
        %v2203 = vpop.xlane.xlu0 %2202
        %v2204 = vsel %vm565, %v2050, 0.0
        %2205 = vadd.xlane.f32.xlu0 %v2204
        %v2206 = vpop.xlane.xlu0 %2205
        %v2207 = vsel %vm565, %v2051, 0.0
        %2208 = vadd.xlane.f32.xlu0 %v2207
        %v2209 = vpop.xlane.xlu0 %2208
        %v2210 = vsel %vm565, %v2052, 0.0
        %2211 = vadd.xlane.f32.xlu0 %v2210
        %v2212 = vpop.xlane.xlu0 %2211
        %v2213 = vsel %vm565, %v2053, 0.0
        %2214 = vadd.xlane.f32.xlu0 %v2213
        %v2215 = vpop.xlane.xlu0 %2214
        %v2216 = vsel %vm565, %v2054, 0.0
        %2217 = vadd.xlane.f32.xlu0 %v2216
        %v2218 = vpop.xlane.xlu0 %2217
        %v2219 = vsel %vm565, %v2055, 0.0
        %2220 = vadd.xlane.f32.xlu0 %v2219
        %v2221 = vpop.xlane.xlu0 %2220
        %v2222 = vsel %vm565, %v2056, 0.0
        %2223 = vadd.xlane.f32.xlu0 %v2222
        %v2224 = vpop.xlane.xlu0 %2223
        %v2225 = vsel %vm565, %v2057, 0.0
        %2226 = vadd.xlane.f32.xlu0 %v2225
        %v2227 = vpop.xlane.xlu0 %2226
        %v2228 = vsel %vm565, %v2058, 0.0
        %2229 = vadd.xlane.f32.xlu0 %v2228
        %v2230 = vpop.xlane.xlu0 %2229
        %v2231 = vsel %vm565, %v2059, 0.0
        %2232 = vadd.xlane.f32.xlu0 %v2231
        %v2233 = vpop.xlane.xlu0 %2232
        %v2234 = vsel %vm565, %v2060, 0.0
        %2235 = vadd.xlane.f32.xlu0 %v2234
        %v2236 = vpop.xlane.xlu0 %2235
        %v2237 = vsel %vm565, %v2061, 0.0
        %2238 = vadd.xlane.f32.xlu0 %v2237
        %v2239 = vpop.xlane.xlu0 %2238
        %v2240 = vsel %vm565, %v2062, 0.0
        %2241 = vadd.xlane.f32.xlu0 %v2240
        %v2242 = vpop.xlane.xlu0 %2241
        %v2243 = vsel %vm565, %v2063, 0.0
        %2244 = vadd.xlane.f32.xlu0 %v2243
        %v2245 = vpop.xlane.xlu0 %2244
        %v2246 = vsel %vm565, %v2064, 0.0
        %2247 = vadd.xlane.f32.xlu0 %v2246
        %v2248 = vpop.xlane.xlu0 %2247
        %v2249 = vsel %vm565, %v2065, 0.0
        %2250 = vadd.xlane.f32.xlu0 %v2249
        %v2251 = vpop.xlane.xlu0 %2250
        %v2252 = vsel %vm565, %v2066, 0.0
        %2253 = vadd.xlane.f32.xlu0 %v2252
        %v2254 = vpop.xlane.xlu0 %2253
        %v2255 = vsel %vm565, %v2067, 0.0
        %2256 = vadd.xlane.f32.xlu0 %v2255
        %v2257 = vpop.xlane.xlu0 %2256
        %v2258 = vsel %vm565, %v2068, 0.0
        %2259 = vadd.xlane.f32.xlu0 %v2258
        %v2260 = vpop.xlane.xlu0 %2259
        %v2261 = vmax.f32 %v2071, %v2083
        %v2262 = vmax.f32 %v2074, %v2086
        %v2263 = vmax.f32 %v2077, %v2089
        %v2264 = vmax.f32 %v2080, %v2092
        %v2265 = vmax.f32 %v2261, %v2095
        %v2266 = vmax.f32 %v2262, %v2098
        %v2267 = vmax.f32 %v2263, %v2101
        %v2268 = vmax.f32 %v2264, %v2104
        %v2269 = vmax.f32 %v2265, %v2107
        %v2270 = vmax.f32 %v2266, %v2110
        %v2271 = vmax.f32 %v2267, %v2113
        %v2272 = vmax.f32 %v2268, %v2116
        %v2273 = vmax.f32 %v2269, %v2119
        %v2274 = vmax.f32 %v2270, %v2122
        %v2275 = vmax.f32 %v2271, %v2125
        %v2276 = vmax.f32 %v2272, %v2128
        %v2277 = vmax.f32 %v2273, %v2131
        %v2278 = vmax.f32 %v2274, %v2134
        %v2279 = vmax.f32 %v2275, %v2137
        %v2280 = vmax.f32 %v2276, %v2140
        %v2281 = vmax.f32 %v2277, %v2143
        %v2282 = vmax.f32 %v2278, %v2146
        %v2283 = vmax.f32 %v2279, %v2149
        %v2284 = vmax.f32 %v2280, %v2152
        %v2285 = vmax.f32 %v2281, %v2155
        %v2286 = vmax.f32 %v2282, %v2158
        %v2287 = vmax.f32 %v2283, %v2161
        %v2288 = vmax.f32 %v2284, %v2164
        %v2289 = vmax.f32 %v2285, %v2167
        %v2290 = vmax.f32 %v2286, %v2170
        %v2291 = vmax.f32 %v2287, %v2173
        %v2292 = vmax.f32 %v2288, %v2176
        %v2293 = vmax.f32 %v2289, %v2179
        %v2294 = vmax.f32 %v2290, %v2182
        %v2295 = vmax.f32 %v2291, %v2185
        %v2296 = vmax.f32 %v2292, %v2188
        %v2297 = vmax.f32 %v2293, %v2191
        %v2298 = vmax.f32 %v2294, %v2194
        %v2299 = vmax.f32 %v2295, %v2197
        %v2300 = vmax.f32 %v2296, %v2200
        %v2301 = vmax.f32 %v2297, %v2203
        %v2302 = vmax.f32 %v2298, %v2206
        %v2303 = vmax.f32 %v2299, %v2209
        %v2304 = vmax.f32 %v2300, %v2212
        %v2305 = vmax.f32 %v2301, %v2215
        %v2306 = vmax.f32 %v2302, %v2218
        %v2307 = vmax.f32 %v2303, %v2221
        %v2308 = vmax.f32 %v2304, %v2224
        %v2309 = vmax.f32 %v2305, %v2227
        %v2310 = vmax.f32 %v2306, %v2230
        %v2311 = vmax.f32 %v2307, %v2233
        %v2312 = vmax.f32 %v2308, %v2236
        %v2313 = vmax.f32 %v2309, %v2239
        %v2314 = vmax.f32 %v2310, %v2242
        %v2315 = vmax.f32 %v2311, %v2245
        %v2316 = vmax.f32 %v2312, %v2248
        %v2317 = vmax.f32 %v2313, %v2251
        %v2318 = vmax.f32 %v2314, %v2254
        %v2319 = vmax.f32 %v2315, %v2257
        %v2320 = vmax.f32 %v2316, %v2260
        %v2321 = vmax.f32 %v2317, %v2318
        %v2322 = vmax.f32 %v2319, %v2320
        %v2323 = vmax.f32 %v2321, %v2322
        %v2324 = vsub.f32 %v2071, %v2323
        %v2325 = vsub.f32 %v2074, %v2323
        %v2326 = vsub.f32 %v2077, %v2323
        %v2327 = vsub.f32 %v2080, %v2323
        %v2328 = vsub.f32 %v2083, %v2323
        %v2329 = vsub.f32 %v2086, %v2323
        %v2330 = vsub.f32 %v2089, %v2323
        %v2331 = vsub.f32 %v2092, %v2323
        %v2332 = vsub.f32 %v2095, %v2323
        %v2333 = vsub.f32 %v2098, %v2323
        %v2334 = vsub.f32 %v2101, %v2323
        %v2335 = vsub.f32 %v2104, %v2323
        %v2336 = vsub.f32 %v2107, %v2323
        %v2337 = vsub.f32 %v2110, %v2323
        %v2338 = vsub.f32 %v2113, %v2323
        %v2339 = vsub.f32 %v2116, %v2323
        %v2340 = vsub.f32 %v2119, %v2323
        %v2341 = vsub.f32 %v2122, %v2323
        %v2342 = vsub.f32 %v2125, %v2323
        %v2343 = vsub.f32 %v2128, %v2323
        %v2344 = vsub.f32 %v2131, %v2323
        %v2345 = vsub.f32 %v2134, %v2323
        %v2346 = vsub.f32 %v2137, %v2323
        %v2347 = vsub.f32 %v2140, %v2323
        %v2348 = vsub.f32 %v2143, %v2323
        %v2349 = vsub.f32 %v2146, %v2323
        %v2350 = vsub.f32 %v2149, %v2323
        %v2351 = vsub.f32 %v2152, %v2323
        %v2352 = vsub.f32 %v2155, %v2323
        %v2353 = vsub.f32 %v2158, %v2323
        %v2354 = vsub.f32 %v2161, %v2323
        %v2355 = vsub.f32 %v2164, %v2323
        %v2356 = vsub.f32 %v2167, %v2323
        %v2357 = vsub.f32 %v2170, %v2323
        %v2358 = vsub.f32 %v2173, %v2323
        %v2359 = vsub.f32 %v2176, %v2323
        %v2360 = vsub.f32 %v2179, %v2323
        %v2361 = vsub.f32 %v2182, %v2323
        %v2362 = vsub.f32 %v2185, %v2323
        %v2363 = vsub.f32 %v2188, %v2323
        %v2364 = vsub.f32 %v2191, %v2323
        %v2365 = vsub.f32 %v2194, %v2323
        %v2366 = vsub.f32 %v2197, %v2323
        %v2367 = vsub.f32 %v2200, %v2323
        %v2368 = vsub.f32 %v2203, %v2323
        %v2369 = vsub.f32 %v2206, %v2323
        %v2370 = vsub.f32 %v2209, %v2323
        %v2371 = vsub.f32 %v2212, %v2323
        %v2372 = vsub.f32 %v2215, %v2323
        %v2373 = vsub.f32 %v2218, %v2323
        %v2374 = vsub.f32 %v2221, %v2323
        %v2375 = vsub.f32 %v2224, %v2323
        %v2376 = vsub.f32 %v2227, %v2323
        %v2377 = vsub.f32 %v2230, %v2323
        %v2378 = vsub.f32 %v2233, %v2323
        %v2379 = vsub.f32 %v2236, %v2323
        %v2380 = vsub.f32 %v2239, %v2323
        %v2381 = vsub.f32 %v2242, %v2323
        %v2382 = vsub.f32 %v2245, %v2323
        %v2383 = vsub.f32 %v2248, %v2323
        %v2384 = vsub.f32 %v2251, %v2323
        %v2385 = vsub.f32 %v2254, %v2323
        %v2386 = vsub.f32 %v2257, %v2323
        %v2387 = vsub.f32 %v2260, %v2323
        %v2388 = vmul.f32 %v2324, 1.442695
        %v2389 = vpow.pop %v2388
        %v2390 = vmul.f32 %v2325, 1.442695
        %v2391 = vpow.pop %v2390
        %v2392 = vmul.f32 %v2326, 1.442695
        %v2393 = vpow.pop %v2392
        %v2394 = vmul.f32 %v2327, 1.442695
        %v2395 = vpow.pop %v2394
        %v2396 = vmul.f32 %v2328, 1.442695
        %v2397 = vpow.pop %v2396
        %v2398 = vmul.f32 %v2329, 1.442695
        %v2399 = vpow.pop %v2398
        %v2400 = vmul.f32 %v2330, 1.442695
        %v2401 = vpow.pop %v2400
        %v2402 = vmul.f32 %v2331, 1.442695
        %v2403 = vpow.pop %v2402
        %v2404 = vmul.f32 %v2332, 1.442695
        %v2405 = vpow.pop %v2404
        %v2406 = vmul.f32 %v2333, 1.442695
        %v2407 = vpow.pop %v2406
        %v2408 = vmul.f32 %v2334, 1.442695
        %v2409 = vpow.pop %v2408
        %v2410 = vmul.f32 %v2335, 1.442695
        %v2411 = vpow.pop %v2410
        %v2412 = vmul.f32 %v2336, 1.442695
        %v2413 = vpow.pop %v2412
        %v2414 = vmul.f32 %v2337, 1.442695
        %v2415 = vpow.pop %v2414
        %v2416 = vmul.f32 %v2338, 1.442695
        %v2417 = vpow.pop %v2416
        %v2418 = vmul.f32 %v2339, 1.442695
        %v2419 = vpow.pop %v2418
        %v2420 = vmul.f32 %v2340, 1.442695
        %v2421 = vpow.pop %v2420
        %v2422 = vmul.f32 %v2341, 1.442695
        %v2423 = vpow.pop %v2422
        %v2424 = vmul.f32 %v2342, 1.442695
        %v2425 = vpow.pop %v2424
        %v2426 = vmul.f32 %v2343, 1.442695
        %v2427 = vpow.pop %v2426
        %v2428 = vmul.f32 %v2344, 1.442695
        %v2429 = vpow.pop %v2428
        %v2430 = vmul.f32 %v2345, 1.442695
        %v2431 = vpow.pop %v2430
        %v2432 = vmul.f32 %v2346, 1.442695
        %v2433 = vpow.pop %v2432
        %v2434 = vmul.f32 %v2347, 1.442695
        %v2435 = vpow.pop %v2434
        %v2436 = vmul.f32 %v2348, 1.442695
        %v2437 = vpow.pop %v2436
        %v2438 = vmul.f32 %v2349, 1.442695
        %v2439 = vpow.pop %v2438
        %v2440 = vmul.f32 %v2350, 1.442695
        %v2441 = vpow.pop %v2440
        %v2442 = vmul.f32 %v2351, 1.442695
        %v2443 = vpow.pop %v2442
        %v2444 = vmul.f32 %v2352, 1.442695
        %v2445 = vpow.pop %v2444
        %v2446 = vmul.f32 %v2353, 1.442695
        %v2447 = vpow.pop %v2446
        %v2448 = vmul.f32 %v2354, 1.442695
        %v2449 = vpow.pop %v2448
        %v2450 = vmul.f32 %v2355, 1.442695
        %v2451 = vpow.pop %v2450
        %v2452 = vmul.f32 %v2356, 1.442695
        %v2453 = vpow.pop %v2452
        %v2454 = vmul.f32 %v2357, 1.442695
        %v2455 = vpow.pop %v2454
        %v2456 = vmul.f32 %v2358, 1.442695
        %v2457 = vpow.pop %v2456
        %v2458 = vmul.f32 %v2359, 1.442695
        %v2459 = vpow.pop %v2458
        %v2460 = vmul.f32 %v2360, 1.442695
        %v2461 = vpow.pop %v2460
        %v2462 = vmul.f32 %v2361, 1.442695
        %v2463 = vpow.pop %v2462
        %v2464 = vmul.f32 %v2362, 1.442695
        %v2465 = vpow.pop %v2464
        %v2466 = vmul.f32 %v2363, 1.442695
        %v2467 = vpow.pop %v2466
        %v2468 = vmul.f32 %v2364, 1.442695
        %v2469 = vpow.pop %v2468
        %v2470 = vmul.f32 %v2365, 1.442695
        %v2471 = vpow.pop %v2470
        %v2472 = vmul.f32 %v2366, 1.442695
        %v2473 = vpow.pop %v2472
        %v2474 = vmul.f32 %v2367, 1.442695
        %v2475 = vpow.pop %v2474
        %v2476 = vmul.f32 %v2368, 1.442695
        %v2477 = vpow.pop %v2476
        %v2478 = vmul.f32 %v2369, 1.442695
        %v2479 = vpow.pop %v2478
        %v2480 = vmul.f32 %v2370, 1.442695
        %v2481 = vpow.pop %v2480
        %v2482 = vmul.f32 %v2371, 1.442695
        %v2483 = vpow.pop %v2482
        %v2484 = vmul.f32 %v2372, 1.442695
        %v2485 = vpow.pop %v2484
        %v2486 = vmul.f32 %v2373, 1.442695
        %v2487 = vpow.pop %v2486
        %v2488 = vmul.f32 %v2374, 1.442695
        %v2489 = vpow.pop %v2488
        %v2490 = vmul.f32 %v2375, 1.442695
        %v2491 = vpow.pop %v2490
        %v2492 = vmul.f32 %v2376, 1.442695
        %v2493 = vpow.pop %v2492
        %v2494 = vmul.f32 %v2377, 1.442695
        %v2495 = vpow.pop %v2494
        %v2496 = vmul.f32 %v2378, 1.442695
        %v2497 = vpow.pop %v2496
        %v2498 = vmul.f32 %v2379, 1.442695
        %v2499 = vpow.pop %v2498
        %v2500 = vmul.f32 %v2380, 1.442695
        %v2501 = vpow.pop %v2500
        %v2502 = vmul.f32 %v2381, 1.442695
        %v2503 = vpow.pop %v2502
        %v2504 = vmul.f32 %v2382, 1.442695
        %v2505 = vpow.pop %v2504
        %v2506 = vmul.f32 %v2383, 1.442695
        %v2507 = vpow.pop %v2506
        %v2508 = vmul.f32 %v2384, 1.442695
        %v2509 = vpow.pop %v2508
        %v2510 = vmul.f32 %v2385, 1.442695
        %v2511 = vpow.pop %v2510
        %v2512 = vmul.f32 %v2386, 1.442695
        %v2513 = vpow.pop %v2512
        %v2514 = vmul.f32 %v2387, 1.442695
        %v2515 = vpow.pop %v2514
        %v2516 = vadd.f32 %v2389, %v2391
        %v2517 = vadd.f32 %v2516, %v2393
        %v2518 = vadd.f32 %v2517, %v2395
        %v2519 = vadd.f32 %v2518, %v2397
        %v2520 = vadd.f32 %v2519, %v2399
        %v2521 = vadd.f32 %v2520, %v2401
        %v2522 = vadd.f32 %v2521, %v2403
        %v2523 = vadd.f32 %v2522, %v2405
        %v2524 = vadd.f32 %v2523, %v2407
        %v2525 = vadd.f32 %v2524, %v2409
        %v2526 = vadd.f32 %v2525, %v2411
        %v2527 = vadd.f32 %v2526, %v2413
        %v2528 = vadd.f32 %v2527, %v2415
        %v2529 = vadd.f32 %v2528, %v2417
        %v2530 = vadd.f32 %v2529, %v2419
        %v2531 = vadd.f32 %v2530, %v2421
        %v2532 = vadd.f32 %v2531, %v2423
        %v2533 = vadd.f32 %v2532, %v2425
        %v2534 = vadd.f32 %v2533, %v2427
        %v2535 = vadd.f32 %v2534, %v2429
        %v2536 = vadd.f32 %v2535, %v2431
        %v2537 = vadd.f32 %v2536, %v2433
        %v2538 = vadd.f32 %v2537, %v2435
        %v2539 = vadd.f32 %v2538, %v2437
        %v2540 = vadd.f32 %v2539, %v2439
        %v2541 = vadd.f32 %v2540, %v2441
        %v2542 = vadd.f32 %v2541, %v2443
        %v2543 = vadd.f32 %v2542, %v2445
        %v2544 = vadd.f32 %v2543, %v2447
        %v2545 = vadd.f32 %v2544, %v2449
        %v2546 = vadd.f32 %v2545, %v2451
        %v2547 = vadd.f32 %v2546, %v2453
        %v2548 = vadd.f32 %v2547, %v2455
        %v2549 = vadd.f32 %v2548, %v2457
        %v2550 = vadd.f32 %v2549, %v2459
        %v2551 = vadd.f32 %v2550, %v2461
        %v2552 = vadd.f32 %v2551, %v2463
        %v2553 = vadd.f32 %v2552, %v2465
        %v2554 = vadd.f32 %v2553, %v2467
        %v2555 = vadd.f32 %v2554, %v2469
        %v2556 = vadd.f32 %v2555, %v2471
        %v2557 = vadd.f32 %v2556, %v2473
        %v2558 = vadd.f32 %v2557, %v2475
        %v2559 = vadd.f32 %v2558, %v2477
        %v2560 = vadd.f32 %v2559, %v2479
        %v2561 = vadd.f32 %v2560, %v2481
        %v2562 = vadd.f32 %v2561, %v2483
        %v2563 = vadd.f32 %v2562, %v2485
        %v2564 = vadd.f32 %v2563, %v2487
        %v2565 = vadd.f32 %v2564, %v2489
        %v2566 = vadd.f32 %v2565, %v2491
        %v2567 = vadd.f32 %v2566, %v2493
        %v2568 = vadd.f32 %v2567, %v2495
        %v2569 = vadd.f32 %v2568, %v2497
        %v2570 = vadd.f32 %v2569, %v2499
        %v2571 = vadd.f32 %v2570, %v2501
        %v2572 = vadd.f32 %v2571, %v2503
        %v2573 = vadd.f32 %v2572, %v2505
        %v2574 = vadd.f32 %v2573, %v2507
        %v2575 = vadd.f32 %v2574, %v2509
        %v2576 = vadd.f32 %v2575, %v2511
        %v2577 = vadd.f32 %v2576, %v2513
        %v2578 = vadd.f32 %v2577, %v2515
        %v2579 = vrcp.pop %v2578
        %v2580 = vmul.f32 %v2578, %v2579
        %v2581 = vsub.f32 1.0, %v2580
        %v2582 = vmul.f32 %v2579, %v2581
        %v2583 = vadd.f32 %v2579, %v2582
        %vm2584 = vweird.f32 %v2578
        %vm2585 = vweird.f32 %v2579
        %vm2586 = vmor %vm2584, %vm2585
        %v2587 = vsel %vm2586, %v2579, %v2583
        %v2588 = vand.u32 2147483647, %v2578
        %vm2589 = vcmp.eq.f32.partialorder %v2588, 8.507059e+37
        %v2590 = vand.u32 %v2578, 2147483648
        %v2591 = vor.u32 1.1754944e-38, %v2590
        %v2592 = vsel %vm2589, %v2591, %v2587
        %v2593 = vmul.f32 %v2389, %v2592
        %v2594 = vmul.f32 %v2391, %v2592
        %v2595 = vmul.f32 %v2393, %v2592
        %v2596 = vmul.f32 %v2395, %v2592
        %v2597 = vmul.f32 %v2397, %v2592
        %v2598 = vmul.f32 %v2399, %v2592
        %v2599 = vmul.f32 %v2401, %v2592
        %v2600 = vmul.f32 %v2403, %v2592
        %v2601 = vmul.f32 %v2405, %v2592
        %v2602 = vmul.f32 %v2407, %v2592
        %v2603 = vmul.f32 %v2409, %v2592
        %v2604 = vmul.f32 %v2411, %v2592
        %v2605 = vmul.f32 %v2413, %v2592
        %v2606 = vmul.f32 %v2415, %v2592
        %v2607 = vmul.f32 %v2417, %v2592
        %v2608 = vmul.f32 %v2419, %v2592
        %v2609 = vmul.f32 %v2421, %v2592
        %v2610 = vmul.f32 %v2423, %v2592
        %v2611 = vmul.f32 %v2425, %v2592
        %v2612 = vmul.f32 %v2427, %v2592
        %v2613 = vmul.f32 %v2429, %v2592
        %v2614 = vmul.f32 %v2431, %v2592
        %v2615 = vmul.f32 %v2433, %v2592
        %v2616 = vmul.f32 %v2435, %v2592
        %v2617 = vmul.f32 %v2437, %v2592
        %v2618 = vmul.f32 %v2439, %v2592
        %v2619 = vmul.f32 %v2441, %v2592
        %v2620 = vmul.f32 %v2443, %v2592
        %v2621 = vmul.f32 %v2445, %v2592
        %v2622 = vmul.f32 %v2447, %v2592
        %v2623 = vmul.f32 %v2449, %v2592
        %v2624 = vmul.f32 %v2451, %v2592
        %v2625 = vmul.f32 %v2453, %v2592
        %v2626 = vmul.f32 %v2455, %v2592
        %v2627 = vmul.f32 %v2457, %v2592
        %v2628 = vmul.f32 %v2459, %v2592
        %v2629 = vmul.f32 %v2461, %v2592
        %v2630 = vmul.f32 %v2463, %v2592
        %v2631 = vmul.f32 %v2465, %v2592
        %v2632 = vmul.f32 %v2467, %v2592
        %v2633 = vmul.f32 %v2469, %v2592
        %v2634 = vmul.f32 %v2471, %v2592
        %v2635 = vmul.f32 %v2473, %v2592
        %v2636 = vmul.f32 %v2475, %v2592
        %v2637 = vmul.f32 %v2477, %v2592
        %v2638 = vmul.f32 %v2479, %v2592
        %v2639 = vmul.f32 %v2481, %v2592
        %v2640 = vmul.f32 %v2483, %v2592
        %v2641 = vmul.f32 %v2485, %v2592
        %v2642 = vmul.f32 %v2487, %v2592
        %v2643 = vmul.f32 %v2489, %v2592
        %v2644 = vmul.f32 %v2491, %v2592
        %v2645 = vmul.f32 %v2493, %v2592
        %v2646 = vmul.f32 %v2495, %v2592
        %v2647 = vmul.f32 %v2497, %v2592
        %v2648 = vmul.f32 %v2499, %v2592
        %v2649 = vmul.f32 %v2501, %v2592
        %v2650 = vmul.f32 %v2503, %v2592
        %v2651 = vmul.f32 %v2505, %v2592
        %v2652 = vmul.f32 %v2507, %v2592
        %v2653 = vmul.f32 %v2509, %v2592
        %v2654 = vmul.f32 %v2511, %v2592
        %v2655 = vmul.f32 %v2513, %v2592
        %v2656 = vmul.f32 %v2515, %v2592
        %v2657 = vmul.f32 %v945, %v2593
        %v2658 = vmul.f32 %v946, %v2594
        %v2659 = vmul.f32 %v947, %v2595
        %v2660 = vmul.f32 %v948, %v2596
        %v2661 = vmul.f32 %v949, %v2597
        %v2662 = vmul.f32 %v950, %v2598
        %v2663 = vmul.f32 %v951, %v2599
        %v2664 = vmul.f32 %v952, %v2600
        %v2665 = vmul.f32 %v953, %v2601
        %v2666 = vmul.f32 %v954, %v2602
        %v2667 = vmul.f32 %v955, %v2603
        %v2668 = vmul.f32 %v956, %v2604
        %v2669 = vmul.f32 %v957, %v2605
        %v2670 = vmul.f32 %v958, %v2606
        %v2671 = vmul.f32 %v959, %v2607
        %v2672 = vmul.f32 %v960, %v2608
        %v2673 = vmul.f32 %v961, %v2609
        %v2674 = vmul.f32 %v962, %v2610
        %v2675 = vmul.f32 %v963, %v2611
        %v2676 = vmul.f32 %v964, %v2612
        %v2677 = vmul.f32 %v965, %v2613
        %v2678 = vmul.f32 %v966, %v2614
        %v2679 = vmul.f32 %v967, %v2615
        %v2680 = vmul.f32 %v968, %v2616
        %v2681 = vmul.f32 %v969, %v2617
        %v2682 = vmul.f32 %v970, %v2618
        %v2683 = vmul.f32 %v971, %v2619
        %v2684 = vmul.f32 %v972, %v2620
        %v2685 = vmul.f32 %v973, %v2621
        %v2686 = vmul.f32 %v974, %v2622
        %v2687 = vmul.f32 %v975, %v2623
        %v2688 = vmul.f32 %v976, %v2624
        %v2689 = vmul.f32 %v977, %v2625
        %v2690 = vmul.f32 %v978, %v2626
        %v2691 = vmul.f32 %v979, %v2627
        %v2692 = vmul.f32 %v980, %v2628
        %v2693 = vmul.f32 %v981, %v2629
        %v2694 = vmul.f32 %v982, %v2630
        %v2695 = vmul.f32 %v983, %v2631
        %v2696 = vmul.f32 %v984, %v2632
        %v2697 = vmul.f32 %v985, %v2633
        %v2698 = vmul.f32 %v986, %v2634
        %v2699 = vmul.f32 %v987, %v2635
        %v2700 = vmul.f32 %v988, %v2636
        %v2701 = vmul.f32 %v989, %v2637
        %v2702 = vmul.f32 %v990, %v2638
        %v2703 = vmul.f32 %v991, %v2639
        %v2704 = vmul.f32 %v992, %v2640
        %v2705 = vmul.f32 %v993, %v2641
        %v2706 = vmul.f32 %v994, %v2642
        %v2707 = vmul.f32 %v995, %v2643
        %v2708 = vmul.f32 %v996, %v2644
        %v2709 = vmul.f32 %v997, %v2645
        %v2710 = vmul.f32 %v998, %v2646
        %v2711 = vmul.f32 %v999, %v2647
        %v2712 = vmul.f32 %v1000, %v2648
        %v2713 = vmul.f32 %v1001, %v2649
        %v2714 = vmul.f32 %v1002, %v2650
        %v2715 = vmul.f32 %v1003, %v2651
        %v2716 = vmul.f32 %v1004, %v2652
        %v2717 = vmul.f32 %v1005, %v2653
        %v2718 = vmul.f32 %v1006, %v2654
        %v2719 = vmul.f32 %v1007, %v2655
        %v2720 = vmul.f32 %v1008, %v2656
        %v2721 = vsel %vm565, %v2657, 0.0
        %v2722 = vsel %vm565, %v2658, 0.0
        %v2723 = vadd.f32 %v2721, %v2722
        %v2724 = vsel %vm565, %v2659, 0.0
        %v2725 = vadd.f32 %v2723, %v2724
        %v2726 = vsel %vm565, %v2660, 0.0
        %v2727 = vadd.f32 %v2725, %v2726
        %v2728 = vsel %vm565, %v2661, 0.0
        %v2729 = vadd.f32 %v2727, %v2728
        %v2730 = vsel %vm565, %v2662, 0.0
        %v2731 = vadd.f32 %v2729, %v2730
        %v2732 = vsel %vm565, %v2663, 0.0
        %v2733 = vadd.f32 %v2731, %v2732
        %v2734 = vsel %vm565, %v2664, 0.0
        %v2735 = vadd.f32 %v2733, %v2734
        %v2736 = vsel %vm565, %v2665, 0.0
        %v2737 = vadd.f32 %v2735, %v2736
        %v2738 = vsel %vm565, %v2666, 0.0
        %v2739 = vadd.f32 %v2737, %v2738
        %v2740 = vsel %vm565, %v2667, 0.0
        %v2741 = vadd.f32 %v2739, %v2740
        %v2742 = vsel %vm565, %v2668, 0.0
        %v2743 = vadd.f32 %v2741, %v2742
        %v2744 = vsel %vm565, %v2669, 0.0
        %v2745 = vadd.f32 %v2743, %v2744
        %v2746 = vsel %vm565, %v2670, 0.0
        %v2747 = vadd.f32 %v2745, %v2746
        %v2748 = vsel %vm565, %v2671, 0.0
        %v2749 = vadd.f32 %v2747, %v2748
        %v2750 = vsel %vm565, %v2672, 0.0
        %v2751 = vadd.f32 %v2749, %v2750
        %v2752 = vsel %vm565, %v2673, 0.0
        %v2753 = vadd.f32 %v2751, %v2752
        %v2754 = vsel %vm565, %v2674, 0.0
        %v2755 = vadd.f32 %v2753, %v2754
        %v2756 = vsel %vm565, %v2675, 0.0
        %v2757 = vadd.f32 %v2755, %v2756
        %v2758 = vsel %vm565, %v2676, 0.0
        %v2759 = vadd.f32 %v2757, %v2758
        %v2760 = vsel %vm565, %v2677, 0.0
        %v2761 = vadd.f32 %v2759, %v2760
        %v2762 = vsel %vm565, %v2678, 0.0
        %v2763 = vadd.f32 %v2761, %v2762
        %v2764 = vsel %vm565, %v2679, 0.0
        %v2765 = vadd.f32 %v2763, %v2764
        %v2766 = vsel %vm565, %v2680, 0.0
        %v2767 = vadd.f32 %v2765, %v2766
        %v2768 = vsel %vm565, %v2681, 0.0
        %v2769 = vadd.f32 %v2767, %v2768
        %v2770 = vsel %vm565, %v2682, 0.0
        %v2771 = vadd.f32 %v2769, %v2770
        %v2772 = vsel %vm565, %v2683, 0.0
        %v2773 = vadd.f32 %v2771, %v2772
        %v2774 = vsel %vm565, %v2684, 0.0
        %v2775 = vadd.f32 %v2773, %v2774
        %v2776 = vsel %vm565, %v2685, 0.0
        %v2777 = vadd.f32 %v2775, %v2776
        %v2778 = vsel %vm565, %v2686, 0.0
        %v2779 = vadd.f32 %v2777, %v2778
        %v2780 = vsel %vm565, %v2687, 0.0
        %v2781 = vadd.f32 %v2779, %v2780
        %v2782 = vsel %vm565, %v2688, 0.0
        %v2783 = vadd.f32 %v2781, %v2782
        %v2784 = vsel %vm565, %v2689, 0.0
        %v2785 = vadd.f32 %v2783, %v2784
        %v2786 = vsel %vm565, %v2690, 0.0
        %v2787 = vadd.f32 %v2785, %v2786
        %v2788 = vsel %vm565, %v2691, 0.0
        %v2789 = vadd.f32 %v2787, %v2788
        %v2790 = vsel %vm565, %v2692, 0.0
        %v2791 = vadd.f32 %v2789, %v2790
        %v2792 = vsel %vm565, %v2693, 0.0
        %v2793 = vadd.f32 %v2791, %v2792
        %v2794 = vsel %vm565, %v2694, 0.0
        %v2795 = vadd.f32 %v2793, %v2794
        %v2796 = vsel %vm565, %v2695, 0.0
        %v2797 = vadd.f32 %v2795, %v2796
        %v2798 = vsel %vm565, %v2696, 0.0
        %v2799 = vadd.f32 %v2797, %v2798
        %v2800 = vsel %vm565, %v2697, 0.0
        %v2801 = vadd.f32 %v2799, %v2800
        %v2802 = vsel %vm565, %v2698, 0.0
        %v2803 = vadd.f32 %v2801, %v2802
        %v2804 = vsel %vm565, %v2699, 0.0
        %v2805 = vadd.f32 %v2803, %v2804
        %v2806 = vsel %vm565, %v2700, 0.0
        %v2807 = vadd.f32 %v2805, %v2806
        %v2808 = vsel %vm565, %v2701, 0.0
        %v2809 = vadd.f32 %v2807, %v2808
        %v2810 = vsel %vm565, %v2702, 0.0
        %v2811 = vadd.f32 %v2809, %v2810
        %v2812 = vsel %vm565, %v2703, 0.0
        %v2813 = vadd.f32 %v2811, %v2812
        %v2814 = vsel %vm565, %v2704, 0.0
        %v2815 = vadd.f32 %v2813, %v2814
        %v2816 = vsel %vm565, %v2705, 0.0
        %v2817 = vadd.f32 %v2815, %v2816
        %v2818 = vsel %vm565, %v2706, 0.0
        %v2819 = vadd.f32 %v2817, %v2818
        %v2820 = vsel %vm565, %v2707, 0.0
        %v2821 = vadd.f32 %v2819, %v2820
        %v2822 = vsel %vm565, %v2708, 0.0
        %v2823 = vadd.f32 %v2821, %v2822
        %v2824 = vsel %vm565, %v2709, 0.0
        %v2825 = vadd.f32 %v2823, %v2824
        %v2826 = vsel %vm565, %v2710, 0.0
        %v2827 = vadd.f32 %v2825, %v2826
        %v2828 = vsel %vm565, %v2711, 0.0
        %v2829 = vadd.f32 %v2827, %v2828
        %v2830 = vsel %vm565, %v2712, 0.0
        %v2831 = vadd.f32 %v2829, %v2830
        %v2832 = vsel %vm565, %v2713, 0.0
        %v2833 = vadd.f32 %v2831, %v2832
        %v2834 = vsel %vm565, %v2714, 0.0
        %v2835 = vadd.f32 %v2833, %v2834
        %v2836 = vsel %vm565, %v2715, 0.0
        %v2837 = vadd.f32 %v2835, %v2836
        %v2838 = vsel %vm565, %v2716, 0.0
        %v2839 = vadd.f32 %v2837, %v2838
        %v2840 = vsel %vm565, %v2717, 0.0
        %v2841 = vadd.f32 %v2839, %v2840
        %v2842 = vsel %vm565, %v2718, 0.0
        %v2843 = vadd.f32 %v2841, %v2842
        %v2844 = vsel %vm565, %v2719, 0.0
        %v2845 = vadd.f32 %v2843, %v2844
        %v2846 = vsel %vm565, %v2720, 0.0
        %v2847 = vadd.f32 %v2845, %v2846
        %2848 = vst.msk [vmem:[%s539] sm:$0xff] %vm565, %v2847
        %v2913 = vlaneseq
        %v2914 = vand.u32 %v2913, 127
        %v2915 = vperm.slane %v2593, %v2914
        %v2916 = vperm.slane %v2594, %v2914
        %v2917 = vperm.slane %v2595, %v2914
        %v2918 = vperm.slane %v2596, %v2914
        %v2919 = vperm.slane %v2597, %v2914
        %v2920 = vperm.slane %v2598, %v2914
        %v2921 = vperm.slane %v2599, %v2914
        %v2922 = vperm.slane %v2600, %v2914
        %v2923 = vperm.slane %v2601, %v2914
        %v2924 = vperm.slane %v2602, %v2914
        %v2925 = vperm.slane %v2603, %v2914
        %v2926 = vperm.slane %v2604, %v2914
        %v2927 = vperm.slane %v2605, %v2914
        %v2928 = vperm.slane %v2606, %v2914
        %v2929 = vperm.slane %v2607, %v2914
        %v2930 = vperm.slane %v2608, %v2914
        %v2931 = vperm.slane %v2609, %v2914
        %v2932 = vperm.slane %v2610, %v2914
        %v2933 = vperm.slane %v2611, %v2914
        %v2934 = vperm.slane %v2612, %v2914
        %v2935 = vperm.slane %v2613, %v2914
        %v2936 = vperm.slane %v2614, %v2914
        %v2937 = vperm.slane %v2615, %v2914
        %v2938 = vperm.slane %v2616, %v2914
        %v2939 = vperm.slane %v2617, %v2914
        %v2940 = vperm.slane %v2618, %v2914
        %v2941 = vperm.slane %v2619, %v2914
        %v2942 = vperm.slane %v2620, %v2914
        %v2943 = vperm.slane %v2621, %v2914
        %v2944 = vperm.slane %v2622, %v2914
        %v2945 = vperm.slane %v2623, %v2914
        %v2946 = vperm.slane %v2624, %v2914
        %v2947 = vperm.slane %v2625, %v2914
        %v2948 = vperm.slane %v2626, %v2914
        %v2949 = vperm.slane %v2627, %v2914
        %v2950 = vperm.slane %v2628, %v2914
        %v2951 = vperm.slane %v2629, %v2914
        %v2952 = vperm.slane %v2630, %v2914
        %v2953 = vperm.slane %v2631, %v2914
        %v2954 = vperm.slane %v2632, %v2914
        %v2955 = vperm.slane %v2633, %v2914
        %v2956 = vperm.slane %v2634, %v2914
        %v2957 = vperm.slane %v2635, %v2914
        %v2958 = vperm.slane %v2636, %v2914
        %v2959 = vperm.slane %v2637, %v2914
        %v2960 = vperm.slane %v2638, %v2914
        %v2961 = vperm.slane %v2639, %v2914
        %v2962 = vperm.slane %v2640, %v2914
        %v2963 = vperm.slane %v2641, %v2914
        %v2964 = vperm.slane %v2642, %v2914
        %v2965 = vperm.slane %v2643, %v2914
        %v2966 = vperm.slane %v2644, %v2914
        %v2967 = vperm.slane %v2645, %v2914
        %v2968 = vperm.slane %v2646, %v2914
        %v2969 = vperm.slane %v2647, %v2914
        %v2970 = vperm.slane %v2648, %v2914
        %v2971 = vperm.slane %v2649, %v2914
        %v2972 = vperm.slane %v2650, %v2914
        %v2973 = vperm.slane %v2651, %v2914
        %v2974 = vperm.slane %v2652, %v2914
        %v2975 = vperm.slane %v2653, %v2914
        %v2976 = vperm.slane %v2654, %v2914
        %v2977 = vperm.slane %v2655, %v2914
        %v2978 = vperm.slane %v2656, %v2914
        %vm2979 = vcmask 1041409
        %v2980 = vsel %vm2979, %v2916, %v2915
        %vm2981 = vcmask 1042434
        %v2982 = vsel %vm2981, %v2917, %v2980
        %vm2983 = vcmask 1043459
        %v2984 = vsel %vm2983, %v2918, %v2982
        %vm2985 = vcmask 1044484
        %v2986 = vsel %vm2985, %v2919, %v2984
        %vm2987 = vcmask 1045509
        %v2988 = vsel %vm2987, %v2920, %v2986
        %vm2989 = vcmask 1046534
        %v2990 = vsel %vm2989, %v2921, %v2988
        %vm2991 = vcmask 1047559
        %v2992 = vsel %vm2991, %v2922, %v2990
        %v2993 = vsel %vm2979, %v2924, %v2923
        %v2994 = vsel %vm2981, %v2925, %v2993
        %v2995 = vsel %vm2983, %v2926, %v2994
        %v2996 = vsel %vm2985, %v2927, %v2995
        %v2997 = vsel %vm2987, %v2928, %v2996
        %v2998 = vsel %vm2989, %v2929, %v2997
        %v2999 = vsel %vm2991, %v2930, %v2998
        %v3000 = vsel %vm2979, %v2932, %v2931
        %v3001 = vsel %vm2981, %v2933, %v3000
        %v3002 = vsel %vm2983, %v2934, %v3001
        %v3003 = vsel %vm2985, %v2935, %v3002
        %v3004 = vsel %vm2987, %v2936, %v3003
        %v3005 = vsel %vm2989, %v2937, %v3004
        %v3006 = vsel %vm2991, %v2938, %v3005
        %v3007 = vsel %vm2979, %v2940, %v2939
        %v3008 = vsel %vm2981, %v2941, %v3007
        %v3009 = vsel %vm2983, %v2942, %v3008
        %v3010 = vsel %vm2985, %v2943, %v3009
        %v3011 = vsel %vm2987, %v2944, %v3010
        %v3012 = vsel %vm2989, %v2945, %v3011
        %v3013 = vsel %vm2991, %v2946, %v3012
        %v3014 = vsel %vm2979, %v2948, %v2947
        %v3015 = vsel %vm2981, %v2949, %v3014
        %v3016 = vsel %vm2983, %v2950, %v3015
        %v3017 = vsel %vm2985, %v2951, %v3016
        %v3018 = vsel %vm2987, %v2952, %v3017
        %v3019 = vsel %vm2989, %v2953, %v3018
        %v3020 = vsel %vm2991, %v2954, %v3019
        %v3021 = vsel %vm2979, %v2956, %v2955
        %v3022 = vsel %vm2981, %v2957, %v3021
        %v3023 = vsel %vm2983, %v2958, %v3022
        %v3024 = vsel %vm2985, %v2959, %v3023
        %v3025 = vsel %vm2987, %v2960, %v3024
        %v3026 = vsel %vm2989, %v2961, %v3025
        %v3027 = vsel %vm2991, %v2962, %v3026
        %v3028 = vsel %vm2979, %v2964, %v2963
        %v3029 = vsel %vm2981, %v2965, %v3028
        %v3030 = vsel %vm2983, %v2966, %v3029
        %v3031 = vsel %vm2985, %v2967, %v3030
        %v3032 = vsel %vm2987, %v2968, %v3031
        %v3033 = vsel %vm2989, %v2969, %v3032
        %v3034 = vsel %vm2991, %v2970, %v3033
        %v3035 = vsel %vm2979, %v2972, %v2971
        %v3036 = vsel %vm2981, %v2973, %v3035
        %v3037 = vsel %vm2983, %v2974, %v3036
        %v3038 = vsel %vm2985, %v2975, %v3037
        %v3039 = vsel %vm2987, %v2976, %v3038
        %v3040 = vsel %vm2989, %v2977, %v3039
        %v3041 = vsel %vm2991, %v2978, %v3040
        %3050 = vxpose.xlu0.b32.start [1/16] %v2992, 128
        %3051 = vxpose.xlu0.b32.cont [2/16] %v2999, 128
        %3052 = vxpose.xlu0.b32.cont [3/16] %v3006, 128
        %3053 = vxpose.xlu0.b32.cont [4/16] %v3013, 128
        %3054 = vxpose.xlu0.b32.cont [5/16] %v3020, 128
        %3055 = vxpose.xlu0.b32.cont [6/16] %v3027, 128
        %3056 = vxpose.xlu0.b32.cont [7/16] %v3034, 128
        %3057 = vxpose.xlu0.b32.cont [8/16] %v3041, 128
        %3058 = vxpose.xlu0.b32.cont [9/16] 0.0, 128
        %3059 = vxpose.xlu0.b32.cont [10/16] 0.0, 128
        %3060 = vxpose.xlu0.b32.cont [11/16] 0.0, 128
        %3061 = vxpose.xlu0.b32.cont [12/16] 0.0, 128
        %3062 = vxpose.xlu0.b32.cont [13/16] 0.0, 128
        %3063 = vxpose.xlu0.b32.cont [14/16] 0.0, 128
        %3064 = vxpose.xlu0.b32.cont [15/16] 0.0, 128
        %3065 = vxpose.xlu0.b32.end [16/16] 0.0, 128
        %v3066 = vpop.trf.xlu0
        %v3067 = vpop.trf.xlu0
        %v3068 = vpop.trf.xlu0
        %v3069 = vpop.trf.xlu0
        %v3070 = vpop.trf.xlu0
        %v3071 = vpop.trf.xlu0
        %v3072 = vpop.trf.xlu0
        %v3073 = vpop.trf.xlu0
        %v3074 = vpop.trf.xlu0
        %v3075 = vpop.trf.xlu0
        %v3076 = vpop.trf.xlu0
        %v3077 = vpop.trf.xlu0
        %v3078 = vpop.trf.xlu0
        %v3079 = vpop.trf.xlu0
        %v3080 = vpop.trf.xlu0
        %v3081 = vpop.trf.xlu0
        %vm3082 = vcmask 523264
        %3083 = vst.msk [vmem:[%s546] sm:$0xff] %vm3082, %v3066
        %s3084 = sand.u32 %s130, 1
        %s3085 = scalar_lea.sflag [#allocation5], %s3084
        %s3086 = sand.u32 %s130, 1
        %s3087 = smul.addr %s3086, 8
        %s3088 = scalar_lea.vmem [#allocation4], %s3087
        %s3089 = sand.u32 %s156, 1
        %s3090 = scalar_lea.sflag [#allocation7], %s3089
        %s3091 = sand.u32 %s156, 1
        %s3092 = smul.addr %s3091, 8
        %s3093 = scalar_lea.vmem [#allocation6], %s3092
        // Predicated region
        $region75: #{tpu_custom_call.1} parent=69 // pred_check
          %p3094 = pneg %p140
        $region76: #{tpu_custom_call.1} parent=69 // pred_check_branch
          %3096 = sbr.rel (%p3094) target = $region78
        $region77: #{tpu_custom_call.1} parent=69 // pred_region
          %3098 = vsyncadd %s3085, 0
          %s3099 = smul.addr %s23, 8
          %s3100 = scalar_lea.hbm %s4, %s3099
          %s3102 = sshll.u32 %s3088, 4
          %s3103 = int_to_ptr.vmem [resolvable:$true] %s3102
          %s3104 = sshll.u32 %s3100, 4
          %s3105 = int_to_ptr.hbm [resolvable:$true] %s3104
          %3107 = dma.vmem_to_hbm [thread:$0]  %s3103, 128, %s3105, %s3085
        $region78: #{tpu_custom_call.1} parent=69 // pred_fallthru
          _
        // Predicated region
        $region79: #{tpu_custom_call.1} parent=69 // pred_check
          %p3108 = pneg %p166
        $region80: #{tpu_custom_call.1} parent=69 // pred_check_branch
          %3110 = sbr.rel (%p3108) target = $region82
        $region81: #{tpu_custom_call.1} parent=69 // pred_region
          %3112 = vsyncadd %s3090, 0
          %s3113 = smul.addr %s23, 8
          %s3114 = scalar_lea.hbm %s5, %s3113
          %s3116 = sshll.u32 %s3093, 4
          %s3117 = int_to_ptr.vmem [resolvable:$true] %s3116
          %s3118 = sshll.u32 %s3114, 4
          %s3119 = int_to_ptr.hbm [resolvable:$true] %s3118
          %3121 = dma.vmem_to_hbm [thread:$0]  %s3117, 128, %s3119, %s3090
        $region82: #{tpu_custom_call.1} parent=69 // pred_fallthru
          _
      $region70: #{tpu_custom_call.1} parent=5 // pred_fallthru
        _
      %p3122 = scmp.le.s32.totalorder 2, %s18
      // Predicated region
      $region83: #{tpu_custom_call.1} parent=5 // pred_check
        %p3123 = pneg %p3122
      $region84: #{tpu_custom_call.1} parent=5 // pred_check_branch
        %3125 = sbr.rel (%p3123) target = $region86
      $region85: #{tpu_custom_call.1} parent=5 // pred_region
        %s3126 = ssub.s32 %s18, 2
        // Predicated region
        $region87: #{tpu_custom_call.1} parent=85 // pred_check
          %p3127 = pneg %p146
        $region88: #{tpu_custom_call.1} parent=85 // pred_check_branch
          %3129 = sbr.rel (%p3127) target = $region90
        $region89: #{tpu_custom_call.1} parent=85 // pred_region
          %s3130 = sand.u32 %s131, 1
          %s3131 = scalar_lea.sflag [#allocation5], %s3130
          %s3132 = sand.u32 %s131, 1
          %s3133 = smul.addr %s3132, 8
          %s3134 = scalar_lea.vmem [#allocation4], %s3133
          %3136 = dma.done %s3131, 128
        $region90: #{tpu_custom_call.1} parent=85 // pred_fallthru
          _
        // Predicated region
        $region91: #{tpu_custom_call.1} parent=85 // pred_check
          %p3137 = pneg %p172
        $region92: #{tpu_custom_call.1} parent=85 // pred_check_branch
          %3139 = sbr.rel (%p3137) target = $region94
        $region93: #{tpu_custom_call.1} parent=85 // pred_region
          %s3140 = sand.u32 %s157, 1
          %s3141 = scalar_lea.sflag [#allocation7], %s3140
          %s3142 = sand.u32 %s157, 1
          %s3143 = smul.addr %s3142, 8
          %s3144 = scalar_lea.vmem [#allocation6], %s3143
          %3146 = dma.done %s3141, 128
        $region94: #{tpu_custom_call.1} parent=85 // pred_fallthru
          _
      $region86: #{tpu_custom_call.1} parent=5 // pred_fallthru
        _
    $region6: #{tpu_custom_call.1} parent=1 // loop_footer
      %s22 = sadd.s32 1, %s18
    $region7: #{tpu_custom_call.1} parent=1 // loop_footer_branch
      %17 = sbr.rel target = $region3
    $region8: #{tpu_custom_call.1} parent=1 // loop_exit
      _
    %3147 = vsyncpa [#allocation5], 1
    %s3148 = scalar_lea.sflag [#allocation5], 1
    %3149 = vsyncpa %s3148, 1
    %3150 = vsyncpa [#allocation7], 1
    %s3151 = scalar_lea.sflag [#allocation7], 1
    %3152 = vsyncpa %s3151, 1

</llo_original>
